<compile_context>
chip_gen: v6e
topology: v6e:2x2x1
jax: 0.10.0
libtpu: 0.0.40
codegen_flags: <defaults>
</compile_context>

<pallas_src>
import functools
import math

import jax
import jax.numpy as jnp
from jax import lax
from jax.experimental import pallas as pl
from jax.experimental.pallas import tpu as pltpu

SEQ_LEN = 50  # chunking in the reference loop does not change per-step math


# ----------------------------- Pallas kernel ------------------------------ #
def _rits_kernel(values_ref, masks_ref, deltas_ref,
                 wd_ref, bd_ref, wr_ref, br_ref,
                 wih_full_ref, wih_x_ref, whh_ref, blstm_ref,
                 imput_ref,
                 gamma_sc, sgate_sc, omm_sc, *, B, T):
    H = gamma_sc.shape[1]

    # ------------- vectorized prologue: batched over all T*B rows ----------
    x_all = values_ref[...]   # (T*B, D)
    m_all = masks_ref[...]    # (T*B, D)
    d_all = deltas_ref[...]   # (T*B, D)

    # TemporalDecay for every timestep at once: gamma = exp(-relu(d @ Wd^T + b))
    gamma_sc[...] = jnp.exp(-jnp.maximum(
        jnp.dot(d_all, wd_ref[...], preferred_element_type=jnp.float32)
        + bd_ref[...], 0.0))

    # Mask-only work hoisted out of the recurrence.
    omm_all = 1.0 - m_all
    omm_sc[...] = omm_all

    wih_x = wih_x_ref[...]    # (D, 4H)  -- first D rows of W_ih^T
    br = br_ref[...]          # (1, D)

    # Static (non-recurrent) part of the LSTM gate pre-activations:
    #   concat([m*x, m]) @ W_ih^T  +  ((1-m)*b_reg) @ Wih_x  +  (b_ih + b_hh)
    # (single K=2D MXU pass for the concat term; the recurrent part,
    #  ((1-m)*(h@Wr)) @ Wih_x + h @ Whh, is added per step.)
    gate_lhs_static = jnp.concatenate([m_all * x_all, m_all], axis=1)  # (T*B, 2D)
    sgate_sc[...] = (
        jnp.dot(gate_lhs_static, wih_full_ref[...],
                preferred_element_type=jnp.float32)
        + jnp.dot(omm_all * br, wih_x, preferred_element_type=jnp.float32)
        + blstm_ref[...])

    # Hoist weight loads out of the loop.
    wr = wr_ref[...]          # (H, D)
    whh = whh_ref[...]        # (H, 4H)

    # Single-tanh gate nonlinearity constants (built once):
    #   sigmoid(x) = 0.5 * (1 + tanh(x/2))
    # g-gate lanes [2H, 3H) keep plain tanh; the other three gates use the
    # sigmoid-as-tanh form.  act = tanh(gates*pre) * post_s + post_o.
    lane = lax.broadcasted_iota(jnp.int32, (B, 4 * H), 1)
    is_g = (lane >= 2 * H) & (lane < 3 * H)
    pre = jnp.where(is_g, 1.0, 0.5).astype(jnp.float32)
    post_s = pre
    post_o = jnp.where(is_g, 0.0, 0.5).astype(jnp.float32)

    def step(t, carry):
        h, c = carry
        row = pl.multiple_of(t * B, B)            # sublane-aligned row offset

        gamma_t = gamma_sc[pl.ds(row, B), :]      # (B, H)
        sg_t = sgate_sc[pl.ds(row, B), :]         # (B, 4H)
        omm_t = omm_sc[pl.ds(row, B), :]          # (B, D)

        h = h * gamma_t
        hwr = jnp.dot(h, wr, preferred_element_type=jnp.float32)   # (B, D)
        imput_ref[pl.ds(row, B), :] = hwr + br    # off critical path, VMEM store

        gates = (jnp.dot(omm_t * hwr, wih_x, preferred_element_type=jnp.float32)
                 + jnp.dot(h, whh, preferred_element_type=jnp.float32)
                 + sg_t)
        act = jnp.tanh(gates * pre) * post_s + post_o   # one EUP pass
        i_g = act[:, 0:H]
        f_g = act[:, H:2 * H]
        g_g = act[:, 2 * H:3 * H]
        o_g = act[:, 3 * H:4 * H]
        c_new = f_g * c + i_g * g_g
        h_new = o_g * jnp.tanh(c_new)
        return h_new, c_new

    h0 = jnp.zeros((B, H), jnp.float32)
    c0 = jnp.zeros((B, H), jnp.float32)
    lax.fori_loop(0, T, step, (h0, c0), unroll=True)


# ------------------------------- wrapper ----------------------------------- #
def rits_i_forward(params, data, impute_weight, direct='forward'):
    values = data[direct]['values']
    masks = data[direct]['masks']
    deltas = data[direct]['deltas']
    evals = data[direct]['evals']
    eval_masks = data[direct]['eval_masks']

    B, T, D = values.shape
    H = params['W_decay'].shape[0]

    # Time-major flattened (T*B, D) layout: enables the batched prologue
    # matmuls and B-row (sublane-aligned) per-step slices inside the kernel.
    to_flat = lambda a: (jnp.transpose(a, (1, 0, 2))
                         .reshape(T * B, D).astype(jnp.float32))
    v2, m2, d2 = map(to_flat, (values, masks, deltas))

    wd_T = params['W_decay'].T.astype(jnp.float32)             # (D, H)
    bd = params['b_decay'].reshape(1, H).astype(jnp.float32)
    wr_T = params['W_reg'].T.astype(jnp.float32)                # (H, D)
    br = params['b_reg'].reshape(1, D).astype(jnp.float32)
    wih_T = params['W_ih'].T.astype(jnp.float32)                 # (2D, 4H)
    wih_x = wih_T[:D]                                            # (D, 4H)
    whh_T = params['W_hh'].T.astype(jnp.float32)                 # (H, 4H)
    blstm = (params['b_ih'] + params['b_hh']).reshape(1, 4 * H).astype(jnp.float32)

    full2d = lambda a: pl.BlockSpec(a.shape, lambda i: (0, 0))

    kernel = functools.partial(_rits_kernel, B=B, T=T)

    # NOTE: whole-sequence residency ~ (inputs + gamma + sgate + omm + output)
    # ≈ (5*D + H + 4H) * 4 B per (T*B) row (< 1 KB/row).  On v7x the scoped
    # default is 32 MiB of 64 MiB physical; chunk T or set vmem_limit_bytes
    # if T*B grows into the tens of thousands of rows.
    imput_flat = pl.pallas_call(
        kernel,
        out_shape=jax.ShapeDtypeStruct((T * B, D), jnp.float32),
        grid_spec=pltpu.PrefetchScalarGridSpec(
            num_scalar_prefetch=0,
            grid=(1,),
            in_specs=[full2d(a) for a in
                      (v2, m2, d2, wd_T, bd, wr_T, br,
                       wih_T, wih_x, whh_T, blstm)],
            out_specs=pl.BlockSpec((T * B, D), lambda i: (0, 0)),
            scratch_shapes=[pltpu.VMEM((T * B, H), jnp.float32),
                            pltpu.VMEM((T * B, 4 * H), jnp.float32),
                            pltpu.VMEM((T * B, D), jnp.float32)]),
        compiler_params=pltpu.CompilerParams(
            dimension_semantics=("arbitrary",)),
    )(v2, m2, d2, wd_T, bd, wr_T, br, wih_T, wih_x, whh_T, blstm)

    imput_tbd = imput_flat.reshape(T, B, D)
    imputations = jnp.transpose(imput_tbd, (1, 0, 2))            # (B, T, D)

    # Masked L1 loss, vectorized over the sequence with per-step denominators
    # (kept in the wrapper, off the recurrent kernel's serial path).
    e_tm = jnp.transpose(evals, (1, 0, 2)).astype(jnp.float32)
    em_tm = jnp.transpose(eval_masks, (1, 0, 2)).astype(jnp.float32)
    num = jnp.sum(jnp.abs(imput_tbd - e_tm) * em_tm, axis=(1, 2))
    den = jnp.sum(em_tm, axis=(1, 2)) + 1e-5
    loss = jnp.sum(num / den) * impute_weight

    return {'loss': loss,
            'imputations': imputations,
            'evals': evals,
            'eval_masks': eval_masks}


# -------------------------- plain-JAX reference ---------------------------- #
def rits_i_reference(params, data, impute_weight, direct='forward'):
    values = data[direct]['values']
    masks = data[direct]['masks']
    deltas = data[direct]['deltas']
    evals = data[direct]['evals']
    eval_masks = data[direct]['eval_masks']
    B, T, D = values.shape
    H = params['W_decay'].shape[0]
    h = jnp.zeros((B, H), jnp.float32)
    c = jnp.zeros((B, H), jnp.float32)
    loss = jnp.float32(0.0)
    imps = []
    for t in range(T):
        x, m, d = values[:, t], masks[:, t], deltas[:, t]
        gamma = jnp.exp(-jax.nn.relu(d @ params['W_decay'].T + params['b_decay']))
        h = h * gamma
        x_h = h @ params['W_reg'].T + params['b_reg']
        x_c = m * x + (1 - m) * x_h
        tgt, tm = evals[:, t], eval_masks[:, t]
        loss = loss + jnp.sum(jnp.abs(x_h - tgt) * tm) / (jnp.sum(tm) + 1e-5)
        inp = jnp.concatenate([x_c, m], axis=1)
        gates = (inp @ params['W_ih'].T + params['b_ih']
                 + h @ params['W_hh'].T + params['b_hh'])
        i_g = jax.nn.sigmoid(gates[:, :H])
        f_g = jax.nn.sigmoid(gates[:, H:2 * H])
        g_g = jnp.tanh(gates[:, 2 * H:3 * H])
        o_g = jax.nn.sigmoid(gates[:, 3 * H:])
        c = f_g * c + i_g * g_g
        h = o_g * jnp.tanh(c)
        imps.append(x_h[:, None, :])
    return {'loss': loss * impute_weight,
            'imputations': jnp.concatenate(imps, axis=1)}


# --------------------------------- main ------------------------------------ #
if __name__ == "__main__":
    B, T, D, H = 8, 8, 16, 32
    impute_weight = 0.3

    key = jax.random.PRNGKey(0)
    keys = jax.random.split(key, 16)

    # deterministic parameter init (PyTorch-style uniform ranges)
    stdv_td = 1.0 / math.sqrt(H)
    stdv_lin = 1.0 / math.sqrt(H)
    stdv_lstm = 1.0 / math.sqrt(H)
    u = lambda k, shp, s: jax.random.uniform(k, shp, jnp.float32, -s, s)
    params = {
        'W_decay': u(keys[0], (H, D), stdv_td),
        'b_decay': u(keys[1], (H,), stdv_td),
        'W_reg':   u(keys[2], (D, H), stdv_lin),
        'b_reg':   u(keys[3], (D,), stdv_lin),
        'W_ih':    u(keys[4], (4 * H, 2 * D), stdv_lstm),
        'W_hh':    u(keys[5], (4 * H, H), stdv_lstm),
        'b_ih':    u(keys[6], (4 * H,), stdv_lstm),
        'b_hh':    u(keys[7], (4 * H,), stdv_lstm),
    }

    # deterministic inputs
    values = jax.random.normal(keys[8], (B, T, D), jnp.float32)
    masks = (jax.random.uniform(keys[9], (B, T, D)) > 0.3).astype(jnp.float32)
    deltas = jax.random.uniform(keys[10], (B, T, D), jnp.float32, 0.0, 2.0)
    evals = jax.random.normal(keys[11], (B, T, D), jnp.float32)
    eval_masks = (jax.random.uniform(keys[12], (B, T, D)) > 0.5).astype(jnp.float32)
    data = {'forward': {'values': values, 'masks': masks, 'deltas': deltas,
                        'evals': evals, 'eval_masks': eval_masks}}

    out = rits_i_forward(params, data, impute_weight)
    jax.block_until_ready(out['imputations'])
    jax.block_until_ready(out['loss'])

    ref = rits_i_reference(params, data, impute_weight)
    # Tolerance accounts for DEFAULT (single-bf16-pass) MXU precision in both
    # the kernel and the reference, with different matmul decompositions.
    assert jnp.allclose(out['imputations'], ref['imputations'],
                        rtol=2e-3, atol=2e-3), "imputations mismatch"
    assert jnp.allclose(out['loss'], ref['loss'],
                        rtol=2e-3, atol=2e-3), "loss mismatch"

    print("KERNEL_OK")
</pallas_src>

<mosaic_0001>
module attributes {stable_mosaic.version = 11 : i64} {
  func.func @_rits_kernel(%arg0: i32, %arg1: memref<64x16xf32, #tpu.memory_space<vmem>>, %arg2: memref<64x16xf32, #tpu.memory_space<vmem>>, %arg3: memref<64x16xf32, #tpu.memory_space<vmem>>, %arg4: memref<16x32xf32, #tpu.memory_space<vmem>>, %arg5: memref<1x32xf32, #tpu.memory_space<vmem>>, %arg6: memref<32x16xf32, #tpu.memory_space<vmem>>, %arg7: memref<1x16xf32, #tpu.memory_space<vmem>>, %arg8: memref<32x128xf32, #tpu.memory_space<vmem>>, %arg9: memref<16x128xf32, #tpu.memory_space<vmem>>, %arg10: memref<32x128xf32, #tpu.memory_space<vmem>>, %arg11: memref<1x128xf32, #tpu.memory_space<vmem>>, %arg12: memref<64x16xf32, #tpu.memory_space<vmem>>, %arg13: memref<64x32xf32, #tpu.memory_space<vmem>>, %arg14: memref<64x128xf32, #tpu.memory_space<vmem>>, %arg15: memref<64x16xf32, #tpu.memory_space<vmem>>) attributes {dimension_semantics = [#tpu.dimension_semantics<arbitrary>], iteration_bounds = array<i64: 1>, scalar_prefetch = 0 : i64, scratch_operands = 3 : i64, tpu.core_type = #tpu.core_type<tc>, window_params = [{pipeline_mode = #tpu.pipeline_mode<synchronous>, transform_indices = @transform_0, window_bounds = array<i64: 64, 16>}, {pipeline_mode = #tpu.pipeline_mode<synchronous>, transform_indices = @transform_1, window_bounds = array<i64: 64, 16>}, {pipeline_mode = #tpu.pipeline_mode<synchronous>, transform_indices = @transform_2, window_bounds = array<i64: 64, 16>}, {pipeline_mode = #tpu.pipeline_mode<synchronous>, transform_indices = @transform_3, window_bounds = array<i64: 16, 32>}, {pipeline_mode = #tpu.pipeline_mode<synchronous>, transform_indices = @transform_4, window_bounds = array<i64: 1, 32>}, {pipeline_mode = #tpu.pipeline_mode<synchronous>, transform_indices = @transform_5, window_bounds = array<i64: 32, 16>}, {pipeline_mode = #tpu.pipeline_mode<synchronous>, transform_indices = @transform_6, window_bounds = array<i64: 1, 16>}, {pipeline_mode = #tpu.pipeline_mode<synchronous>, transform_indices = @transform_7, window_bounds = array<i64: 32, 128>}, {pipeline_mode = #tpu.pipeline_mode<synchronous>, transform_indices = @transform_8, window_bounds = array<i64: 16, 128>}, {pipeline_mode = #tpu.pipeline_mode<synchronous>, transform_indices = @transform_9, window_bounds = array<i64: 32, 128>}, {pipeline_mode = #tpu.pipeline_mode<synchronous>, transform_indices = @transform_10, window_bounds = array<i64: 1, 128>}, {pipeline_mode = #tpu.pipeline_mode<synchronous>, transform_indices = @transform_11, window_bounds = array<i64: 64, 16>}]} {
    %c0 = arith.constant 0 : index
    %c0_0 = arith.constant 0 : index
    %0 = vector.load %arg1[%c0, %c0_0] : memref<64x16xf32, #tpu.memory_space<vmem>>, vector<64x16xf32>
    %c0_1 = arith.constant 0 : index
    %c0_2 = arith.constant 0 : index
    %1 = vector.load %arg2[%c0_1, %c0_2] : memref<64x16xf32, #tpu.memory_space<vmem>>, vector<64x16xf32>
    %c0_3 = arith.constant 0 : index
    %c0_4 = arith.constant 0 : index
    %2 = vector.load %arg3[%c0_3, %c0_4] : memref<64x16xf32, #tpu.memory_space<vmem>>, vector<64x16xf32>
    %c0_5 = arith.constant 0 : index
    %c0_6 = arith.constant 0 : index
    %3 = vector.load %arg4[%c0_5, %c0_6] : memref<16x32xf32, #tpu.memory_space<vmem>>, vector<16x32xf32>
    %cst = arith.constant dense<0.000000e+00> : vector<64x32xf32>
    %4 = tpu.matmul %2, %3, %cst {dimension_numbers = #tpu.dot_dimension_numbers<[1], [0], [0], [1], [0, 0, 1, 1], [], []>} : vector<64x16xf32>, vector<16x32xf32>, vector<64x32xf32> -> vector<64x32xf32>
    %c0_7 = arith.constant 0 : index
    %c0_8 = arith.constant 0 : index
    %5 = vector.load %arg5[%c0_7, %c0_8] : memref<1x32xf32, #tpu.memory_space<vmem>>, vector<1x32xf32>
    %6 = vector.broadcast %5 : vector<1x32xf32> to vector<64x32xf32>
    %7 = arith.addf %4, %6 : vector<64x32xf32>
    %cst_9 = arith.constant 0.000000e+00 : f32
    %8 = vector.broadcast %cst_9 : f32 to vector<64x32xf32>
    %9 = arith.maximumf %7, %8 : vector<64x32xf32>
    %cst_10 = arith.constant 0.000000e+00 : f32
    %10 = vector.broadcast %cst_10 : f32 to vector<64x32xf32>
    %11 = arith.subf %10, %9 : vector<64x32xf32>
    %12 = math.exp %11 : vector<64x32xf32>
    %c0_11 = arith.constant 0 : index
    %c0_12 = arith.constant 0 : index
    %13 = vector.load %arg13[%c0_11, %c0_12] : memref<64x32xf32, #tpu.memory_space<vmem>>, vector<64x32xf32>
    tpu.vector_store %arg13[%c0_11, %c0_12], %12 {strides = array<i32>} : memref<64x32xf32, #tpu.memory_space<vmem>>, vector<64x32xf32>,
    %cst_13 = arith.constant 1.000000e+00 : f32
    %14 = vector.broadcast %cst_13 : f32 to vector<64x16xf32>
    %15 = arith.subf %14, %1 : vector<64x16xf32>
    %c0_14 = arith.constant 0 : index
    %c0_15 = arith.constant 0 : index
    %16 = vector.load %arg15[%c0_14, %c0_15] : memref<64x16xf32, #tpu.memory_space<vmem>>, vector<64x16xf32>
    tpu.vector_store %arg15[%c0_14, %c0_15], %15 {strides = array<i32>} : memref<64x16xf32, #tpu.memory_space<vmem>>, vector<64x16xf32>,
    %c0_16 = arith.constant 0 : index
    %c0_17 = arith.constant 0 : index
    %17 = vector.load %arg9[%c0_16, %c0_17] : memref<16x128xf32, #tpu.memory_space<vmem>>, vector<16x128xf32>
    %c0_18 = arith.constant 0 : index
    %c0_19 = arith.constant 0 : index
    %18 = vector.load %arg7[%c0_18, %c0_19] : memref<1x16xf32, #tpu.memory_space<vmem>>, vector<1x16xf32>
    %19 = arith.mulf %1, %0 : vector<64x16xf32>
    %20 = tpu.concatenate %19, %1 in 1 : vector<64x16xf32>, vector<64x16xf32> -> vector<64x32xf32>
    %c0_20 = arith.constant 0 : index
    %c0_21 = arith.constant 0 : index
    %21 = vector.load %arg8[%c0_20, %c0_21] : memref<32x128xf32, #tpu.memory_space<vmem>>, vector<32x128xf32>
    %cst_22 = arith.constant dense<0.000000e+00> : vector<64x128xf32>
    %22 = tpu.matmul %20, %21, %cst_22 {dimension_numbers = #tpu.dot_dimension_numbers<[1], [0], [0], [1], [0, 0, 1, 1], [], []>} : vector<64x32xf32>, vector<32x128xf32>, vector<64x128xf32> -> vector<64x128xf32>
    %23 = vector.broadcast %18 : vector<1x16xf32> to vector<64x16xf32>
    %24 = arith.mulf %15, %23 : vector<64x16xf32>
    %cst_23 = arith.constant dense<0.000000e+00> : vector<64x128xf32>
    %25 = tpu.matmul %24, %17, %cst_23 {dimension_numbers = #tpu.dot_dimension_numbers<[1], [0], [0], [1], [0, 0, 1, 1], [], []>} : vector<64x16xf32>, vector<16x128xf32>, vector<64x128xf32> -> vector<64x128xf32>
    %26 = arith.addf %22, %25 : vector<64x128xf32>
    %c0_24 = arith.constant 0 : index
    %c0_25 = arith.constant 0 : index
    %27 = vector.load %arg11[%c0_24, %c0_25] : memref<1x128xf32, #tpu.memory_space<vmem>>, vector<1x128xf32>
    %28 = vector.broadcast %27 : vector<1x128xf32> to vector<64x128xf32>
    %29 = arith.addf %26, %28 : vector<64x128xf32>
    %c0_26 = arith.constant 0 : index
    %c0_27 = arith.constant 0 : index
    %30 = vector.load %arg14[%c0_26, %c0_27] : memref<64x128xf32, #tpu.memory_space<vmem>>, vector<64x128xf32>
    tpu.vector_store %arg14[%c0_26, %c0_27], %29 {strides = array<i32>} : memref<64x128xf32, #tpu.memory_space<vmem>>, vector<64x128xf32>,
    %c0_28 = arith.constant 0 : index
    %c0_29 = arith.constant 0 : index
    %31 = vector.load %arg6[%c0_28, %c0_29] : memref<32x16xf32, #tpu.memory_space<vmem>>, vector<32x16xf32>
    %c0_30 = arith.constant 0 : index
    %c0_31 = arith.constant 0 : index
    %32 = vector.load %arg10[%c0_30, %c0_31] : memref<32x128xf32, #tpu.memory_space<vmem>>, vector<32x128xf32>
    %33 = tpu.iota {dimensions = array<i32: 1>} : vector<8x128xi32>
    %c64_i32 = arith.constant 64 : i32
    %34 = vector.broadcast %c64_i32 : i32 to vector<8x128xi32>
    %35 = arith.cmpi sge, %33, %34 : vector<8x128xi32>
    %c96_i32 = arith.constant 96 : i32
    %36 = vector.broadcast %c96_i32 : i32 to vector<8x128xi32>
    %37 = arith.cmpi slt, %33, %36 : vector<8x128xi32>
    %38 = arith.andi %35, %37 : vector<8x128xi1>
    %cst_32 = arith.constant 1.000000e+00 : f32
    %cst_33 = arith.constant 5.000000e-01 : f32
    %39 = vector.broadcast %cst_32 : f32 to vector<8x128xf32>
    %40 = vector.broadcast %cst_33 : f32 to vector<8x128xf32>
    %41 = arith.select %38, %39, %40 : vector<8x128xi1>, vector<8x128xf32>
    %cst_34 = arith.constant 0.000000e+00 : f32
    %cst_35 = arith.constant 5.000000e-01 : f32
    %42 = vector.broadcast %cst_34 : f32 to vector<8x128xf32>
    %43 = vector.broadcast %cst_35 : f32 to vector<8x128xf32>
    %44 = arith.select %38, %42, %43 : vector<8x128xi1>, vector<8x128xf32>
    %cst_36 = arith.constant 0.000000e+00 : f32
    %45 = vector.broadcast %cst_36 : f32 to vector<8x32xf32>
    %cst_37 = arith.constant 0.000000e+00 : f32
    %46 = vector.broadcast %cst_37 : f32 to vector<8x32xf32>
    %c0_i32 = arith.constant 0 : i32
    %c8_i32 = arith.constant 8 : i32
    %47 = arith.muli %c0_i32, %c8_i32 : i32
    %48 = tpu.assume_multiple %47, 8 : i32
    %49 = arith.index_cast %48 : i32 to index
    %c0_38 = arith.constant 0 : index
    %50 = vector.load %arg13[%49, %c0_38] : memref<64x32xf32, #tpu.memory_space<vmem>>, vector<8x32xf32>
    %51 = arith.index_cast %48 : i32 to index
    %c0_39 = arith.constant 0 : index
    %52 = vector.load %arg14[%51, %c0_39] : memref<64x128xf32, #tpu.memory_space<vmem>>, vector<8x128xf32>
    %53 = arith.index_cast %48 : i32 to index
    %c0_40 = arith.constant 0 : index
    %54 = vector.load %arg15[%53, %c0_40] : memref<64x16xf32, #tpu.memory_space<vmem>>, vector<8x16xf32>
    %55 = arith.mulf %45, %50 : vector<8x32xf32>
    %cst_41 = arith.constant dense<0.000000e+00> : vector<8x16xf32>
    %56 = tpu.matmul %55, %31, %cst_41 {dimension_numbers = #tpu.dot_dimension_numbers<[1], [0], [0], [1], [0, 0, 1, 1], [], []>} : vector<8x32xf32>, vector<32x16xf32>, vector<8x16xf32> -> vector<8x16xf32>
    %57 = vector.broadcast %18 : vector<1x16xf32> to vector<8x16xf32>
    %58 = arith.addf %56, %57 : vector<8x16xf32>
    %59 = arith.index_cast %48 : i32 to index
    %c0_42 = arith.constant 0 : index
    %60 = vector.load %arg12[%59, %c0_42] : memref<64x16xf32, #tpu.memory_space<vmem>>, vector<8x16xf32>
    tpu.vector_store %arg12[%59, %c0_42], %58 {strides = array<i32>} : memref<64x16xf32, #tpu.memory_space<vmem>>, vector<8x16xf32>,
    %61 = arith.mulf %54, %56 : vector<8x16xf32>
    %cst_43 = arith.constant dense<0.000000e+00> : vector<8x128xf32>
    %62 = tpu.matmul %61, %17, %cst_43 {dimension_numbers = #tpu.dot_dimension_numbers<[1], [0], [0], [1], [0, 0, 1, 1], [], []>} : vector<8x16xf32>, vector<16x128xf32>, vector<8x128xf32> -> vector<8x128xf32>
    %cst_44 = arith.constant dense<0.000000e+00> : vector<8x128xf32>
    %63 = tpu.matmul %55, %32, %cst_44 {dimension_numbers = #tpu.dot_dimension_numbers<[1], [0], [0], [1], [0, 0, 1, 1], [], []>} : vector<8x32xf32>, vector<32x128xf32>, vector<8x128xf32> -> vector<8x128xf32>
    %64 = arith.addf %62, %63 : vector<8x128xf32>
    %65 = arith.addf %64, %52 : vector<8x128xf32>
    %66 = arith.mulf %65, %41 : vector<8x128xf32>
    %67 = math.tanh %66 : vector<8x128xf32>
    %68 = arith.mulf %67, %41 : vector<8x128xf32>
    %69 = arith.addf %68, %44 : vector<8x128xf32>
    %70 = vector.extract_strided_slice %69 {offsets = [0, 0], sizes = [8, 32], strides = [1, 1]} : vector<8x128xf32> to vector<8x32xf32>
    %71 = vector.extract_strided_slice %69 {offsets = [0, 32], sizes = [8, 32], strides = [1, 1]} : vector<8x128xf32> to vector<8x32xf32>
    %72 = vector.extract_strided_slice %69 {offsets = [0, 64], sizes = [8, 32], strides = [1, 1]} : vector<8x128xf32> to vector<8x32xf32>
    %73 = vector.extract_strided_slice %69 {offsets = [0, 96], sizes = [8, 32], strides = [1, 1]} : vector<8x128xf32> to vector<8x32xf32>
    %74 = arith.mulf %71, %46 : vector<8x32xf32>
    %75 = arith.mulf %70, %72 : vector<8x32xf32>
    %76 = arith.addf %74, %75 : vector<8x32xf32>
    %77 = math.tanh %76 : vector<8x32xf32>
    %78 = arith.mulf %73, %77 : vector<8x32xf32>
    %c1_i32 = arith.constant 1 : i32
    %c8_i32_45 = arith.constant 8 : i32
    %79 = arith.muli %c1_i32, %c8_i32_45 : i32
    %80 = tpu.assume_multiple %79, 8 : i32
    %81 = arith.index_cast %80 : i32 to index
    %c0_46 = arith.constant 0 : index
    %82 = vector.load %arg13[%81, %c0_46] : memref<64x32xf32, #tpu.memory_space<vmem>>, vector<8x32xf32>
    %83 = arith.index_cast %80 : i32 to index
    %c0_47 = arith.constant 0 : index
    %84 = vector.load %arg14[%83, %c0_47] : memref<64x128xf32, #tpu.memory_space<vmem>>, vector<8x128xf32>
    %85 = arith.index_cast %80 : i32 to index
    %c0_48 = arith.constant 0 : index
    %86 = vector.load %arg15[%85, %c0_48] : memref<64x16xf32, #tpu.memory_space<vmem>>, vector<8x16xf32>
    %87 = arith.mulf %78, %82 : vector<8x32xf32>
    %cst_49 = arith.constant dense<0.000000e+00> : vector<8x16xf32>
    %88 = tpu.matmul %87, %31, %cst_49 {dimension_numbers = #tpu.dot_dimension_numbers<[1], [0], [0], [1], [0, 0, 1, 1], [], []>} : vector<8x32xf32>, vector<32x16xf32>, vector<8x16xf32> -> vector<8x16xf32>
    %89 = vector.broadcast %18 : vector<1x16xf32> to vector<8x16xf32>
    %90 = arith.addf %88, %89 : vector<8x16xf32>
    %91 = arith.index_cast %80 : i32 to index
    %c0_50 = arith.constant 0 : index
    %92 = vector.load %arg12[%91, %c0_50] : memref<64x16xf32, #tpu.memory_space<vmem>>, vector<8x16xf32>
    tpu.vector_store %arg12[%91, %c0_50], %90 {strides = array<i32>} : memref<64x16xf32, #tpu.memory_space<vmem>>, vector<8x16xf32>,
    %93 = arith.mulf %86, %88 : vector<8x16xf32>
    %cst_51 = arith.constant dense<0.000000e+00> : vector<8x128xf32>
    %94 = tpu.matmul %93, %17, %cst_51 {dimension_numbers = #tpu.dot_dimension_numbers<[1], [0], [0], [1], [0, 0, 1, 1], [], []>} : vector<8x16xf32>, vector<16x128xf32>, vector<8x128xf32> -> vector<8x128xf32>
    %cst_52 = arith.constant dense<0.000000e+00> : vector<8x128xf32>
    %95 = tpu.matmul %87, %32, %cst_52 {dimension_numbers = #tpu.dot_dimension_numbers<[1], [0], [0], [1], [0, 0, 1, 1], [], []>} : vector<8x32xf32>, vector<32x128xf32>, vector<8x128xf32> -> vector<8x128xf32>
    %96 = arith.addf %94, %95 : vector<8x128xf32>
    %97 = arith.addf %96, %84 : vector<8x128xf32>
    %98 = arith.mulf %97, %41 : vector<8x128xf32>
    %99 = math.tanh %98 : vector<8x128xf32>
    %100 = arith.mulf %99, %41 : vector<8x128xf32>
    %101 = arith.addf %100, %44 : vector<8x128xf32>
    %102 = vector.extract_strided_slice %101 {offsets = [0, 0], sizes = [8, 32], strides = [1, 1]} : vector<8x128xf32> to vector<8x32xf32>
    %103 = vector.extract_strided_slice %101 {offsets = [0, 32], sizes = [8, 32], strides = [1, 1]} : vector<8x128xf32> to vector<8x32xf32>
    %104 = vector.extract_strided_slice %101 {offsets = [0, 64], sizes = [8, 32], strides = [1, 1]} : vector<8x128xf32> to vector<8x32xf32>
    %105 = vector.extract_strided_slice %101 {offsets = [0, 96], sizes = [8, 32], strides = [1, 1]} : vector<8x128xf32> to vector<8x32xf32>
    %106 = arith.mulf %103, %76 : vector<8x32xf32>
    %107 = arith.mulf %102, %104 : vector<8x32xf32>
    %108 = arith.addf %106, %107 : vector<8x32xf32>
    %109 = math.tanh %108 : vector<8x32xf32>
    %110 = arith.mulf %105, %109 : vector<8x32xf32>
    %c2_i32 = arith.constant 2 : i32
    %c8_i32_53 = arith.constant 8 : i32
    %111 = arith.muli %c2_i32, %c8_i32_53 : i32
    %112 = tpu.assume_multiple %111, 8 : i32
    %113 = arith.index_cast %112 : i32 to index
    %c0_54 = arith.constant 0 : index
    %114 = vector.load %arg13[%113, %c0_54] : memref<64x32xf32, #tpu.memory_space<vmem>>, vector<8x32xf32>
    %115 = arith.index_cast %112 : i32 to index
    %c0_55 = arith.constant 0 : index
    %116 = vector.load %arg14[%115, %c0_55] : memref<64x128xf32, #tpu.memory_space<vmem>>, vector<8x128xf32>
    %117 = arith.index_cast %112 : i32 to index
    %c0_56 = arith.constant 0 : index
    %118 = vector.load %arg15[%117, %c0_56] : memref<64x16xf32, #tpu.memory_space<vmem>>, vector<8x16xf32>
    %119 = arith.mulf %110, %114 : vector<8x32xf32>
    %cst_57 = arith.constant dense<0.000000e+00> : vector<8x16xf32>
    %120 = tpu.matmul %119, %31, %cst_57 {dimension_numbers = #tpu.dot_dimension_numbers<[1], [0], [0], [1], [0, 0, 1, 1], [], []>} : vector<8x32xf32>, vector<32x16xf32>, vector<8x16xf32> -> vector<8x16xf32>
    %121 = vector.broadcast %18 : vector<1x16xf32> to vector<8x16xf32>
    %122 = arith.addf %120, %121 : vector<8x16xf32>
    %123 = arith.index_cast %112 : i32 to index
    %c0_58 = arith.constant 0 : index
    %124 = vector.load %arg12[%123, %c0_58] : memref<64x16xf32, #tpu.memory_space<vmem>>, vector<8x16xf32>
    tpu.vector_store %arg12[%123, %c0_58], %122 {strides = array<i32>} : memref<64x16xf32, #tpu.memory_space<vmem>>, vector<8x16xf32>,
    %125 = arith.mulf %118, %120 : vector<8x16xf32>
    %cst_59 = arith.constant dense<0.000000e+00> : vector<8x128xf32>
    %126 = tpu.matmul %125, %17, %cst_59 {dimension_numbers = #tpu.dot_dimension_numbers<[1], [0], [0], [1], [0, 0, 1, 1], [], []>} : vector<8x16xf32>, vector<16x128xf32>, vector<8x128xf32> -> vector<8x128xf32>
    %cst_60 = arith.constant dense<0.000000e+00> : vector<8x128xf32>
    %127 = tpu.matmul %119, %32, %cst_60 {dimension_numbers = #tpu.dot_dimension_numbers<[1], [0], [0], [1], [0, 0, 1, 1], [], []>} : vector<8x32xf32>, vector<32x128xf32>, vector<8x128xf32> -> vector<8x128xf32>
    %128 = arith.addf %126, %127 : vector<8x128xf32>
    %129 = arith.addf %128, %116 : vector<8x128xf32>
    %130 = arith.mulf %129, %41 : vector<8x128xf32>
    %131 = math.tanh %130 : vector<8x128xf32>
    %132 = arith.mulf %131, %41 : vector<8x128xf32>
    %133 = arith.addf %132, %44 : vector<8x128xf32>
    %134 = vector.extract_strided_slice %133 {offsets = [0, 0], sizes = [8, 32], strides = [1, 1]} : vector<8x128xf32> to vector<8x32xf32>
    %135 = vector.extract_strided_slice %133 {offsets = [0, 32], sizes = [8, 32], strides = [1, 1]} : vector<8x128xf32> to vector<8x32xf32>
    %136 = vector.extract_strided_slice %133 {offsets = [0, 64], sizes = [8, 32], strides = [1, 1]} : vector<8x128xf32> to vector<8x32xf32>
    %137 = vector.extract_strided_slice %133 {offsets = [0, 96], sizes = [8, 32], strides = [1, 1]} : vector<8x128xf32> to vector<8x32xf32>
    %138 = arith.mulf %135, %108 : vector<8x32xf32>
    %139 = arith.mulf %134, %136 : vector<8x32xf32>
    %140 = arith.addf %138, %139 : vector<8x32xf32>
    %141 = math.tanh %140 : vector<8x32xf32>
    %142 = arith.mulf %137, %141 : vector<8x32xf32>
    %c3_i32 = arith.constant 3 : i32
    %c8_i32_61 = arith.constant 8 : i32
    %143 = arith.muli %c3_i32, %c8_i32_61 : i32
    %144 = tpu.assume_multiple %143, 8 : i32
    %145 = arith.index_cast %144 : i32 to index
    %c0_62 = arith.constant 0 : index
    %146 = vector.load %arg13[%145, %c0_62] : memref<64x32xf32, #tpu.memory_space<vmem>>, vector<8x32xf32>
    %147 = arith.index_cast %144 : i32 to index
    %c0_63 = arith.constant 0 : index
    %148 = vector.load %arg14[%147, %c0_63] : memref<64x128xf32, #tpu.memory_space<vmem>>, vector<8x128xf32>
    %149 = arith.index_cast %144 : i32 to index
    %c0_64 = arith.constant 0 : index
    %150 = vector.load %arg15[%149, %c0_64] : memref<64x16xf32, #tpu.memory_space<vmem>>, vector<8x16xf32>
    %151 = arith.mulf %142, %146 : vector<8x32xf32>
    %cst_65 = arith.constant dense<0.000000e+00> : vector<8x16xf32>
    %152 = tpu.matmul %151, %31, %cst_65 {dimension_numbers = #tpu.dot_dimension_numbers<[1], [0], [0], [1], [0, 0, 1, 1], [], []>} : vector<8x32xf32>, vector<32x16xf32>, vector<8x16xf32> -> vector<8x16xf32>
    %153 = vector.broadcast %18 : vector<1x16xf32> to vector<8x16xf32>
    %154 = arith.addf %152, %153 : vector<8x16xf32>
    %155 = arith.index_cast %144 : i32 to index
    %c0_66 = arith.constant 0 : index
    %156 = vector.load %arg12[%155, %c0_66] : memref<64x16xf32, #tpu.memory_space<vmem>>, vector<8x16xf32>
    tpu.vector_store %arg12[%155, %c0_66], %154 {strides = array<i32>} : memref<64x16xf32, #tpu.memory_space<vmem>>, vector<8x16xf32>,
    %157 = arith.mulf %150, %152 : vector<8x16xf32>
    %cst_67 = arith.constant dense<0.000000e+00> : vector<8x128xf32>
    %158 = tpu.matmul %157, %17, %cst_67 {dimension_numbers = #tpu.dot_dimension_numbers<[1], [0], [0], [1], [0, 0, 1, 1], [], []>} : vector<8x16xf32>, vector<16x128xf32>, vector<8x128xf32> -> vector<8x128xf32>
    %cst_68 = arith.constant dense<0.000000e+00> : vector<8x128xf32>
    %159 = tpu.matmul %151, %32, %cst_68 {dimension_numbers = #tpu.dot_dimension_numbers<[1], [0], [0], [1], [0, 0, 1, 1], [], []>} : vector<8x32xf32>, vector<32x128xf32>, vector<8x128xf32> -> vector<8x128xf32>
    %160 = arith.addf %158, %159 : vector<8x128xf32>
    %161 = arith.addf %160, %148 : vector<8x128xf32>
    %162 = arith.mulf %161, %41 : vector<8x128xf32>
    %163 = math.tanh %162 : vector<8x128xf32>
    %164 = arith.mulf %163, %41 : vector<8x128xf32>
    %165 = arith.addf %164, %44 : vector<8x128xf32>
    %166 = vector.extract_strided_slice %165 {offsets = [0, 0], sizes = [8, 32], strides = [1, 1]} : vector<8x128xf32> to vector<8x32xf32>
    %167 = vector.extract_strided_slice %165 {offsets = [0, 32], sizes = [8, 32], strides = [1, 1]} : vector<8x128xf32> to vector<8x32xf32>
    %168 = vector.extract_strided_slice %165 {offsets = [0, 64], sizes = [8, 32], strides = [1, 1]} : vector<8x128xf32> to vector<8x32xf32>
    %169 = vector.extract_strided_slice %165 {offsets = [0, 96], sizes = [8, 32], strides = [1, 1]} : vector<8x128xf32> to vector<8x32xf32>
    %170 = arith.mulf %167, %140 : vector<8x32xf32>
    %171 = arith.mulf %166, %168 : vector<8x32xf32>
    %172 = arith.addf %170, %171 : vector<8x32xf32>
    %173 = math.tanh %172 : vector<8x32xf32>
    %174 = arith.mulf %169, %173 : vector<8x32xf32>
    %c4_i32 = arith.constant 4 : i32
    %c8_i32_69 = arith.constant 8 : i32
    %175 = arith.muli %c4_i32, %c8_i32_69 : i32
    %176 = tpu.assume_multiple %175, 8 : i32
    %177 = arith.index_cast %176 : i32 to index
    %c0_70 = arith.constant 0 : index
    %178 = vector.load %arg13[%177, %c0_70] : memref<64x32xf32, #tpu.memory_space<vmem>>, vector<8x32xf32>
    %179 = arith.index_cast %176 : i32 to index
    %c0_71 = arith.constant 0 : index
    %180 = vector.load %arg14[%179, %c0_71] : memref<64x128xf32, #tpu.memory_space<vmem>>, vector<8x128xf32>
    %181 = arith.index_cast %176 : i32 to index
    %c0_72 = arith.constant 0 : index
    %182 = vector.load %arg15[%181, %c0_72] : memref<64x16xf32, #tpu.memory_space<vmem>>, vector<8x16xf32>
    %183 = arith.mulf %174, %178 : vector<8x32xf32>
    %cst_73 = arith.constant dense<0.000000e+00> : vector<8x16xf32>
    %184 = tpu.matmul %183, %31, %cst_73 {dimension_numbers = #tpu.dot_dimension_numbers<[1], [0], [0], [1], [0, 0, 1, 1], [], []>} : vector<8x32xf32>, vector<32x16xf32>, vector<8x16xf32> -> vector<8x16xf32>
    %185 = vector.broadcast %18 : vector<1x16xf32> to vector<8x16xf32>
    %186 = arith.addf %184, %185 : vector<8x16xf32>
    %187 = arith.index_cast %176 : i32 to index
    %c0_74 = arith.constant 0 : index
    %188 = vector.load %arg12[%187, %c0_74] : memref<64x16xf32, #tpu.memory_space<vmem>>, vector<8x16xf32>
    tpu.vector_store %arg12[%187, %c0_74], %186 {strides = array<i32>} : memref<64x16xf32, #tpu.memory_space<vmem>>, vector<8x16xf32>,
    %189 = arith.mulf %182, %184 : vector<8x16xf32>
    %cst_75 = arith.constant dense<0.000000e+00> : vector<8x128xf32>
    %190 = tpu.matmul %189, %17, %cst_75 {dimension_numbers = #tpu.dot_dimension_numbers<[1], [0], [0], [1], [0, 0, 1, 1], [], []>} : vector<8x16xf32>, vector<16x128xf32>, vector<8x128xf32> -> vector<8x128xf32>
    %cst_76 = arith.constant dense<0.000000e+00> : vector<8x128xf32>
    %191 = tpu.matmul %183, %32, %cst_76 {dimension_numbers = #tpu.dot_dimension_numbers<[1], [0], [0], [1], [0, 0, 1, 1], [], []>} : vector<8x32xf32>, vector<32x128xf32>, vector<8x128xf32> -> vector<8x128xf32>
    %192 = arith.addf %190, %191 : vector<8x128xf32>
    %193 = arith.addf %192, %180 : vector<8x128xf32>
    %194 = arith.mulf %193, %41 : vector<8x128xf32>
    %195 = math.tanh %194 : vector<8x128xf32>
    %196 = arith.mulf %195, %41 : vector<8x128xf32>
    %197 = arith.addf %196, %44 : vector<8x128xf32>
    %198 = vector.extract_strided_slice %197 {offsets = [0, 0], sizes = [8, 32], strides = [1, 1]} : vector<8x128xf32> to vector<8x32xf32>
    %199 = vector.extract_strided_slice %197 {offsets = [0, 32], sizes = [8, 32], strides = [1, 1]} : vector<8x128xf32> to vector<8x32xf32>
    %200 = vector.extract_strided_slice %197 {offsets = [0, 64], sizes = [8, 32], strides = [1, 1]} : vector<8x128xf32> to vector<8x32xf32>
    %201 = vector.extract_strided_slice %197 {offsets = [0, 96], sizes = [8, 32], strides = [1, 1]} : vector<8x128xf32> to vector<8x32xf32>
    %202 = arith.mulf %199, %172 : vector<8x32xf32>
    %203 = arith.mulf %198, %200 : vector<8x32xf32>
    %204 = arith.addf %202, %203 : vector<8x32xf32>
    %205 = math.tanh %204 : vector<8x32xf32>
    %206 = arith.mulf %201, %205 : vector<8x32xf32>
    %c5_i32 = arith.constant 5 : i32
    %c8_i32_77 = arith.constant 8 : i32
    %207 = arith.muli %c5_i32, %c8_i32_77 : i32
    %208 = tpu.assume_multiple %207, 8 : i32
    %209 = arith.index_cast %208 : i32 to index
    %c0_78 = arith.constant 0 : index
    %210 = vector.load %arg13[%209, %c0_78] : memref<64x32xf32, #tpu.memory_space<vmem>>, vector<8x32xf32>
    %211 = arith.index_cast %208 : i32 to index
    %c0_79 = arith.constant 0 : index
    %212 = vector.load %arg14[%211, %c0_79] : memref<64x128xf32, #tpu.memory_space<vmem>>, vector<8x128xf32>
    %213 = arith.index_cast %208 : i32 to index
    %c0_80 = arith.constant 0 : index
    %214 = vector.load %arg15[%213, %c0_80] : memref<64x16xf32, #tpu.memory_space<vmem>>, vector<8x16xf32>
    %215 = arith.mulf %206, %210 : vector<8x32xf32>
    %cst_81 = arith.constant dense<0.000000e+00> : vector<8x16xf32>
    %216 = tpu.matmul %215, %31, %cst_81 {dimension_numbers = #tpu.dot_dimension_numbers<[1], [0], [0], [1], [0, 0, 1, 1], [], []>} : vector<8x32xf32>, vector<32x16xf32>, vector<8x16xf32> -> vector<8x16xf32>
    %217 = vector.broadcast %18 : vector<1x16xf32> to vector<8x16xf32>
    %218 = arith.addf %216, %217 : vector<8x16xf32>
    %219 = arith.index_cast %208 : i32 to index
    %c0_82 = arith.constant 0 : index
    %220 = vector.load %arg12[%219, %c0_82] : memref<64x16xf32, #tpu.memory_space<vmem>>, vector<8x16xf32>
    tpu.vector_store %arg12[%219, %c0_82], %218 {strides = array<i32>} : memref<64x16xf32, #tpu.memory_space<vmem>>, vector<8x16xf32>,
    %221 = arith.mulf %214, %216 : vector<8x16xf32>
    %cst_83 = arith.constant dense<0.000000e+00> : vector<8x128xf32>
    %222 = tpu.matmul %221, %17, %cst_83 {dimension_numbers = #tpu.dot_dimension_numbers<[1], [0], [0], [1], [0, 0, 1, 1], [], []>} : vector<8x16xf32>, vector<16x128xf32>, vector<8x128xf32> -> vector<8x128xf32>
    %cst_84 = arith.constant dense<0.000000e+00> : vector<8x128xf32>
    %223 = tpu.matmul %215, %32, %cst_84 {dimension_numbers = #tpu.dot_dimension_numbers<[1], [0], [0], [1], [0, 0, 1, 1], [], []>} : vector<8x32xf32>, vector<32x128xf32>, vector<8x128xf32> -> vector<8x128xf32>
    %224 = arith.addf %222, %223 : vector<8x128xf32>
    %225 = arith.addf %224, %212 : vector<8x128xf32>
    %226 = arith.mulf %225, %41 : vector<8x128xf32>
    %227 = math.tanh %226 : vector<8x128xf32>
    %228 = arith.mulf %227, %41 : vector<8x128xf32>
    %229 = arith.addf %228, %44 : vector<8x128xf32>
    %230 = vector.extract_strided_slice %229 {offsets = [0, 0], sizes = [8, 32], strides = [1, 1]} : vector<8x128xf32> to vector<8x32xf32>
    %231 = vector.extract_strided_slice %229 {offsets = [0, 32], sizes = [8, 32], strides = [1, 1]} : vector<8x128xf32> to vector<8x32xf32>
    %232 = vector.extract_strided_slice %229 {offsets = [0, 64], sizes = [8, 32], strides = [1, 1]} : vector<8x128xf32> to vector<8x32xf32>
    %233 = vector.extract_strided_slice %229 {offsets = [0, 96], sizes = [8, 32], strides = [1, 1]} : vector<8x128xf32> to vector<8x32xf32>
    %234 = arith.mulf %231, %204 : vector<8x32xf32>
    %235 = arith.mulf %230, %232 : vector<8x32xf32>
    %236 = arith.addf %234, %235 : vector<8x32xf32>
    %237 = math.tanh %236 : vector<8x32xf32>
    %238 = arith.mulf %233, %237 : vector<8x32xf32>
    %c6_i32 = arith.constant 6 : i32
    %c8_i32_85 = arith.constant 8 : i32
    %239 = arith.muli %c6_i32, %c8_i32_85 : i32
    %240 = tpu.assume_multiple %239, 8 : i32
    %241 = arith.index_cast %240 : i32 to index
    %c0_86 = arith.constant 0 : index
    %242 = vector.load %arg13[%241, %c0_86] : memref<64x32xf32, #tpu.memory_space<vmem>>, vector<8x32xf32>
    %243 = arith.index_cast %240 : i32 to index
    %c0_87 = arith.constant 0 : index
    %244 = vector.load %arg14[%243, %c0_87] : memref<64x128xf32, #tpu.memory_space<vmem>>, vector<8x128xf32>
    %245 = arith.index_cast %240 : i32 to index
    %c0_88 = arith.constant 0 : index
    %246 = vector.load %arg15[%245, %c0_88] : memref<64x16xf32, #tpu.memory_space<vmem>>, vector<8x16xf32>
    %247 = arith.mulf %238, %242 : vector<8x32xf32>
    %cst_89 = arith.constant dense<0.000000e+00> : vector<8x16xf32>
    %248 = tpu.matmul %247, %31, %cst_89 {dimension_numbers = #tpu.dot_dimension_numbers<[1], [0], [0], [1], [0, 0, 1, 1], [], []>} : vector<8x32xf32>, vector<32x16xf32>, vector<8x16xf32> -> vector<8x16xf32>
    %249 = vector.broadcast %18 : vector<1x16xf32> to vector<8x16xf32>
    %250 = arith.addf %248, %249 : vector<8x16xf32>
    %251 = arith.index_cast %240 : i32 to index
    %c0_90 = arith.constant 0 : index
    %252 = vector.load %arg12[%251, %c0_90] : memref<64x16xf32, #tpu.memory_space<vmem>>, vector<8x16xf32>
    tpu.vector_store %arg12[%251, %c0_90], %250 {strides = array<i32>} : memref<64x16xf32, #tpu.memory_space<vmem>>, vector<8x16xf32>,
    %253 = arith.mulf %246, %248 : vector<8x16xf32>
    %cst_91 = arith.constant dense<0.000000e+00> : vector<8x128xf32>
    %254 = tpu.matmul %253, %17, %cst_91 {dimension_numbers = #tpu.dot_dimension_numbers<[1], [0], [0], [1], [0, 0, 1, 1], [], []>} : vector<8x16xf32>, vector<16x128xf32>, vector<8x128xf32> -> vector<8x128xf32>
    %cst_92 = arith.constant dense<0.000000e+00> : vector<8x128xf32>
    %255 = tpu.matmul %247, %32, %cst_92 {dimension_numbers = #tpu.dot_dimension_numbers<[1], [0], [0], [1], [0, 0, 1, 1], [], []>} : vector<8x32xf32>, vector<32x128xf32>, vector<8x128xf32> -> vector<8x128xf32>
    %256 = arith.addf %254, %255 : vector<8x128xf32>
    %257 = arith.addf %256, %244 : vector<8x128xf32>
    %258 = arith.mulf %257, %41 : vector<8x128xf32>
    %259 = math.tanh %258 : vector<8x128xf32>
    %260 = arith.mulf %259, %41 : vector<8x128xf32>
    %261 = arith.addf %260, %44 : vector<8x128xf32>
    %262 = vector.extract_strided_slice %261 {offsets = [0, 0], sizes = [8, 32], strides = [1, 1]} : vector<8x128xf32> to vector<8x32xf32>
    %263 = vector.extract_strided_slice %261 {offsets = [0, 32], sizes = [8, 32], strides = [1, 1]} : vector<8x128xf32> to vector<8x32xf32>
    %264 = vector.extract_strided_slice %261 {offsets = [0, 64], sizes = [8, 32], strides = [1, 1]} : vector<8x128xf32> to vector<8x32xf32>
    %265 = vector.extract_strided_slice %261 {offsets = [0, 96], sizes = [8, 32], strides = [1, 1]} : vector<8x128xf32> to vector<8x32xf32>
    %266 = arith.mulf %263, %236 : vector<8x32xf32>
    %267 = arith.mulf %262, %264 : vector<8x32xf32>
    %268 = arith.addf %266, %267 : vector<8x32xf32>
    %269 = math.tanh %268 : vector<8x32xf32>
    %270 = arith.mulf %265, %269 : vector<8x32xf32>
    %c7_i32 = arith.constant 7 : i32
    %c8_i32_93 = arith.constant 8 : i32
    %271 = arith.muli %c7_i32, %c8_i32_93 : i32
    %272 = tpu.assume_multiple %271, 8 : i32
    %273 = arith.index_cast %272 : i32 to index
    %c0_94 = arith.constant 0 : index
    %274 = vector.load %arg13[%273, %c0_94] : memref<64x32xf32, #tpu.memory_space<vmem>>, vector<8x32xf32>
    %275 = arith.index_cast %272 : i32 to index
    %c0_95 = arith.constant 0 : index
    %276 = vector.load %arg14[%275, %c0_95] : memref<64x128xf32, #tpu.memory_space<vmem>>, vector<8x128xf32>
    %277 = arith.index_cast %272 : i32 to index
    %c0_96 = arith.constant 0 : index
    %278 = vector.load %arg15[%277, %c0_96] : memref<64x16xf32, #tpu.memory_space<vmem>>, vector<8x16xf32>
    %279 = arith.mulf %270, %274 : vector<8x32xf32>
    %cst_97 = arith.constant dense<0.000000e+00> : vector<8x16xf32>
    %280 = tpu.matmul %279, %31, %cst_97 {dimension_numbers = #tpu.dot_dimension_numbers<[1], [0], [0], [1], [0, 0, 1, 1], [], []>} : vector<8x32xf32>, vector<32x16xf32>, vector<8x16xf32> -> vector<8x16xf32>
    %281 = vector.broadcast %18 : vector<1x16xf32> to vector<8x16xf32>
    %282 = arith.addf %280, %281 : vector<8x16xf32>
    %283 = arith.index_cast %272 : i32 to index
    %c0_98 = arith.constant 0 : index
    %284 = vector.load %arg12[%283, %c0_98] : memref<64x16xf32, #tpu.memory_space<vmem>>, vector<8x16xf32>
    tpu.vector_store %arg12[%283, %c0_98], %282 {strides = array<i32>} : memref<64x16xf32, #tpu.memory_space<vmem>>, vector<8x16xf32>,
    %285 = arith.mulf %278, %280 : vector<8x16xf32>
    %cst_99 = arith.constant dense<0.000000e+00> : vector<8x128xf32>
    %286 = tpu.matmul %285, %17, %cst_99 {dimension_numbers = #tpu.dot_dimension_numbers<[1], [0], [0], [1], [0, 0, 1, 1], [], []>} : vector<8x16xf32>, vector<16x128xf32>, vector<8x128xf32> -> vector<8x128xf32>
    %cst_100 = arith.constant dense<0.000000e+00> : vector<8x128xf32>
    %287 = tpu.matmul %279, %32, %cst_100 {dimension_numbers = #tpu.dot_dimension_numbers<[1], [0], [0], [1], [0, 0, 1, 1], [], []>} : vector<8x32xf32>, vector<32x128xf32>, vector<8x128xf32> -> vector<8x128xf32>
    %288 = arith.addf %286, %287 : vector<8x128xf32>
    %289 = arith.addf %288, %276 : vector<8x128xf32>
    %290 = arith.mulf %289, %41 : vector<8x128xf32>
    %291 = math.tanh %290 : vector<8x128xf32>
    %292 = arith.mulf %291, %41 : vector<8x128xf32>
    %293 = arith.addf %292, %44 : vector<8x128xf32>
    %294 = vector.extract_strided_slice %293 {offsets = [0, 0], sizes = [8, 32], strides = [1, 1]} : vector<8x128xf32> to vector<8x32xf32>
    %295 = vector.extract_strided_slice %293 {offsets = [0, 32], sizes = [8, 32], strides = [1, 1]} : vector<8x128xf32> to vector<8x32xf32>
    %296 = vector.extract_strided_slice %293 {offsets = [0, 64], sizes = [8, 32], strides = [1, 1]} : vector<8x128xf32> to vector<8x32xf32>
    %297 = vector.extract_strided_slice %293 {offsets = [0, 96], sizes = [8, 32], strides = [1, 1]} : vector<8x128xf32> to vector<8x32xf32>
    %298 = arith.mulf %295, %268 : vector<8x32xf32>
    %299 = arith.mulf %294, %296 : vector<8x32xf32>
    %300 = arith.addf %298, %299 : vector<8x32xf32>
    %301 = math.tanh %300 : vector<8x32xf32>
    %302 = arith.mulf %297, %301 : vector<8x32xf32>
    %c8_i32_101 = arith.constant 8 : i32
    return
  }
  func.func @transform_0(%arg0: i32) -> (i32, i32) {
    %c0_i32 = arith.constant 0 : i32
    %c0_i32_0 = arith.constant 0 : i32
    %c0_i32_1 = arith.constant 0 : i32
    return %c0_i32, %c0_i32_0 : i32, i32
  }
  func.func @transform_1(%arg0: i32) -> (i32, i32) {
    %c0_i32 = arith.constant 0 : i32
    %c0_i32_0 = arith.constant 0 : i32
    %c0_i32_1 = arith.constant 0 : i32
    return %c0_i32, %c0_i32_0 : i32, i32
  }
  func.func @transform_2(%arg0: i32) -> (i32, i32) {
    %c0_i32 = arith.constant 0 : i32
    %c0_i32_0 = arith.constant 0 : i32
    %c0_i32_1 = arith.constant 0 : i32
    return %c0_i32, %c0_i32_0 : i32, i32
  }
  func.func @transform_3(%arg0: i32) -> (i32, i32) {
    %c0_i32 = arith.constant 0 : i32
    %c0_i32_0 = arith.constant 0 : i32
    %c0_i32_1 = arith.constant 0 : i32
    return %c0_i32, %c0_i32_0 : i32, i32
  }
  func.func @transform_4(%arg0: i32) -> (i32, i32) {
    %c0_i32 = arith.constant 0 : i32
    %c0_i32_0 = arith.constant 0 : i32
    %c0_i32_1 = arith.constant 0 : i32
    return %c0_i32, %c0_i32_0 : i32, i32
  }
  func.func @transform_5(%arg0: i32) -> (i32, i32) {
    %c0_i32 = arith.constant 0 : i32
    %c0_i32_0 = arith.constant 0 : i32
    %c0_i32_1 = arith.constant 0 : i32
    return %c0_i32, %c0_i32_0 : i32, i32
  }
  func.func @transform_6(%arg0: i32) -> (i32, i32) {
    %c0_i32 = arith.constant 0 : i32
    %c0_i32_0 = arith.constant 0 : i32
    %c0_i32_1 = arith.constant 0 : i32
    return %c0_i32, %c0_i32_0 : i32, i32
  }
  func.func @transform_7(%arg0: i32) -> (i32, i32) {
    %c0_i32 = arith.constant 0 : i32
    %c0_i32_0 = arith.constant 0 : i32
    %c0_i32_1 = arith.constant 0 : i32
    return %c0_i32, %c0_i32_0 : i32, i32
  }
  func.func @transform_8(%arg0: i32) -> (i32, i32) {
    %c0_i32 = arith.constant 0 : i32
    %c0_i32_0 = arith.constant 0 : i32
    %c0_i32_1 = arith.constant 0 : i32
    return %c0_i32, %c0_i32_0 : i32, i32
  }
  func.func @transform_9(%arg0: i32) -> (i32, i32) {
    %c0_i32 = arith.constant 0 : i32
    %c0_i32_0 = arith.constant 0 : i32
    %c0_i32_1 = arith.constant 0 : i32
    return %c0_i32, %c0_i32_0 : i32, i32
  }
  func.func @transform_10(%arg0: i32) -> (i32, i32) {
    %c0_i32 = arith.constant 0 : i32
    %c0_i32_0 = arith.constant 0 : i32
    %c0_i32_1 = arith.constant 0 : i32
    return %c0_i32, %c0_i32_0 : i32, i32
  }
  func.func @transform_11(%arg0: i32) -> (i32, i32) {
    %c0_i32 = arith.constant 0 : i32
    %c0_i32_0 = arith.constant 0 : i32
    %c0_i32_1 = arith.constant 0 : i32
    return %c0_i32, %c0_i32_0 : i32, i32
  }
}

</mosaic_0001>

<llo_original>
// kernel: tpu_custom_call.1
$region0: #{tpu_custom_call.1}
  #allocation0 [shape = 'u32[]', space=smem, size = 0x4, offset = 0x4, fixed_abs, tag = 'smem constant byte address 0x4 - core index']
  #allocation1 [shape = 'u32[144,128]{1,0:T(1,128)}', space=vmem, size = 0x12000, scoped, tag = 'internal scratch']
  #allocation2 [shape = 'f32[64,32]{1,0:T(8,128)}', space=vmem, size = 0x8000, scoped, tag = 'scratch operand']
  #allocation3 [shape = 'f32[64,128]{1,0:T(8,128)}', space=vmem, size = 0x8000, scoped, tag = 'scratch operand']
  #allocation4 [shape = 'f32[64,16]{1,0:T(8,128)}', space=vmem, size = 0x8000, scoped, tag = 'scratch operand']
  %s0 = inlined_call_operand.vmem [shape: f32[64,16], index: 0, kind: input, shape index: {}]
  %s1 = inlined_call_operand.vmem [shape: f32[64,16], index: 1, kind: input, shape index: {}]
  %s2 = inlined_call_operand.vmem [shape: f32[64,16], index: 2, kind: input, shape index: {}]
  %s3 = inlined_call_operand.vmem [shape: f32[16,32], index: 3, kind: input, shape index: {}]
  %s4 = inlined_call_operand.vmem [shape: f32[1,32], index: 4, kind: input, shape index: {}]
  %s5 = inlined_call_operand.vmem [shape: f32[32,16], index: 5, kind: input, shape index: {}]
  %s6 = inlined_call_operand.vmem [shape: f32[1,16], index: 6, kind: input, shape index: {}]
  %s7 = inlined_call_operand.vmem [shape: f32[32,128], index: 7, kind: input, shape index: {}]
  %s8 = inlined_call_operand.vmem [shape: f32[16,128], index: 8, kind: input, shape index: {}]
  %s9 = inlined_call_operand.vmem [shape: f32[32,128], index: 9, kind: input, shape index: {}]
  %s10 = inlined_call_operand.vmem [shape: f32[1,128], index: 10, kind: input, shape index: {}]
  %s11 = inlined_call_operand.vmem [shape: f32[64,16], index: 11, kind: output, shape index: {}]
  %s12 = sld [smem:[#allocation0]]
  $region54: #{tpu_custom_call.1} parent=0
    _
  %s14 = ssub.s32 1, %s12
  %s15 = scalar_select 0, %s14, %s12
  // Predicated region
  $region2: #{tpu_custom_call.1} parent=0 // pred_check
    _
  $region3: #{tpu_custom_call.1} parent=0 // pred_check_branch
    %17 = sbr.rel (0) target = $region5
  $region4: #{tpu_custom_call.1} parent=0 // pred_region
    _
  $region5: #{tpu_custom_call.1} parent=0 // pred_fallthru
    _
  // Predicated region
  $region6: #{tpu_custom_call.1} parent=0 // pred_check
    _
  $region7: #{tpu_custom_call.1} parent=0 // pred_check_branch
    %19 = sbr.rel (0) target = $region9
  $region8: #{tpu_custom_call.1} parent=0 // pred_region
    _
  $region9: #{tpu_custom_call.1} parent=0 // pred_fallthru
    _
  // Predicated region
  $region10: #{tpu_custom_call.1} parent=0 // pred_check
    _
  $region11: #{tpu_custom_call.1} parent=0 // pred_check_branch
    %21 = sbr.rel (0) target = $region13
  $region12: #{tpu_custom_call.1} parent=0 // pred_region
    _
  $region13: #{tpu_custom_call.1} parent=0 // pred_fallthru
    _
  // Predicated region
  $region14: #{tpu_custom_call.1} parent=0 // pred_check
    _
  $region15: #{tpu_custom_call.1} parent=0 // pred_check_branch
    %23 = sbr.rel (0) target = $region17
  $region16: #{tpu_custom_call.1} parent=0 // pred_region
    _
  $region17: #{tpu_custom_call.1} parent=0 // pred_fallthru
    _
  // Predicated region
  $region18: #{tpu_custom_call.1} parent=0 // pred_check
    _
  $region19: #{tpu_custom_call.1} parent=0 // pred_check_branch
    %25 = sbr.rel (0) target = $region21
  $region20: #{tpu_custom_call.1} parent=0 // pred_region
    _
  $region21: #{tpu_custom_call.1} parent=0 // pred_fallthru
    _
  // Predicated region
  $region22: #{tpu_custom_call.1} parent=0 // pred_check
    _
  $region23: #{tpu_custom_call.1} parent=0 // pred_check_branch
    %27 = sbr.rel (0) target = $region25
  $region24: #{tpu_custom_call.1} parent=0 // pred_region
    _
  $region25: #{tpu_custom_call.1} parent=0 // pred_fallthru
    _
  // Predicated region
  $region26: #{tpu_custom_call.1} parent=0 // pred_check
    _
  $region27: #{tpu_custom_call.1} parent=0 // pred_check_branch
    %29 = sbr.rel (0) target = $region29
  $region28: #{tpu_custom_call.1} parent=0 // pred_region
    _
  $region29: #{tpu_custom_call.1} parent=0 // pred_fallthru
    _
  // Predicated region
  $region30: #{tpu_custom_call.1} parent=0 // pred_check
    _
  $region31: #{tpu_custom_call.1} parent=0 // pred_check_branch
    %31 = sbr.rel (0) target = $region33
  $region32: #{tpu_custom_call.1} parent=0 // pred_region
    _
  $region33: #{tpu_custom_call.1} parent=0 // pred_fallthru
    _
  // Predicated region
  $region34: #{tpu_custom_call.1} parent=0 // pred_check
    _
  $region35: #{tpu_custom_call.1} parent=0 // pred_check_branch
    %33 = sbr.rel (0) target = $region37
  $region36: #{tpu_custom_call.1} parent=0 // pred_region
    _
  $region37: #{tpu_custom_call.1} parent=0 // pred_fallthru
    _
  // Predicated region
  $region38: #{tpu_custom_call.1} parent=0 // pred_check
    _
  $region39: #{tpu_custom_call.1} parent=0 // pred_check_branch
    %35 = sbr.rel (0) target = $region41
  $region40: #{tpu_custom_call.1} parent=0 // pred_region
    _
  $region41: #{tpu_custom_call.1} parent=0 // pred_fallthru
    _
  // Predicated region
  $region42: #{tpu_custom_call.1} parent=0 // pred_check
    _
  $region43: #{tpu_custom_call.1} parent=0 // pred_check_branch
    %37 = sbr.rel (0) target = $region45
  $region44: #{tpu_custom_call.1} parent=0 // pred_region
    _
  $region45: #{tpu_custom_call.1} parent=0 // pred_fallthru
    _
  %v38 = vld [vmem:[%s0] sm:$0xff]
  %v39 = vld [vmem:[%s0 + $0x8] sm:$0xff]
  %v40 = vld [vmem:[%s0 + $0x10] sm:$0xff]
  %v41 = vld [vmem:[%s0 + $0x18] sm:$0xff]
  %v42 = vld [vmem:[%s0 + $0x20] sm:$0xff]
  %v43 = vld [vmem:[%s0 + $0x28] sm:$0xff]
  %v44 = vld [vmem:[%s0 + $0x30] sm:$0xff]
  %v45 = vld [vmem:[%s0 + $0x38] sm:$0xff]
  %v46 = vld [vmem:[%s1] sm:$0xff]
  %v47 = vld [vmem:[%s1 + $0x8] sm:$0xff]
  %v48 = vld [vmem:[%s1 + $0x10] sm:$0xff]
  %v49 = vld [vmem:[%s1 + $0x18] sm:$0xff]
  %v50 = vld [vmem:[%s1 + $0x20] sm:$0xff]
  %v51 = vld [vmem:[%s1 + $0x28] sm:$0xff]
  %v52 = vld [vmem:[%s1 + $0x30] sm:$0xff]
  %v53 = vld [vmem:[%s1 + $0x38] sm:$0xff]
  %v54 = vld [vmem:[%s2] sm:$0xff]
  %v55 = vld [vmem:[%s2 + $0x8] sm:$0xff]
  %v56 = vld [vmem:[%s2 + $0x10] sm:$0xff]
  %v57 = vld [vmem:[%s2 + $0x18] sm:$0xff]
  %v58 = vld [vmem:[%s2 + $0x20] sm:$0xff]
  %v59 = vld [vmem:[%s2 + $0x28] sm:$0xff]
  %v60 = vld [vmem:[%s2 + $0x30] sm:$0xff]
  %v61 = vld [vmem:[%s2 + $0x38] sm:$0xff]
  %v62 = vld [vmem:[%s3] sm:$0xff]
  %v63 = vld [vmem:[%s3 + $0x8] sm:$0xff]
  %v64 = vld [vmem:[%s4] sm:$0x1]
  %v66 = vlaneseq
  %v67 = vshrl.u32 %v66, 7
  %v68 = vsub.s32 0, %v67
  %v69 = vrot.slane %v64, %v68
  %vm71 = vcmask 130048
  %v73 = vsel %vm71, %v54, 0
  %v76 = vsel %vm71, %v55, 0
  %v79 = vsel %vm71, %v56, 0
  %v82 = vsel %vm71, %v57, 0
  %v85 = vsel %vm71, %v58, 0
  %v88 = vsel %vm71, %v59, 0
  %v91 = vsel %vm71, %v60, 0
  %v94 = vsel %vm71, %v61, 0
  %96 = vmatprep.subr.mxu0 0.0
  %97 = vmatpush1.msra.mxu0 0.0
  %98 = vmatprep.subr.mxu0 0.0
  %99 = vmatpush1.msra.mxu0 0.0
  %100 = vmatprep.subr.mxu0 0.0
  %101 = vmatpush1.msra.mxu0 0.0
  %102 = vmatprep.subr.mxu0 0.0
  %103 = vmatpush1.msra.mxu0 0.0
  %104 = vmatprep.subr.mxu0 0.0
  %105 = vmatpush1.msra.mxu0 0.0
  %106 = vmatprep.subr.mxu0 0.0
  %107 = vmatpush1.msra.mxu0 0.0
  %108 = vmatprep.subr.mxu0 0.0
  %109 = vmatpush1.msra.mxu0 0.0
  %110 = vmatprep.subr.mxu0 0.0
  %111 = vmatpush1.msra.mxu0 0.0
  %112 = vmatprep.subr.mxu0 0.0
  %113 = vmatpush1.msra.mxu0 0.0
  %114 = vmatprep.subr.mxu0 0.0
  %115 = vmatpush1.msra.mxu0 0.0
  %116 = vmatprep.subr.mxu0 0.0
  %117 = vmatpush1.msra.mxu0 0.0
  %118 = vmatprep.subr.mxu0 0.0
  %119 = vmatpush1.msra.mxu0 0.0
  %120 = vmatprep.subr.mxu0 0.0
  %121 = vmatpush1.msra.mxu0 0.0
  %122 = vmatprep.subr.mxu0 0.0
  %123 = vmatpush1.msra.mxu0 0.0
  %124 = vmatprep.subr.mxu0 0.0
  %125 = vmatpush1.msra.mxu0 %v63
  %126 = vmatprep.subr.mxu0 0.0
  %127 = vmatpush1.msra.mxu0 %v62
  %128 = vmatprep.subr.mxu0 0.0
  %129 = vmatpush2.msra.mxu0 0.0
  %130 = vmatprep.subr.mxu0 0.0
  %131 = vmatpush2.msra.mxu0 0.0
  %132 = vmatprep.subr.mxu0 0.0
  %133 = vmatpush2.msra.mxu0 0.0
  %134 = vmatprep.subr.mxu0 0.0
  %135 = vmatpush2.msra.mxu0 0.0
  %136 = vmatprep.subr.mxu0 0.0
  %137 = vmatpush2.msra.mxu0 0.0
  %138 = vmatprep.subr.mxu0 0.0
  %139 = vmatpush2.msra.mxu0 0.0
  %140 = vmatprep.subr.mxu0 0.0
  %141 = vmatpush2.msra.mxu0 0.0
  %142 = vmatprep.subr.mxu0 0.0
  %143 = vmatpush2.msra.mxu0 0.0
  %144 = vmatprep.subr.mxu0 0.0
  %145 = vmatpush2.msra.mxu0 0.0
  %146 = vmatprep.subr.mxu0 0.0
  %147 = vmatpush2.msra.mxu0 0.0
  %148 = vmatprep.subr.mxu0 0.0
  %149 = vmatpush2.msra.mxu0 0.0
  %150 = vmatprep.subr.mxu0 0.0
  %151 = vmatpush2.msra.mxu0 0.0
  %152 = vmatprep.subr.mxu0 0.0
  %153 = vmatpush2.msra.mxu0 0.0
  %154 = vmatprep.subr.mxu0 0.0
  %155 = vmatpush2.msra.mxu0 0.0
  %156 = vmatprep.subr.mxu0 0.0
  %157 = vmatpush2.msra.mxu0 0.0
  %158 = vmatprep.subr.mxu0 0.0
  %159 = vmatpush2.msra.mxu0 0.0
  %160 = vmatprep.mubr.f32.mxu0 0.0
  %161 = vmatmul.mubr.f32.gmra.mxu0 %v73
  %v162 = vpop.f32.mrf.mxu0
  %v163 = vadd.f32 %v69, %v162
  %v164 = vpop.f32.mrf.mxu0
  %165 = vmatprep.mubr.f32.mxu0 0.0
  %166 = vmatmul.mubr.f32.gmra.mxu0 %v76
  %v167 = vpop.f32.mrf.mxu0
  %v168 = vadd.f32 %v69, %v167
  %v169 = vpop.f32.mrf.mxu0
  %170 = vmatprep.mubr.f32.mxu0 0.0
  %171 = vmatmul.mubr.f32.gmra.mxu0 %v79
  %v172 = vpop.f32.mrf.mxu0
  %v173 = vadd.f32 %v69, %v172
  %v174 = vpop.f32.mrf.mxu0
  %175 = vmatprep.mubr.f32.mxu0 0.0
  %176 = vmatmul.mubr.f32.gmra.mxu0 %v82
  %v177 = vpop.f32.mrf.mxu0
  %v178 = vadd.f32 %v69, %v177
  %v179 = vpop.f32.mrf.mxu0
  %180 = vmatprep.mubr.f32.mxu0 0.0
  %181 = vmatmul.mubr.f32.gmra.mxu0 %v85
  %v182 = vpop.f32.mrf.mxu0
  %v183 = vadd.f32 %v69, %v182
  %v184 = vpop.f32.mrf.mxu0
  %185 = vmatprep.mubr.f32.mxu0 0.0
  %186 = vmatmul.mubr.f32.gmra.mxu0 %v88
  %v187 = vpop.f32.mrf.mxu0
  %v188 = vadd.f32 %v69, %v187
  %v189 = vpop.f32.mrf.mxu0
  %190 = vmatprep.mubr.f32.mxu0 0.0
  %191 = vmatmul.mubr.f32.gmra.mxu0 %v91
  %v192 = vpop.f32.mrf.mxu0
  %v193 = vadd.f32 %v69, %v192
  %v194 = vpop.f32.mrf.mxu0
  %195 = vmatprep.mubr.f32.mxu0 0.0
  %196 = vmatmul.mubr.f32.gmra.mxu0 %v94
  %v197 = vpop.f32.mrf.mxu0
  %v198 = vadd.f32 %v69, %v197
  %v199 = vpop.f32.mrf.mxu0
  %200 = vdwg.mxu0
  %v201 = vmax.f32 %v163, 0.0
  %v202 = vmax.f32 %v168, 0.0
  %v203 = vmax.f32 %v173, 0.0
  %v204 = vmax.f32 %v178, 0.0
  %v205 = vmax.f32 %v183, 0.0
  %v206 = vmax.f32 %v188, 0.0
  %v207 = vmax.f32 %v193, 0.0
  %v208 = vmax.f32 %v198, 0.0
  %v209 = vsub.f32 0.0, %v201
  %v210 = vsub.f32 0.0, %v202
  %v211 = vsub.f32 0.0, %v203
  %v212 = vsub.f32 0.0, %v204
  %v213 = vsub.f32 0.0, %v205
  %v214 = vsub.f32 0.0, %v206
  %v215 = vsub.f32 0.0, %v207
  %v216 = vsub.f32 0.0, %v208
  %v217 = vmul.f32 %v209, 1.442695
  %v218 = vpow.pop %v217
  %v219 = vmul.f32 %v210, 1.442695
  %v220 = vpow.pop %v219
  %v221 = vmul.f32 %v211, 1.442695
  %v222 = vpow.pop %v221
  %v223 = vmul.f32 %v212, 1.442695
  %v224 = vpow.pop %v223
  %v225 = vmul.f32 %v213, 1.442695
  %v226 = vpow.pop %v225
  %v227 = vmul.f32 %v214, 1.442695
  %v228 = vpow.pop %v227
  %v229 = vmul.f32 %v215, 1.442695
  %v230 = vpow.pop %v229
  %v231 = vmul.f32 %v216, 1.442695
  %v232 = vpow.pop %v231
  %vm233 = vcmask 261120
  %234 = vst.msk [vmem:[#allocation2] sm:$0xff] %vm233, %v218
  %235 = vst.msk [vmem:[#allocation2 + $0x8] sm:$0xff] %vm233, %v220
  %236 = vst.msk [vmem:[#allocation2 + $0x10] sm:$0xff] %vm233, %v222
  %237 = vst.msk [vmem:[#allocation2 + $0x18] sm:$0xff] %vm233, %v224
  %238 = vst.msk [vmem:[#allocation2 + $0x20] sm:$0xff] %vm233, %v226
  %239 = vst.msk [vmem:[#allocation2 + $0x28] sm:$0xff] %vm233, %v228
  %240 = vst.msk [vmem:[#allocation2 + $0x30] sm:$0xff] %vm233, %v230
  %241 = vst.msk [vmem:[#allocation2 + $0x38] sm:$0xff] %vm233, %v232
  %v242 = vsub.f32 1.0, %v46
  %v243 = vsub.f32 1.0, %v47
  %v244 = vsub.f32 1.0, %v48
  %v245 = vsub.f32 1.0, %v49
  %v246 = vsub.f32 1.0, %v50
  %v247 = vsub.f32 1.0, %v51
  %v248 = vsub.f32 1.0, %v52
  %v249 = vsub.f32 1.0, %v53
  %250 = vst.msk [vmem:[#allocation4] sm:$0xff] %vm71, %v242
  %251 = vst.msk [vmem:[#allocation4 + $0x8] sm:$0xff] %vm71, %v243
  %252 = vst.msk [vmem:[#allocation4 + $0x10] sm:$0xff] %vm71, %v244
  %253 = vst.msk [vmem:[#allocation4 + $0x18] sm:$0xff] %vm71, %v245
  %254 = vst.msk [vmem:[#allocation4 + $0x20] sm:$0xff] %vm71, %v246
  %255 = vst.msk [vmem:[#allocation4 + $0x28] sm:$0xff] %vm71, %v247
  %256 = vst.msk [vmem:[#allocation4 + $0x30] sm:$0xff] %vm71, %v248
  %257 = vst.msk [vmem:[#allocation4 + $0x38] sm:$0xff] %vm71, %v249
  %v258 = vld [vmem:[%s8] sm:$0xff]
  %v259 = vld [vmem:[%s8 + $0x8] sm:$0xff]
  %v260 = vld [vmem:[%s6] sm:$0x1]
  %v261 = vmul.f32 %v46, %v38
  %v262 = vmul.f32 %v47, %v39
  %v263 = vmul.f32 %v48, %v40
  %v264 = vmul.f32 %v49, %v41
  %v265 = vmul.f32 %v50, %v42
  %v266 = vmul.f32 %v51, %v43
  %v267 = vmul.f32 %v52, %v44
  %v268 = vmul.f32 %v53, %v45
  %277 = vrot.lane.b32.xlu0 %v46, 16
  %v278 = vpop.permute.xlu0 %277
  %279 = vrot.lane.b32.xlu0 %v47, 16
  %v280 = vpop.permute.xlu0 %279
  %281 = vrot.lane.b32.xlu0 %v48, 16
  %v282 = vpop.permute.xlu0 %281
  %283 = vrot.lane.b32.xlu0 %v49, 16
  %v284 = vpop.permute.xlu0 %283
  %285 = vrot.lane.b32.xlu0 %v50, 16
  %v286 = vpop.permute.xlu0 %285
  %287 = vrot.lane.b32.xlu0 %v51, 16
  %v288 = vpop.permute.xlu0 %287
  %289 = vrot.lane.b32.xlu0 %v52, 16
  %v290 = vpop.permute.xlu0 %289
  %291 = vrot.lane.b32.xlu0 %v53, 16
  %v292 = vpop.permute.xlu0 %291
  %v301 = vsel %vm71, %v261, %v278
  %v302 = vsel %vm71, %v262, %v280
  %v303 = vsel %vm71, %v263, %v282
  %v304 = vsel %vm71, %v264, %v284
  %v305 = vsel %vm71, %v265, %v286
  %v306 = vsel %vm71, %v266, %v288
  %v307 = vsel %vm71, %v267, %v290
  %v308 = vsel %vm71, %v268, %v292
  %v309 = vld [vmem:[%s7] sm:$0xff]
  %v310 = vld [vmem:[%s7 + $0x8] sm:$0xff]
  %v311 = vld [vmem:[%s7 + $0x10] sm:$0xff]
  %v312 = vld [vmem:[%s7 + $0x18] sm:$0xff]
  %v314 = vlaneseq
  %v315 = vshrl.u32 %v314, 7
  %v316 = vsub.s32 0, %v315
  %v317 = vrot.slane %v260, %v316
  %v319 = vmul.f32 %v242, %v317
  %v320 = vmul.f32 %v243, %v317
  %v321 = vmul.f32 %v244, %v317
  %v322 = vmul.f32 %v245, %v317
  %v323 = vmul.f32 %v246, %v317
  %v324 = vmul.f32 %v247, %v317
  %v325 = vmul.f32 %v248, %v317
  %v326 = vmul.f32 %v249, %v317
  %v328 = vsel %vm71, %v319, 0
  %v331 = vsel %vm71, %v320, 0
  %v334 = vsel %vm71, %v321, 0
  %v337 = vsel %vm71, %v322, 0
  %v340 = vsel %vm71, %v323, 0
  %v343 = vsel %vm71, %v324, 0
  %v346 = vsel %vm71, %v325, 0
  %v349 = vsel %vm71, %v326, 0
  %351 = vmatprep.subr.mxu0 0.0
  %352 = vmatpush1.msra.mxu0 0.0
  %353 = vmatprep.subr.mxu0 0.0
  %354 = vmatpush1.msra.mxu0 0.0
  %355 = vmatprep.subr.mxu0 0.0
  %356 = vmatpush1.msra.mxu0 0.0
  %357 = vmatprep.subr.mxu0 0.0
  %358 = vmatpush1.msra.mxu0 0.0
  %359 = vmatprep.subr.mxu0 0.0
  %360 = vmatpush1.msra.mxu0 0.0
  %361 = vmatprep.subr.mxu0 0.0
  %362 = vmatpush1.msra.mxu0 0.0
  %363 = vmatprep.subr.mxu0 0.0
  %364 = vmatpush1.msra.mxu0 0.0
  %365 = vmatprep.subr.mxu0 0.0
  %366 = vmatpush1.msra.mxu0 0.0
  %367 = vmatprep.subr.mxu0 0.0
  %368 = vmatpush1.msra.mxu0 0.0
  %369 = vmatprep.subr.mxu0 0.0
  %370 = vmatpush1.msra.mxu0 0.0
  %371 = vmatprep.subr.mxu0 0.0
  %372 = vmatpush1.msra.mxu0 0.0
  %373 = vmatprep.subr.mxu0 0.0
  %374 = vmatpush1.msra.mxu0 0.0
  %375 = vmatprep.subr.mxu0 0.0
  %376 = vmatpush1.msra.mxu0 0.0
  %377 = vmatprep.subr.mxu0 0.0
  %378 = vmatpush1.msra.mxu0 0.0
  %379 = vmatprep.subr.mxu0 0.0
  %380 = vmatpush1.msra.mxu0 %v259
  %381 = vmatprep.subr.mxu0 0.0
  %382 = vmatpush1.msra.mxu0 %v258
  %383 = vmatprep.subr.mxu0 0.0
  %384 = vmatpush2.msra.mxu0 0.0
  %385 = vmatprep.subr.mxu0 0.0
  %386 = vmatpush2.msra.mxu0 0.0
  %387 = vmatprep.subr.mxu0 0.0
  %388 = vmatpush2.msra.mxu0 0.0
  %389 = vmatprep.subr.mxu0 0.0
  %390 = vmatpush2.msra.mxu0 0.0
  %391 = vmatprep.subr.mxu0 0.0
  %392 = vmatpush2.msra.mxu0 0.0
  %393 = vmatprep.subr.mxu0 0.0
  %394 = vmatpush2.msra.mxu0 0.0
  %395 = vmatprep.subr.mxu0 0.0
  %396 = vmatpush2.msra.mxu0 0.0
  %397 = vmatprep.subr.mxu0 0.0
  %398 = vmatpush2.msra.mxu0 0.0
  %399 = vmatprep.subr.mxu0 0.0
  %400 = vmatpush2.msra.mxu0 0.0
  %401 = vmatprep.subr.mxu0 0.0
  %402 = vmatpush2.msra.mxu0 0.0
  %403 = vmatprep.subr.mxu0 0.0
  %404 = vmatpush2.msra.mxu0 0.0
  %405 = vmatprep.subr.mxu0 0.0
  %406 = vmatpush2.msra.mxu0 0.0
  %407 = vmatprep.subr.mxu0 0.0
  %408 = vmatpush2.msra.mxu0 0.0
  %409 = vmatprep.subr.mxu0 0.0
  %410 = vmatpush2.msra.mxu0 0.0
  %411 = vmatprep.subr.mxu0 0.0
  %412 = vmatpush2.msra.mxu0 0.0
  %413 = vmatprep.subr.mxu0 0.0
  %414 = vmatpush2.msra.mxu0 0.0
  %415 = vmatprep.mubr.f32.mxu0 0.0
  %416 = vmatmul.mubr.f32.gmra.mxu0 %v328
  %v417 = vpop.f32.mrf.mxu0
  %v418 = vadd.f32 0.0, %v417
  %v419 = vpop.f32.mrf.mxu0
  %420 = vmatprep.mubr.f32.mxu0 0.0
  %421 = vmatmul.mubr.f32.gmra.mxu0 %v331
  %v422 = vpop.f32.mrf.mxu0
  %v423 = vadd.f32 0.0, %v422
  %v424 = vpop.f32.mrf.mxu0
  %425 = vmatprep.mubr.f32.mxu0 0.0
  %426 = vmatmul.mubr.f32.gmra.mxu0 %v334
  %v427 = vpop.f32.mrf.mxu0
  %v428 = vadd.f32 0.0, %v427
  %v429 = vpop.f32.mrf.mxu0
  %430 = vmatprep.mubr.f32.mxu0 0.0
  %431 = vmatmul.mubr.f32.gmra.mxu0 %v337
  %v432 = vpop.f32.mrf.mxu0
  %v433 = vadd.f32 0.0, %v432
  %v434 = vpop.f32.mrf.mxu0
  %435 = vmatprep.mubr.f32.mxu0 0.0
  %436 = vmatmul.mubr.f32.gmra.mxu0 %v340
  %v437 = vpop.f32.mrf.mxu0
  %v438 = vadd.f32 0.0, %v437
  %v439 = vpop.f32.mrf.mxu0
  %440 = vmatprep.mubr.f32.mxu0 0.0
  %441 = vmatmul.mubr.f32.gmra.mxu0 %v343
  %v442 = vpop.f32.mrf.mxu0
  %v443 = vadd.f32 0.0, %v442
  %v444 = vpop.f32.mrf.mxu0
  %445 = vmatprep.mubr.f32.mxu0 0.0
  %446 = vmatmul.mubr.f32.gmra.mxu0 %v346
  %v447 = vpop.f32.mrf.mxu0
  %v448 = vadd.f32 0.0, %v447
  %v449 = vpop.f32.mrf.mxu0
  %450 = vmatprep.mubr.f32.mxu0 0.0
  %451 = vmatmul.mubr.f32.gmra.mxu0 %v349
  %v452 = vpop.f32.mrf.mxu0
  %v453 = vadd.f32 0.0, %v452
  %v454 = vpop.f32.mrf.mxu0
  %455 = vdwg.mxu0
  %v457 = vsel %vm233, %v301, 0
  %v460 = vsel %vm233, %v302, 0
  %v463 = vsel %vm233, %v303, 0
  %v466 = vsel %vm233, %v304, 0
  %v469 = vsel %vm233, %v305, 0
  %v472 = vsel %vm233, %v306, 0
  %v475 = vsel %vm233, %v307, 0
  %v478 = vsel %vm233, %v308, 0
  %480 = vmatprep.subr.mxu0 0.0
  %481 = vmatpush1.msra.mxu0 0.0
  %482 = vmatprep.subr.mxu0 0.0
  %483 = vmatpush1.msra.mxu0 0.0
  %484 = vmatprep.subr.mxu0 0.0
  %485 = vmatpush1.msra.mxu0 0.0
  %486 = vmatprep.subr.mxu0 0.0
  %487 = vmatpush1.msra.mxu0 0.0
  %488 = vmatprep.subr.mxu0 0.0
  %489 = vmatpush1.msra.mxu0 0.0
  %490 = vmatprep.subr.mxu0 0.0
  %491 = vmatpush1.msra.mxu0 0.0
  %492 = vmatprep.subr.mxu0 0.0
  %493 = vmatpush1.msra.mxu0 0.0
  %494 = vmatprep.subr.mxu0 0.0
  %495 = vmatpush1.msra.mxu0 0.0
  %496 = vmatprep.subr.mxu0 0.0
  %497 = vmatpush1.msra.mxu0 0.0
  %498 = vmatprep.subr.mxu0 0.0
  %499 = vmatpush1.msra.mxu0 0.0
  %500 = vmatprep.subr.mxu0 0.0
  %501 = vmatpush1.msra.mxu0 0.0
  %502 = vmatprep.subr.mxu0 0.0
  %503 = vmatpush1.msra.mxu0 0.0
  %504 = vmatprep.subr.mxu0 0.0
  %505 = vmatpush1.msra.mxu0 %v312
  %506 = vmatprep.subr.mxu0 0.0
  %507 = vmatpush1.msra.mxu0 %v311
  %508 = vmatprep.subr.mxu0 0.0
  %509 = vmatpush1.msra.mxu0 %v310
  %510 = vmatprep.subr.mxu0 0.0
  %511 = vmatpush1.msra.mxu0 %v309
  %512 = vmatprep.subr.mxu0 0.0
  %513 = vmatpush2.msra.mxu0 0.0
  %514 = vmatprep.subr.mxu0 0.0
  %515 = vmatpush2.msra.mxu0 0.0
  %516 = vmatprep.subr.mxu0 0.0
  %517 = vmatpush2.msra.mxu0 0.0
  %518 = vmatprep.subr.mxu0 0.0
  %519 = vmatpush2.msra.mxu0 0.0
  %520 = vmatprep.subr.mxu0 0.0
  %521 = vmatpush2.msra.mxu0 0.0
  %522 = vmatprep.subr.mxu0 0.0
  %523 = vmatpush2.msra.mxu0 0.0
  %524 = vmatprep.subr.mxu0 0.0
  %525 = vmatpush2.msra.mxu0 0.0
  %526 = vmatprep.subr.mxu0 0.0
  %527 = vmatpush2.msra.mxu0 0.0
  %528 = vmatprep.subr.mxu0 0.0
  %529 = vmatpush2.msra.mxu0 0.0
  %530 = vmatprep.subr.mxu0 0.0
  %531 = vmatpush2.msra.mxu0 0.0
  %532 = vmatprep.subr.mxu0 0.0
  %533 = vmatpush2.msra.mxu0 0.0
  %534 = vmatprep.subr.mxu0 0.0
  %535 = vmatpush2.msra.mxu0 0.0
  %536 = vmatprep.subr.mxu0 0.0
  %537 = vmatpush2.msra.mxu0 0.0
  %538 = vmatprep.subr.mxu0 0.0
  %539 = vmatpush2.msra.mxu0 0.0
  %540 = vmatprep.subr.mxu0 0.0
  %541 = vmatpush2.msra.mxu0 0.0
  %542 = vmatprep.subr.mxu0 0.0
  %543 = vmatpush2.msra.mxu0 0.0
  %544 = vmatprep.mubr.f32.mxu0 0.0
  %545 = vmatmul.mubr.f32.gmra.mxu0 %v457
  %v546 = vpop.f32.mrf.mxu0
  %v547 = vadd.f32 %v418, %v546
  %v548 = vpop.f32.mrf.mxu0
  %549 = vmatprep.mubr.f32.mxu0 0.0
  %550 = vmatmul.mubr.f32.gmra.mxu0 %v460
  %v551 = vpop.f32.mrf.mxu0
  %v552 = vadd.f32 %v423, %v551
  %v553 = vpop.f32.mrf.mxu0
  %554 = vmatprep.mubr.f32.mxu0 0.0
  %555 = vmatmul.mubr.f32.gmra.mxu0 %v463
  %v556 = vpop.f32.mrf.mxu0
  %v557 = vadd.f32 %v428, %v556
  %v558 = vpop.f32.mrf.mxu0
  %559 = vmatprep.mubr.f32.mxu0 0.0
  %560 = vmatmul.mubr.f32.gmra.mxu0 %v466
  %v561 = vpop.f32.mrf.mxu0
  %v562 = vadd.f32 %v433, %v561
  %v563 = vpop.f32.mrf.mxu0
  %564 = vmatprep.mubr.f32.mxu0 0.0
  %565 = vmatmul.mubr.f32.gmra.mxu0 %v469
  %v566 = vpop.f32.mrf.mxu0
  %v567 = vadd.f32 %v438, %v566
  %v568 = vpop.f32.mrf.mxu0
  %569 = vmatprep.mubr.f32.mxu0 0.0
  %570 = vmatmul.mubr.f32.gmra.mxu0 %v472
  %v571 = vpop.f32.mrf.mxu0
  %v572 = vadd.f32 %v443, %v571
  %v573 = vpop.f32.mrf.mxu0
  %574 = vmatprep.mubr.f32.mxu0 0.0
  %575 = vmatmul.mubr.f32.gmra.mxu0 %v475
  %v576 = vpop.f32.mrf.mxu0
  %v577 = vadd.f32 %v448, %v576
  %v578 = vpop.f32.mrf.mxu0
  %579 = vmatprep.mubr.f32.mxu0 0.0
  %580 = vmatmul.mubr.f32.gmra.mxu0 %v478
  %v581 = vpop.f32.mrf.mxu0
  %v582 = vadd.f32 %v453, %v581
  %v583 = vpop.f32.mrf.mxu0
  %584 = vdwg.mxu0
  %v585 = vld [vmem:[%s10] sm:$0x1]
  %v587 = vlaneseq
  %v588 = vshrl.u32 %v587, 7
  %v589 = vsub.s32 0, %v588
  %v590 = vrot.slane %v585, %v589
  %v592 = vadd.f32 %v547, %v590
  %v593 = vadd.f32 %v552, %v590
  %v594 = vadd.f32 %v557, %v590
  %v595 = vadd.f32 %v562, %v590
  %v596 = vadd.f32 %v567, %v590
  %v597 = vadd.f32 %v572, %v590
  %v598 = vadd.f32 %v577, %v590
  %v599 = vadd.f32 %v582, %v590
  %600 = vst [vmem:[#allocation3] sm:$0xff] %v592
  %601 = vst [vmem:[#allocation3 + $0x8] sm:$0xff] %v593
  %602 = vst [vmem:[#allocation3 + $0x10] sm:$0xff] %v594
  %603 = vst [vmem:[#allocation3 + $0x18] sm:$0xff] %v595
  %604 = vst [vmem:[#allocation3 + $0x20] sm:$0xff] %v596
  %605 = vst [vmem:[#allocation3 + $0x28] sm:$0xff] %v597
  %606 = vst [vmem:[#allocation3 + $0x30] sm:$0xff] %v598
  %607 = vst [vmem:[#allocation3 + $0x38] sm:$0xff] %v599
  %v608 = vld [vmem:[%s5] sm:$0xff]
  %v609 = vld [vmem:[%s5 + $0x8] sm:$0xff]
  %v610 = vld [vmem:[%s5 + $0x10] sm:$0xff]
  %v611 = vld [vmem:[%s5 + $0x18] sm:$0xff]
  %v612 = vld [vmem:[%s9] sm:$0xff]
  %v613 = vld [vmem:[%s9 + $0x8] sm:$0xff]
  %v614 = vld [vmem:[%s9 + $0x10] sm:$0xff]
  %v615 = vld [vmem:[%s9 + $0x18] sm:$0xff]
  %v616 = vlaneseq
  %v617 = vand.u32 %v616, 127
  %vm618 = vcmp.ge.s32.totalorder %v617, 64
  %vm619 = vcmp.lt.s32.totalorder %v617, 96
  %vm620 = vmand %vm618, %vm619
  %v621 = vsel %vm620, 1.0, 0.5
  %v622 = vsel %vm620, 0.0, 0.5
  %v623 = vld [vmem:[#allocation2] sm:$0xff]
  %v624 = vld [vmem:[#allocation3] sm:$0xff]
  %v625 = vld [vmem:[#allocation4] sm:$0xff]
  %v626 = vmul.f32 %v623, 0.0
  %v628 = vsel %vm233, %v626, 0
  %630 = vmatprep.subr.mxu0 0.0
  %631 = vmatpush1.msra.mxu0 0.0
  %632 = vmatprep.subr.mxu0 0.0
  %633 = vmatpush1.msra.mxu0 0.0
  %634 = vmatprep.subr.mxu0 0.0
  %635 = vmatpush1.msra.mxu0 0.0
  %636 = vmatprep.subr.mxu0 0.0
  %637 = vmatpush1.msra.mxu0 0.0
  %638 = vmatprep.subr.mxu0 0.0
  %639 = vmatpush1.msra.mxu0 0.0
  %640 = vmatprep.subr.mxu0 0.0
  %641 = vmatpush1.msra.mxu0 0.0
  %642 = vmatprep.subr.mxu0 0.0
  %643 = vmatpush1.msra.mxu0 0.0
  %644 = vmatprep.subr.mxu0 0.0
  %645 = vmatpush1.msra.mxu0 0.0
  %646 = vmatprep.subr.mxu0 0.0
  %647 = vmatpush1.msra.mxu0 0.0
  %648 = vmatprep.subr.mxu0 0.0
  %649 = vmatpush1.msra.mxu0 0.0
  %650 = vmatprep.subr.mxu0 0.0
  %651 = vmatpush1.msra.mxu0 0.0
  %652 = vmatprep.subr.mxu0 0.0
  %653 = vmatpush1.msra.mxu0 0.0
  %654 = vmatprep.subr.mxu0 0.0
  %655 = vmatpush1.msra.mxu0 %v611
  %656 = vmatprep.subr.mxu0 0.0
  %657 = vmatpush1.msra.mxu0 %v610
  %658 = vmatprep.subr.mxu0 0.0
  %659 = vmatpush1.msra.mxu0 %v609
  %660 = vmatprep.subr.mxu0 0.0
  %661 = vmatpush1.msra.mxu0 %v608
  %662 = vmatprep.subr.mxu0 0.0
  %663 = vmatpush2.msra.mxu0 0.0
  %664 = vmatprep.subr.mxu0 0.0
  %665 = vmatpush2.msra.mxu0 0.0
  %666 = vmatprep.subr.mxu0 0.0
  %667 = vmatpush2.msra.mxu0 0.0
  %668 = vmatprep.subr.mxu0 0.0
  %669 = vmatpush2.msra.mxu0 0.0
  %670 = vmatprep.subr.mxu0 0.0
  %671 = vmatpush2.msra.mxu0 0.0
  %672 = vmatprep.subr.mxu0 0.0
  %673 = vmatpush2.msra.mxu0 0.0
  %674 = vmatprep.subr.mxu0 0.0
  %675 = vmatpush2.msra.mxu0 0.0
  %676 = vmatprep.subr.mxu0 0.0
  %677 = vmatpush2.msra.mxu0 0.0
  %678 = vmatprep.subr.mxu0 0.0
  %679 = vmatpush2.msra.mxu0 0.0
  %680 = vmatprep.subr.mxu0 0.0
  %681 = vmatpush2.msra.mxu0 0.0
  %682 = vmatprep.subr.mxu0 0.0
  %683 = vmatpush2.msra.mxu0 0.0
  %684 = vmatprep.subr.mxu0 0.0
  %685 = vmatpush2.msra.mxu0 0.0
  %686 = vmatprep.subr.mxu0 0.0
  %687 = vmatpush2.msra.mxu0 0.0
  %688 = vmatprep.subr.mxu0 0.0
  %689 = vmatpush2.msra.mxu0 0.0
  %690 = vmatprep.subr.mxu0 0.0
  %691 = vmatpush2.msra.mxu0 0.0
  %692 = vmatprep.subr.mxu0 0.0
  %693 = vmatpush2.msra.mxu0 0.0
  %694 = vmatprep.mubr.f32.mxu0 0.0
  %695 = vmatmul.mubr.f32.gmra.mxu0 %v628
  %v696 = vpop.f32.mrf.mxu0
  %v697 = vadd.f32 0.0, %v696
  %v698 = vpop.f32.mrf.mxu0
  %699 = vdwg.mxu0
  %v700 = vadd.f32 %v697, %v317
  %701 = vst.msk [vmem:[%s11] sm:$0xff] %vm71, %v700
  %v702 = vmul.f32 %v625, %v697
  %703 = vmatprep.subr.mxu0 0.0
  %704 = vmatpush1.msra.mxu0 0.0
  %705 = vmatprep.subr.mxu0 0.0
  %706 = vmatpush1.msra.mxu0 0.0
  %707 = vmatprep.subr.mxu0 0.0
  %708 = vmatpush1.msra.mxu0 0.0
  %709 = vmatprep.subr.mxu0 0.0
  %710 = vmatpush1.msra.mxu0 0.0
  %711 = vmatprep.subr.mxu0 0.0
  %712 = vmatpush1.msra.mxu0 0.0
  %713 = vmatprep.subr.mxu0 0.0
  %714 = vmatpush1.msra.mxu0 0.0
  %715 = vmatprep.subr.mxu0 0.0
  %716 = vmatpush1.msra.mxu0 0.0
  %717 = vmatprep.subr.mxu0 0.0
  %718 = vmatpush1.msra.mxu0 0.0
  %719 = vmatprep.subr.mxu0 0.0
  %720 = vmatpush1.msra.mxu0 0.0
  %721 = vmatprep.subr.mxu0 0.0
  %722 = vmatpush1.msra.mxu0 0.0
  %723 = vmatprep.subr.mxu0 0.0
  %724 = vmatpush1.msra.mxu0 0.0
  %725 = vmatprep.subr.mxu0 0.0
  %726 = vmatpush1.msra.mxu0 0.0
  %727 = vmatprep.subr.mxu0 0.0
  %728 = vmatpush1.msra.mxu0 %v615
  %729 = vmatprep.subr.mxu0 0.0
  %730 = vmatpush1.msra.mxu0 %v614
  %731 = vmatprep.subr.mxu0 0.0
  %732 = vmatpush1.msra.mxu0 %v613
  %733 = vmatprep.subr.mxu0 0.0
  %734 = vmatpush1.msra.mxu0 %v612
  %735 = vmatprep.subr.mxu0 0.0
  %736 = vmatpush2.msra.mxu0 0.0
  %737 = vmatprep.subr.mxu0 0.0
  %738 = vmatpush2.msra.mxu0 0.0
  %739 = vmatprep.subr.mxu0 0.0
  %740 = vmatpush2.msra.mxu0 0.0
  %741 = vmatprep.subr.mxu0 0.0
  %742 = vmatpush2.msra.mxu0 0.0
  %743 = vmatprep.subr.mxu0 0.0
  %744 = vmatpush2.msra.mxu0 0.0
  %745 = vmatprep.subr.mxu0 0.0
  %746 = vmatpush2.msra.mxu0 0.0
  %747 = vmatprep.subr.mxu0 0.0
  %748 = vmatpush2.msra.mxu0 0.0
  %749 = vmatprep.subr.mxu0 0.0
  %750 = vmatpush2.msra.mxu0 0.0
  %751 = vmatprep.subr.mxu0 0.0
  %752 = vmatpush2.msra.mxu0 0.0
  %753 = vmatprep.subr.mxu0 0.0
  %754 = vmatpush2.msra.mxu0 0.0
  %755 = vmatprep.subr.mxu0 0.0
  %756 = vmatpush2.msra.mxu0 0.0
  %757 = vmatprep.subr.mxu0 0.0
  %758 = vmatpush2.msra.mxu0 0.0
  %759 = vmatprep.subr.mxu0 0.0
  %760 = vmatpush2.msra.mxu0 0.0
  %761 = vmatprep.subr.mxu0 0.0
  %762 = vmatpush2.msra.mxu0 0.0
  %763 = vmatprep.subr.mxu0 0.0
  %764 = vmatpush2.msra.mxu0 0.0
  %765 = vmatprep.subr.mxu0 0.0
  %766 = vmatpush2.msra.mxu0 0.0
  %767 = vmatprep.mubr.f32.mxu0 0.0
  %768 = vmatmul.mubr.f32.gmra.mxu0 %v628
  %v769 = vpop.f32.mrf.mxu0
  %v770 = vadd.f32 0.0, %v769
  %v771 = vpop.f32.mrf.mxu0
  %772 = vdwg.mxu0
  %v774 = vsel %vm71, %v702, 0
  %776 = vmatprep.subr.mxu0 0.0
  %777 = vmatpush1.msra.mxu0 0.0
  %778 = vmatprep.subr.mxu0 0.0
  %779 = vmatpush1.msra.mxu0 0.0
  %780 = vmatprep.subr.mxu0 0.0
  %781 = vmatpush1.msra.mxu0 0.0
  %782 = vmatprep.subr.mxu0 0.0
  %783 = vmatpush1.msra.mxu0 0.0
  %784 = vmatprep.subr.mxu0 0.0
  %785 = vmatpush1.msra.mxu0 0.0
  %786 = vmatprep.subr.mxu0 0.0
  %787 = vmatpush1.msra.mxu0 0.0
  %788 = vmatprep.subr.mxu0 0.0
  %789 = vmatpush1.msra.mxu0 0.0
  %790 = vmatprep.subr.mxu0 0.0
  %791 = vmatpush1.msra.mxu0 0.0
  %792 = vmatprep.subr.mxu0 0.0
  %793 = vmatpush1.msra.mxu0 0.0
  %794 = vmatprep.subr.mxu0 0.0
  %795 = vmatpush1.msra.mxu0 0.0
  %796 = vmatprep.subr.mxu0 0.0
  %797 = vmatpush1.msra.mxu0 0.0
  %798 = vmatprep.subr.mxu0 0.0
  %799 = vmatpush1.msra.mxu0 0.0
  %800 = vmatprep.subr.mxu0 0.0
  %801 = vmatpush1.msra.mxu0 0.0
  %802 = vmatprep.subr.mxu0 0.0
  %803 = vmatpush1.msra.mxu0 0.0
  %804 = vmatprep.subr.mxu0 0.0
  %805 = vmatpush1.msra.mxu0 %v259
  %806 = vmatprep.subr.mxu0 0.0
  %807 = vmatpush1.msra.mxu0 %v258
  %808 = vmatprep.subr.mxu0 0.0
  %809 = vmatpush2.msra.mxu0 0.0
  %810 = vmatprep.subr.mxu0 0.0
  %811 = vmatpush2.msra.mxu0 0.0
  %812 = vmatprep.subr.mxu0 0.0
  %813 = vmatpush2.msra.mxu0 0.0
  %814 = vmatprep.subr.mxu0 0.0
  %815 = vmatpush2.msra.mxu0 0.0
  %816 = vmatprep.subr.mxu0 0.0
  %817 = vmatpush2.msra.mxu0 0.0
  %818 = vmatprep.subr.mxu0 0.0
  %819 = vmatpush2.msra.mxu0 0.0
  %820 = vmatprep.subr.mxu0 0.0
  %821 = vmatpush2.msra.mxu0 0.0
  %822 = vmatprep.subr.mxu0 0.0
  %823 = vmatpush2.msra.mxu0 0.0
  %824 = vmatprep.subr.mxu0 0.0
  %825 = vmatpush2.msra.mxu0 0.0
  %826 = vmatprep.subr.mxu0 0.0
  %827 = vmatpush2.msra.mxu0 0.0
  %828 = vmatprep.subr.mxu0 0.0
  %829 = vmatpush2.msra.mxu0 0.0
  %830 = vmatprep.subr.mxu0 0.0
  %831 = vmatpush2.msra.mxu0 0.0
  %832 = vmatprep.subr.mxu0 0.0
  %833 = vmatpush2.msra.mxu0 0.0
  %834 = vmatprep.subr.mxu0 0.0
  %835 = vmatpush2.msra.mxu0 0.0
  %836 = vmatprep.subr.mxu0 0.0
  %837 = vmatpush2.msra.mxu0 0.0
  %838 = vmatprep.subr.mxu0 0.0
  %839 = vmatpush2.msra.mxu0 0.0
  %840 = vmatprep.mubr.f32.mxu0 0.0
  %841 = vmatmul.mubr.f32.gmra.mxu0 %v774
  %v842 = vpop.f32.mrf.mxu0
  %v843 = vadd.f32 %v770, %v842
  %v844 = vpop.f32.mrf.mxu0
  %845 = vdwg.mxu0
  %v846 = vadd.f32 %v843, %v624
  %v847 = vmul.f32 %v846, %v621
  %v848 = vtanh.pop %v847
  %v849 = vmul.f32 %v848, %v621
  %v850 = vadd.f32 %v849, %v622
  %v851 = vmul.f32 %v850, 0.0
  %853 = vrot.lane.b32.xlu0 %v850, 64
  %v854 = vpop.permute.xlu0 %853
  %v856 = vmul.f32 %v850, %v854
  %858 = vrot.lane.b32.xlu0 %v856, 32
  %v859 = vpop.permute.xlu0 %858
  %v861 = vadd.f32 %v851, %v859
  %v862 = vtanh.pop %v861
  %864 = vrot.lane.b32.xlu0 %v862, 64
  %v865 = vpop.permute.xlu0 %864
  %v867 = vmul.f32 %v850, %v865
  %s868 = scalar_lea.vmem [#allocation2], 8
  %v869 = vld [vmem:[%s868] sm:$0xff]
  %s870 = scalar_lea.vmem [#allocation3], 8
  %v871 = vld [vmem:[%s870] sm:$0xff]
  %s872 = scalar_lea.vmem [#allocation4], 8
  %v873 = vld [vmem:[%s872] sm:$0xff]
  %875 = vrot.lane.b32.xlu0 %v869, 96
  %v876 = vpop.permute.xlu0 %875
  %v878 = vmul.f32 %v867, %v876
  %880 = vrot.lane.b32.xlu0 %v878, 32
  %v881 = vpop.permute.xlu0 %880
  %v882 = vsel %vm233, %v881, 0
  %884 = vmatprep.subr.mxu0 0.0
  %885 = vmatpush1.msra.mxu0 0.0
  %886 = vmatprep.subr.mxu0 0.0
  %887 = vmatpush1.msra.mxu0 0.0
  %888 = vmatprep.subr.mxu0 0.0
  %889 = vmatpush1.msra.mxu0 0.0
  %890 = vmatprep.subr.mxu0 0.0
  %891 = vmatpush1.msra.mxu0 0.0
  %892 = vmatprep.subr.mxu0 0.0
  %893 = vmatpush1.msra.mxu0 0.0
  %894 = vmatprep.subr.mxu0 0.0
  %895 = vmatpush1.msra.mxu0 0.0
  %896 = vmatprep.subr.mxu0 0.0
  %897 = vmatpush1.msra.mxu0 0.0
  %898 = vmatprep.subr.mxu0 0.0
  %899 = vmatpush1.msra.mxu0 0.0
  %900 = vmatprep.subr.mxu0 0.0
  %901 = vmatpush1.msra.mxu0 0.0
  %902 = vmatprep.subr.mxu0 0.0
  %903 = vmatpush1.msra.mxu0 0.0
  %904 = vmatprep.subr.mxu0 0.0
  %905 = vmatpush1.msra.mxu0 0.0
  %906 = vmatprep.subr.mxu0 0.0
  %907 = vmatpush1.msra.mxu0 0.0
  %908 = vmatprep.subr.mxu0 0.0
  %909 = vmatpush1.msra.mxu0 %v611
  %910 = vmatprep.subr.mxu0 0.0
  %911 = vmatpush1.msra.mxu0 %v610
  %912 = vmatprep.subr.mxu0 0.0
  %913 = vmatpush1.msra.mxu0 %v609
  %914 = vmatprep.subr.mxu0 0.0
  %915 = vmatpush1.msra.mxu0 %v608
  %916 = vmatprep.subr.mxu0 0.0
  %917 = vmatpush2.msra.mxu0 0.0
  %918 = vmatprep.subr.mxu0 0.0
  %919 = vmatpush2.msra.mxu0 0.0
  %920 = vmatprep.subr.mxu0 0.0
  %921 = vmatpush2.msra.mxu0 0.0
  %922 = vmatprep.subr.mxu0 0.0
  %923 = vmatpush2.msra.mxu0 0.0
  %924 = vmatprep.subr.mxu0 0.0
  %925 = vmatpush2.msra.mxu0 0.0
  %926 = vmatprep.subr.mxu0 0.0
  %927 = vmatpush2.msra.mxu0 0.0
  %928 = vmatprep.subr.mxu0 0.0
  %929 = vmatpush2.msra.mxu0 0.0
  %930 = vmatprep.subr.mxu0 0.0
  %931 = vmatpush2.msra.mxu0 0.0
  %932 = vmatprep.subr.mxu0 0.0
  %933 = vmatpush2.msra.mxu0 0.0
  %934 = vmatprep.subr.mxu0 0.0
  %935 = vmatpush2.msra.mxu0 0.0
  %936 = vmatprep.subr.mxu0 0.0
  %937 = vmatpush2.msra.mxu0 0.0
  %938 = vmatprep.subr.mxu0 0.0
  %939 = vmatpush2.msra.mxu0 0.0
  %940 = vmatprep.subr.mxu0 0.0
  %941 = vmatpush2.msra.mxu0 0.0
  %942 = vmatprep.subr.mxu0 0.0
  %943 = vmatpush2.msra.mxu0 0.0
  %944 = vmatprep.subr.mxu0 0.0
  %945 = vmatpush2.msra.mxu0 0.0
  %946 = vmatprep.subr.mxu0 0.0
  %947 = vmatpush2.msra.mxu0 0.0
  %948 = vmatprep.mubr.f32.mxu0 0.0
  %949 = vmatmul.mubr.f32.gmra.mxu0 %v882
  %v950 = vpop.f32.mrf.mxu0
  %v951 = vadd.f32 0.0, %v950
  %v952 = vpop.f32.mrf.mxu0
  %953 = vdwg.mxu0
  %v954 = vadd.f32 %v951, %v317
  %s955 = scalar_lea.vmem %s11, 8
  %956 = vst.msk [vmem:[%s955] sm:$0xff] %vm71, %v954
  %v957 = vmul.f32 %v873, %v951
  %958 = vmatprep.subr.mxu0 0.0
  %959 = vmatpush1.msra.mxu0 0.0
  %960 = vmatprep.subr.mxu0 0.0
  %961 = vmatpush1.msra.mxu0 0.0
  %962 = vmatprep.subr.mxu0 0.0
  %963 = vmatpush1.msra.mxu0 0.0
  %964 = vmatprep.subr.mxu0 0.0
  %965 = vmatpush1.msra.mxu0 0.0
  %966 = vmatprep.subr.mxu0 0.0
  %967 = vmatpush1.msra.mxu0 0.0
  %968 = vmatprep.subr.mxu0 0.0
  %969 = vmatpush1.msra.mxu0 0.0
  %970 = vmatprep.subr.mxu0 0.0
  %971 = vmatpush1.msra.mxu0 0.0
  %972 = vmatprep.subr.mxu0 0.0
  %973 = vmatpush1.msra.mxu0 0.0
  %974 = vmatprep.subr.mxu0 0.0
  %975 = vmatpush1.msra.mxu0 0.0
  %976 = vmatprep.subr.mxu0 0.0
  %977 = vmatpush1.msra.mxu0 0.0
  %978 = vmatprep.subr.mxu0 0.0
  %979 = vmatpush1.msra.mxu0 0.0
  %980 = vmatprep.subr.mxu0 0.0
  %981 = vmatpush1.msra.mxu0 0.0
  %982 = vmatprep.subr.mxu0 0.0
  %983 = vmatpush1.msra.mxu0 %v615
  %984 = vmatprep.subr.mxu0 0.0
  %985 = vmatpush1.msra.mxu0 %v614
  %986 = vmatprep.subr.mxu0 0.0
  %987 = vmatpush1.msra.mxu0 %v613
  %988 = vmatprep.subr.mxu0 0.0
  %989 = vmatpush1.msra.mxu0 %v612
  %990 = vmatprep.subr.mxu0 0.0
  %991 = vmatpush2.msra.mxu0 0.0
  %992 = vmatprep.subr.mxu0 0.0
  %993 = vmatpush2.msra.mxu0 0.0
  %994 = vmatprep.subr.mxu0 0.0
  %995 = vmatpush2.msra.mxu0 0.0
  %996 = vmatprep.subr.mxu0 0.0
  %997 = vmatpush2.msra.mxu0 0.0
  %998 = vmatprep.subr.mxu0 0.0
  %999 = vmatpush2.msra.mxu0 0.0
  %1000 = vmatprep.subr.mxu0 0.0
  %1001 = vmatpush2.msra.mxu0 0.0
  %1002 = vmatprep.subr.mxu0 0.0
  %1003 = vmatpush2.msra.mxu0 0.0
  %1004 = vmatprep.subr.mxu0 0.0
  %1005 = vmatpush2.msra.mxu0 0.0
  %1006 = vmatprep.subr.mxu0 0.0
  %1007 = vmatpush2.msra.mxu0 0.0
  %1008 = vmatprep.subr.mxu0 0.0
  %1009 = vmatpush2.msra.mxu0 0.0
  %1010 = vmatprep.subr.mxu0 0.0
  %1011 = vmatpush2.msra.mxu0 0.0
  %1012 = vmatprep.subr.mxu0 0.0
  %1013 = vmatpush2.msra.mxu0 0.0
  %1014 = vmatprep.subr.mxu0 0.0
  %1015 = vmatpush2.msra.mxu0 0.0
  %1016 = vmatprep.subr.mxu0 0.0
  %1017 = vmatpush2.msra.mxu0 0.0
  %1018 = vmatprep.subr.mxu0 0.0
  %1019 = vmatpush2.msra.mxu0 0.0
  %1020 = vmatprep.subr.mxu0 0.0
  %1021 = vmatpush2.msra.mxu0 0.0
  %1022 = vmatprep.mubr.f32.mxu0 0.0
  %1023 = vmatmul.mubr.f32.gmra.mxu0 %v882
  %v1024 = vpop.f32.mrf.mxu0
  %v1025 = vadd.f32 0.0, %v1024
  %v1026 = vpop.f32.mrf.mxu0
  %1027 = vdwg.mxu0
  %v1029 = vsel %vm71, %v957, 0
  %1031 = vmatprep.subr.mxu0 0.0
  %1032 = vmatpush1.msra.mxu0 0.0
  %1033 = vmatprep.subr.mxu0 0.0
  %1034 = vmatpush1.msra.mxu0 0.0
  %1035 = vmatprep.subr.mxu0 0.0
  %1036 = vmatpush1.msra.mxu0 0.0
  %1037 = vmatprep.subr.mxu0 0.0
  %1038 = vmatpush1.msra.mxu0 0.0
  %1039 = vmatprep.subr.mxu0 0.0
  %1040 = vmatpush1.msra.mxu0 0.0
  %1041 = vmatprep.subr.mxu0 0.0
  %1042 = vmatpush1.msra.mxu0 0.0
  %1043 = vmatprep.subr.mxu0 0.0
  %1044 = vmatpush1.msra.mxu0 0.0
  %1045 = vmatprep.subr.mxu0 0.0
  %1046 = vmatpush1.msra.mxu0 0.0
  %1047 = vmatprep.subr.mxu0 0.0
  %1048 = vmatpush1.msra.mxu0 0.0
  %1049 = vmatprep.subr.mxu0 0.0
  %1050 = vmatpush1.msra.mxu0 0.0
  %1051 = vmatprep.subr.mxu0 0.0
  %1052 = vmatpush1.msra.mxu0 0.0
  %1053 = vmatprep.subr.mxu0 0.0
  %1054 = vmatpush1.msra.mxu0 0.0
  %1055 = vmatprep.subr.mxu0 0.0
  %1056 = vmatpush1.msra.mxu0 0.0
  %1057 = vmatprep.subr.mxu0 0.0
  %1058 = vmatpush1.msra.mxu0 0.0
  %1059 = vmatprep.subr.mxu0 0.0
  %1060 = vmatpush1.msra.mxu0 %v259
  %1061 = vmatprep.subr.mxu0 0.0
  %1062 = vmatpush1.msra.mxu0 %v258
  %1063 = vmatprep.subr.mxu0 0.0
  %1064 = vmatpush2.msra.mxu0 0.0
  %1065 = vmatprep.subr.mxu0 0.0
  %1066 = vmatpush2.msra.mxu0 0.0
  %1067 = vmatprep.subr.mxu0 0.0
  %1068 = vmatpush2.msra.mxu0 0.0
  %1069 = vmatprep.subr.mxu0 0.0
  %1070 = vmatpush2.msra.mxu0 0.0
  %1071 = vmatprep.subr.mxu0 0.0
  %1072 = vmatpush2.msra.mxu0 0.0
  %1073 = vmatprep.subr.mxu0 0.0
  %1074 = vmatpush2.msra.mxu0 0.0
  %1075 = vmatprep.subr.mxu0 0.0
  %1076 = vmatpush2.msra.mxu0 0.0
  %1077 = vmatprep.subr.mxu0 0.0
  %1078 = vmatpush2.msra.mxu0 0.0
  %1079 = vmatprep.subr.mxu0 0.0
  %1080 = vmatpush2.msra.mxu0 0.0
  %1081 = vmatprep.subr.mxu0 0.0
  %1082 = vmatpush2.msra.mxu0 0.0
  %1083 = vmatprep.subr.mxu0 0.0
  %1084 = vmatpush2.msra.mxu0 0.0
  %1085 = vmatprep.subr.mxu0 0.0
  %1086 = vmatpush2.msra.mxu0 0.0
  %1087 = vmatprep.subr.mxu0 0.0
  %1088 = vmatpush2.msra.mxu0 0.0
  %1089 = vmatprep.subr.mxu0 0.0
  %1090 = vmatpush2.msra.mxu0 0.0
  %1091 = vmatprep.subr.mxu0 0.0
  %1092 = vmatpush2.msra.mxu0 0.0
  %1093 = vmatprep.subr.mxu0 0.0
  %1094 = vmatpush2.msra.mxu0 0.0
  %1095 = vmatprep.mubr.f32.mxu0 0.0
  %1096 = vmatmul.mubr.f32.gmra.mxu0 %v1029
  %v1097 = vpop.f32.mrf.mxu0
  %v1098 = vadd.f32 %v1025, %v1097
  %v1099 = vpop.f32.mrf.mxu0
  %1100 = vdwg.mxu0
  %v1101 = vadd.f32 %v1098, %v871
  %v1102 = vmul.f32 %v1101, %v621
  %v1103 = vtanh.pop %v1102
  %v1104 = vmul.f32 %v1103, %v621
  %v1105 = vadd.f32 %v1104, %v622
  %v1106 = vmul.f32 %v1105, %v861
  %1108 = vrot.lane.b32.xlu0 %v1105, 64
  %v1109 = vpop.permute.xlu0 %1108
  %v1111 = vmul.f32 %v1105, %v1109
  %1113 = vrot.lane.b32.xlu0 %v1111, 32
  %v1114 = vpop.permute.xlu0 %1113
  %v1116 = vadd.f32 %v1106, %v1114
  %v1117 = vtanh.pop %v1116
  %1119 = vrot.lane.b32.xlu0 %v1117, 64
  %v1120 = vpop.permute.xlu0 %1119
  %v1122 = vmul.f32 %v1105, %v1120
  %s1123 = scalar_lea.vmem [#allocation2], 16
  %v1124 = vld [vmem:[%s1123] sm:$0xff]
  %s1125 = scalar_lea.vmem [#allocation3], 16
  %v1126 = vld [vmem:[%s1125] sm:$0xff]
  %s1127 = scalar_lea.vmem [#allocation4], 16
  %v1128 = vld [vmem:[%s1127] sm:$0xff]
  %1130 = vrot.lane.b32.xlu0 %v1124, 96
  %v1131 = vpop.permute.xlu0 %1130
  %v1133 = vmul.f32 %v1122, %v1131
  %1135 = vrot.lane.b32.xlu0 %v1133, 32
  %v1136 = vpop.permute.xlu0 %1135
  %v1137 = vsel %vm233, %v1136, 0
  %1139 = vmatprep.subr.mxu0 0.0
  %1140 = vmatpush1.msra.mxu0 0.0
  %1141 = vmatprep.subr.mxu0 0.0
  %1142 = vmatpush1.msra.mxu0 0.0
  %1143 = vmatprep.subr.mxu0 0.0
  %1144 = vmatpush1.msra.mxu0 0.0
  %1145 = vmatprep.subr.mxu0 0.0
  %1146 = vmatpush1.msra.mxu0 0.0
  %1147 = vmatprep.subr.mxu0 0.0
  %1148 = vmatpush1.msra.mxu0 0.0
  %1149 = vmatprep.subr.mxu0 0.0
  %1150 = vmatpush1.msra.mxu0 0.0
  %1151 = vmatprep.subr.mxu0 0.0
  %1152 = vmatpush1.msra.mxu0 0.0
  %1153 = vmatprep.subr.mxu0 0.0
  %1154 = vmatpush1.msra.mxu0 0.0
  %1155 = vmatprep.subr.mxu0 0.0
  %1156 = vmatpush1.msra.mxu0 0.0
  %1157 = vmatprep.subr.mxu0 0.0
  %1158 = vmatpush1.msra.mxu0 0.0
  %1159 = vmatprep.subr.mxu0 0.0
  %1160 = vmatpush1.msra.mxu0 0.0
  %1161 = vmatprep.subr.mxu0 0.0
  %1162 = vmatpush1.msra.mxu0 0.0
  %1163 = vmatprep.subr.mxu0 0.0
  %1164 = vmatpush1.msra.mxu0 %v611
  %1165 = vmatprep.subr.mxu0 0.0
  %1166 = vmatpush1.msra.mxu0 %v610
  %1167 = vmatprep.subr.mxu0 0.0
  %1168 = vmatpush1.msra.mxu0 %v609
  %1169 = vmatprep.subr.mxu0 0.0
  %1170 = vmatpush1.msra.mxu0 %v608
  %1171 = vmatprep.subr.mxu0 0.0
  %1172 = vmatpush2.msra.mxu0 0.0
  %1173 = vmatprep.subr.mxu0 0.0
  %1174 = vmatpush2.msra.mxu0 0.0
  %1175 = vmatprep.subr.mxu0 0.0
  %1176 = vmatpush2.msra.mxu0 0.0
  %1177 = vmatprep.subr.mxu0 0.0
  %1178 = vmatpush2.msra.mxu0 0.0
  %1179 = vmatprep.subr.mxu0 0.0
  %1180 = vmatpush2.msra.mxu0 0.0
  %1181 = vmatprep.subr.mxu0 0.0
  %1182 = vmatpush2.msra.mxu0 0.0
  %1183 = vmatprep.subr.mxu0 0.0
  %1184 = vmatpush2.msra.mxu0 0.0
  %1185 = vmatprep.subr.mxu0 0.0
  %1186 = vmatpush2.msra.mxu0 0.0
  %1187 = vmatprep.subr.mxu0 0.0
  %1188 = vmatpush2.msra.mxu0 0.0
  %1189 = vmatprep.subr.mxu0 0.0
  %1190 = vmatpush2.msra.mxu0 0.0
  %1191 = vmatprep.subr.mxu0 0.0
  %1192 = vmatpush2.msra.mxu0 0.0
  %1193 = vmatprep.subr.mxu0 0.0
  %1194 = vmatpush2.msra.mxu0 0.0
  %1195 = vmatprep.subr.mxu0 0.0
  %1196 = vmatpush2.msra.mxu0 0.0
  %1197 = vmatprep.subr.mxu0 0.0
  %1198 = vmatpush2.msra.mxu0 0.0
  %1199 = vmatprep.subr.mxu0 0.0
  %1200 = vmatpush2.msra.mxu0 0.0
  %1201 = vmatprep.subr.mxu0 0.0
  %1202 = vmatpush2.msra.mxu0 0.0
  %1203 = vmatprep.mubr.f32.mxu0 0.0
  %1204 = vmatmul.mubr.f32.gmra.mxu0 %v1137
  %v1205 = vpop.f32.mrf.mxu0
  %v1206 = vadd.f32 0.0, %v1205
  %v1207 = vpop.f32.mrf.mxu0
  %1208 = vdwg.mxu0
  %v1209 = vadd.f32 %v1206, %v317
  %s1210 = scalar_lea.vmem %s11, 16
  %1211 = vst.msk [vmem:[%s1210] sm:$0xff] %vm71, %v1209
  %v1212 = vmul.f32 %v1128, %v1206
  %1213 = vmatprep.subr.mxu0 0.0
  %1214 = vmatpush1.msra.mxu0 0.0
  %1215 = vmatprep.subr.mxu0 0.0
  %1216 = vmatpush1.msra.mxu0 0.0
  %1217 = vmatprep.subr.mxu0 0.0
  %1218 = vmatpush1.msra.mxu0 0.0
  %1219 = vmatprep.subr.mxu0 0.0
  %1220 = vmatpush1.msra.mxu0 0.0
  %1221 = vmatprep.subr.mxu0 0.0
  %1222 = vmatpush1.msra.mxu0 0.0
  %1223 = vmatprep.subr.mxu0 0.0
  %1224 = vmatpush1.msra.mxu0 0.0
  %1225 = vmatprep.subr.mxu0 0.0
  %1226 = vmatpush1.msra.mxu0 0.0
  %1227 = vmatprep.subr.mxu0 0.0
  %1228 = vmatpush1.msra.mxu0 0.0
  %1229 = vmatprep.subr.mxu0 0.0
  %1230 = vmatpush1.msra.mxu0 0.0
  %1231 = vmatprep.subr.mxu0 0.0
  %1232 = vmatpush1.msra.mxu0 0.0
  %1233 = vmatprep.subr.mxu0 0.0
  %1234 = vmatpush1.msra.mxu0 0.0
  %1235 = vmatprep.subr.mxu0 0.0
  %1236 = vmatpush1.msra.mxu0 0.0
  %1237 = vmatprep.subr.mxu0 0.0
  %1238 = vmatpush1.msra.mxu0 %v615
  %1239 = vmatprep.subr.mxu0 0.0
  %1240 = vmatpush1.msra.mxu0 %v614
  %1241 = vmatprep.subr.mxu0 0.0
  %1242 = vmatpush1.msra.mxu0 %v613
  %1243 = vmatprep.subr.mxu0 0.0
  %1244 = vmatpush1.msra.mxu0 %v612
  %1245 = vmatprep.subr.mxu0 0.0
  %1246 = vmatpush2.msra.mxu0 0.0
  %1247 = vmatprep.subr.mxu0 0.0
  %1248 = vmatpush2.msra.mxu0 0.0
  %1249 = vmatprep.subr.mxu0 0.0
  %1250 = vmatpush2.msra.mxu0 0.0
  %1251 = vmatprep.subr.mxu0 0.0
  %1252 = vmatpush2.msra.mxu0 0.0
  %1253 = vmatprep.subr.mxu0 0.0
  %1254 = vmatpush2.msra.mxu0 0.0
  %1255 = vmatprep.subr.mxu0 0.0
  %1256 = vmatpush2.msra.mxu0 0.0
  %1257 = vmatprep.subr.mxu0 0.0
  %1258 = vmatpush2.msra.mxu0 0.0
  %1259 = vmatprep.subr.mxu0 0.0
  %1260 = vmatpush2.msra.mxu0 0.0
  %1261 = vmatprep.subr.mxu0 0.0
  %1262 = vmatpush2.msra.mxu0 0.0
  %1263 = vmatprep.subr.mxu0 0.0
  %1264 = vmatpush2.msra.mxu0 0.0
  %1265 = vmatprep.subr.mxu0 0.0
  %1266 = vmatpush2.msra.mxu0 0.0
  %1267 = vmatprep.subr.mxu0 0.0
  %1268 = vmatpush2.msra.mxu0 0.0
  %1269 = vmatprep.subr.mxu0 0.0
  %1270 = vmatpush2.msra.mxu0 0.0
  %1271 = vmatprep.subr.mxu0 0.0
  %1272 = vmatpush2.msra.mxu0 0.0
  %1273 = vmatprep.subr.mxu0 0.0
  %1274 = vmatpush2.msra.mxu0 0.0
  %1275 = vmatprep.subr.mxu0 0.0
  %1276 = vmatpush2.msra.mxu0 0.0
  %1277 = vmatprep.mubr.f32.mxu0 0.0
  %1278 = vmatmul.mubr.f32.gmra.mxu0 %v1137
  %v1279 = vpop.f32.mrf.mxu0
  %v1280 = vadd.f32 0.0, %v1279
  %v1281 = vpop.f32.mrf.mxu0
  %1282 = vdwg.mxu0
  %v1284 = vsel %vm71, %v1212, 0
  %1286 = vmatprep.subr.mxu0 0.0
  %1287 = vmatpush1.msra.mxu0 0.0
  %1288 = vmatprep.subr.mxu0 0.0
  %1289 = vmatpush1.msra.mxu0 0.0
  %1290 = vmatprep.subr.mxu0 0.0
  %1291 = vmatpush1.msra.mxu0 0.0
  %1292 = vmatprep.subr.mxu0 0.0
  %1293 = vmatpush1.msra.mxu0 0.0
  %1294 = vmatprep.subr.mxu0 0.0
  %1295 = vmatpush1.msra.mxu0 0.0
  %1296 = vmatprep.subr.mxu0 0.0
  %1297 = vmatpush1.msra.mxu0 0.0
  %1298 = vmatprep.subr.mxu0 0.0
  %1299 = vmatpush1.msra.mxu0 0.0
  %1300 = vmatprep.subr.mxu0 0.0
  %1301 = vmatpush1.msra.mxu0 0.0
  %1302 = vmatprep.subr.mxu0 0.0
  %1303 = vmatpush1.msra.mxu0 0.0
  %1304 = vmatprep.subr.mxu0 0.0
  %1305 = vmatpush1.msra.mxu0 0.0
  %1306 = vmatprep.subr.mxu0 0.0
  %1307 = vmatpush1.msra.mxu0 0.0
  %1308 = vmatprep.subr.mxu0 0.0
  %1309 = vmatpush1.msra.mxu0 0.0
  %1310 = vmatprep.subr.mxu0 0.0
  %1311 = vmatpush1.msra.mxu0 0.0
  %1312 = vmatprep.subr.mxu0 0.0
  %1313 = vmatpush1.msra.mxu0 0.0
  %1314 = vmatprep.subr.mxu0 0.0
  %1315 = vmatpush1.msra.mxu0 %v259
  %1316 = vmatprep.subr.mxu0 0.0
  %1317 = vmatpush1.msra.mxu0 %v258
  %1318 = vmatprep.subr.mxu0 0.0
  %1319 = vmatpush2.msra.mxu0 0.0
  %1320 = vmatprep.subr.mxu0 0.0
  %1321 = vmatpush2.msra.mxu0 0.0
  %1322 = vmatprep.subr.mxu0 0.0
  %1323 = vmatpush2.msra.mxu0 0.0
  %1324 = vmatprep.subr.mxu0 0.0
  %1325 = vmatpush2.msra.mxu0 0.0
  %1326 = vmatprep.subr.mxu0 0.0
  %1327 = vmatpush2.msra.mxu0 0.0
  %1328 = vmatprep.subr.mxu0 0.0
  %1329 = vmatpush2.msra.mxu0 0.0
  %1330 = vmatprep.subr.mxu0 0.0
  %1331 = vmatpush2.msra.mxu0 0.0
  %1332 = vmatprep.subr.mxu0 0.0
  %1333 = vmatpush2.msra.mxu0 0.0
  %1334 = vmatprep.subr.mxu0 0.0
  %1335 = vmatpush2.msra.mxu0 0.0
  %1336 = vmatprep.subr.mxu0 0.0
  %1337 = vmatpush2.msra.mxu0 0.0
  %1338 = vmatprep.subr.mxu0 0.0
  %1339 = vmatpush2.msra.mxu0 0.0
  %1340 = vmatprep.subr.mxu0 0.0
  %1341 = vmatpush2.msra.mxu0 0.0
  %1342 = vmatprep.subr.mxu0 0.0
  %1343 = vmatpush2.msra.mxu0 0.0
  %1344 = vmatprep.subr.mxu0 0.0
  %1345 = vmatpush2.msra.mxu0 0.0
  %1346 = vmatprep.subr.mxu0 0.0
  %1347 = vmatpush2.msra.mxu0 0.0
  %1348 = vmatprep.subr.mxu0 0.0
  %1349 = vmatpush2.msra.mxu0 0.0
  %1350 = vmatprep.mubr.f32.mxu0 0.0
  %1351 = vmatmul.mubr.f32.gmra.mxu0 %v1284
  %v1352 = vpop.f32.mrf.mxu0
  %v1353 = vadd.f32 %v1280, %v1352
  %v1354 = vpop.f32.mrf.mxu0
  %1355 = vdwg.mxu0
  %v1356 = vadd.f32 %v1353, %v1126
  %v1357 = vmul.f32 %v1356, %v621
  %v1358 = vtanh.pop %v1357
  %v1359 = vmul.f32 %v1358, %v621
  %v1360 = vadd.f32 %v1359, %v622
  %v1361 = vmul.f32 %v1360, %v1116
  %1363 = vrot.lane.b32.xlu0 %v1360, 64
  %v1364 = vpop.permute.xlu0 %1363
  %v1366 = vmul.f32 %v1360, %v1364
  %1368 = vrot.lane.b32.xlu0 %v1366, 32
  %v1369 = vpop.permute.xlu0 %1368
  %v1371 = vadd.f32 %v1361, %v1369
  %v1372 = vtanh.pop %v1371
  %1374 = vrot.lane.b32.xlu0 %v1372, 64
  %v1375 = vpop.permute.xlu0 %1374
  %v1377 = vmul.f32 %v1360, %v1375
  %s1378 = scalar_lea.vmem [#allocation2], 24
  %v1379 = vld [vmem:[%s1378] sm:$0xff]
  %s1380 = scalar_lea.vmem [#allocation3], 24
  %v1381 = vld [vmem:[%s1380] sm:$0xff]
  %s1382 = scalar_lea.vmem [#allocation4], 24
  %v1383 = vld [vmem:[%s1382] sm:$0xff]
  %1385 = vrot.lane.b32.xlu0 %v1379, 96
  %v1386 = vpop.permute.xlu0 %1385
  %v1388 = vmul.f32 %v1377, %v1386
  %1390 = vrot.lane.b32.xlu0 %v1388, 32
  %v1391 = vpop.permute.xlu0 %1390
  %v1392 = vsel %vm233, %v1391, 0
  %1394 = vmatprep.subr.mxu0 0.0
  %1395 = vmatpush1.msra.mxu0 0.0
  %1396 = vmatprep.subr.mxu0 0.0
  %1397 = vmatpush1.msra.mxu0 0.0
  %1398 = vmatprep.subr.mxu0 0.0
  %1399 = vmatpush1.msra.mxu0 0.0
  %1400 = vmatprep.subr.mxu0 0.0
  %1401 = vmatpush1.msra.mxu0 0.0
  %1402 = vmatprep.subr.mxu0 0.0
  %1403 = vmatpush1.msra.mxu0 0.0
  %1404 = vmatprep.subr.mxu0 0.0
  %1405 = vmatpush1.msra.mxu0 0.0
  %1406 = vmatprep.subr.mxu0 0.0
  %1407 = vmatpush1.msra.mxu0 0.0
  %1408 = vmatprep.subr.mxu0 0.0
  %1409 = vmatpush1.msra.mxu0 0.0
  %1410 = vmatprep.subr.mxu0 0.0
  %1411 = vmatpush1.msra.mxu0 0.0
  %1412 = vmatprep.subr.mxu0 0.0
  %1413 = vmatpush1.msra.mxu0 0.0
  %1414 = vmatprep.subr.mxu0 0.0
  %1415 = vmatpush1.msra.mxu0 0.0
  %1416 = vmatprep.subr.mxu0 0.0
  %1417 = vmatpush1.msra.mxu0 0.0
  %1418 = vmatprep.subr.mxu0 0.0
  %1419 = vmatpush1.msra.mxu0 %v611
  %1420 = vmatprep.subr.mxu0 0.0
  %1421 = vmatpush1.msra.mxu0 %v610
  %1422 = vmatprep.subr.mxu0 0.0
  %1423 = vmatpush1.msra.mxu0 %v609
  %1424 = vmatprep.subr.mxu0 0.0
  %1425 = vmatpush1.msra.mxu0 %v608
  %1426 = vmatprep.subr.mxu0 0.0
  %1427 = vmatpush2.msra.mxu0 0.0
  %1428 = vmatprep.subr.mxu0 0.0
  %1429 = vmatpush2.msra.mxu0 0.0
  %1430 = vmatprep.subr.mxu0 0.0
  %1431 = vmatpush2.msra.mxu0 0.0
  %1432 = vmatprep.subr.mxu0 0.0
  %1433 = vmatpush2.msra.mxu0 0.0
  %1434 = vmatprep.subr.mxu0 0.0
  %1435 = vmatpush2.msra.mxu0 0.0
  %1436 = vmatprep.subr.mxu0 0.0
  %1437 = vmatpush2.msra.mxu0 0.0
  %1438 = vmatprep.subr.mxu0 0.0
  %1439 = vmatpush2.msra.mxu0 0.0
  %1440 = vmatprep.subr.mxu0 0.0
  %1441 = vmatpush2.msra.mxu0 0.0
  %1442 = vmatprep.subr.mxu0 0.0
  %1443 = vmatpush2.msra.mxu0 0.0
  %1444 = vmatprep.subr.mxu0 0.0
  %1445 = vmatpush2.msra.mxu0 0.0
  %1446 = vmatprep.subr.mxu0 0.0
  %1447 = vmatpush2.msra.mxu0 0.0
  %1448 = vmatprep.subr.mxu0 0.0
  %1449 = vmatpush2.msra.mxu0 0.0
  %1450 = vmatprep.subr.mxu0 0.0
  %1451 = vmatpush2.msra.mxu0 0.0
  %1452 = vmatprep.subr.mxu0 0.0
  %1453 = vmatpush2.msra.mxu0 0.0
  %1454 = vmatprep.subr.mxu0 0.0
  %1455 = vmatpush2.msra.mxu0 0.0
  %1456 = vmatprep.subr.mxu0 0.0
  %1457 = vmatpush2.msra.mxu0 0.0
  %1458 = vmatprep.mubr.f32.mxu0 0.0
  %1459 = vmatmul.mubr.f32.gmra.mxu0 %v1392
  %v1460 = vpop.f32.mrf.mxu0
  %v1461 = vadd.f32 0.0, %v1460
  %v1462 = vpop.f32.mrf.mxu0
  %1463 = vdwg.mxu0
  %v1464 = vadd.f32 %v1461, %v317
  %s1465 = scalar_lea.vmem %s11, 24
  %1466 = vst.msk [vmem:[%s1465] sm:$0xff] %vm71, %v1464
  %v1467 = vmul.f32 %v1383, %v1461
  %1468 = vmatprep.subr.mxu0 0.0
  %1469 = vmatpush1.msra.mxu0 0.0
  %1470 = vmatprep.subr.mxu0 0.0
  %1471 = vmatpush1.msra.mxu0 0.0
  %1472 = vmatprep.subr.mxu0 0.0
  %1473 = vmatpush1.msra.mxu0 0.0
  %1474 = vmatprep.subr.mxu0 0.0
  %1475 = vmatpush1.msra.mxu0 0.0
  %1476 = vmatprep.subr.mxu0 0.0
  %1477 = vmatpush1.msra.mxu0 0.0
  %1478 = vmatprep.subr.mxu0 0.0
  %1479 = vmatpush1.msra.mxu0 0.0
  %1480 = vmatprep.subr.mxu0 0.0
  %1481 = vmatpush1.msra.mxu0 0.0
  %1482 = vmatprep.subr.mxu0 0.0
  %1483 = vmatpush1.msra.mxu0 0.0
  %1484 = vmatprep.subr.mxu0 0.0
  %1485 = vmatpush1.msra.mxu0 0.0
  %1486 = vmatprep.subr.mxu0 0.0
  %1487 = vmatpush1.msra.mxu0 0.0
  %1488 = vmatprep.subr.mxu0 0.0
  %1489 = vmatpush1.msra.mxu0 0.0
  %1490 = vmatprep.subr.mxu0 0.0
  %1491 = vmatpush1.msra.mxu0 0.0
  %1492 = vmatprep.subr.mxu0 0.0
  %1493 = vmatpush1.msra.mxu0 %v615
  %1494 = vmatprep.subr.mxu0 0.0
  %1495 = vmatpush1.msra.mxu0 %v614
  %1496 = vmatprep.subr.mxu0 0.0
  %1497 = vmatpush1.msra.mxu0 %v613
  %1498 = vmatprep.subr.mxu0 0.0
  %1499 = vmatpush1.msra.mxu0 %v612
  %1500 = vmatprep.subr.mxu0 0.0
  %1501 = vmatpush2.msra.mxu0 0.0
  %1502 = vmatprep.subr.mxu0 0.0
  %1503 = vmatpush2.msra.mxu0 0.0
  %1504 = vmatprep.subr.mxu0 0.0
  %1505 = vmatpush2.msra.mxu0 0.0
  %1506 = vmatprep.subr.mxu0 0.0
  %1507 = vmatpush2.msra.mxu0 0.0
  %1508 = vmatprep.subr.mxu0 0.0
  %1509 = vmatpush2.msra.mxu0 0.0
  %1510 = vmatprep.subr.mxu0 0.0
  %1511 = vmatpush2.msra.mxu0 0.0
  %1512 = vmatprep.subr.mxu0 0.0
  %1513 = vmatpush2.msra.mxu0 0.0
  %1514 = vmatprep.subr.mxu0 0.0
  %1515 = vmatpush2.msra.mxu0 0.0
  %1516 = vmatprep.subr.mxu0 0.0
  %1517 = vmatpush2.msra.mxu0 0.0
  %1518 = vmatprep.subr.mxu0 0.0
  %1519 = vmatpush2.msra.mxu0 0.0
  %1520 = vmatprep.subr.mxu0 0.0
  %1521 = vmatpush2.msra.mxu0 0.0
  %1522 = vmatprep.subr.mxu0 0.0
  %1523 = vmatpush2.msra.mxu0 0.0
  %1524 = vmatprep.subr.mxu0 0.0
  %1525 = vmatpush2.msra.mxu0 0.0
  %1526 = vmatprep.subr.mxu0 0.0
  %1527 = vmatpush2.msra.mxu0 0.0
  %1528 = vmatprep.subr.mxu0 0.0
  %1529 = vmatpush2.msra.mxu0 0.0
  %1530 = vmatprep.subr.mxu0 0.0
  %1531 = vmatpush2.msra.mxu0 0.0
  %1532 = vmatprep.mubr.f32.mxu0 0.0
  %1533 = vmatmul.mubr.f32.gmra.mxu0 %v1392
  %v1534 = vpop.f32.mrf.mxu0
  %v1535 = vadd.f32 0.0, %v1534
  %v1536 = vpop.f32.mrf.mxu0
  %1537 = vdwg.mxu0
  %v1539 = vsel %vm71, %v1467, 0
  %1541 = vmatprep.subr.mxu0 0.0
  %1542 = vmatpush1.msra.mxu0 0.0
  %1543 = vmatprep.subr.mxu0 0.0
  %1544 = vmatpush1.msra.mxu0 0.0
  %1545 = vmatprep.subr.mxu0 0.0
  %1546 = vmatpush1.msra.mxu0 0.0
  %1547 = vmatprep.subr.mxu0 0.0
  %1548 = vmatpush1.msra.mxu0 0.0
  %1549 = vmatprep.subr.mxu0 0.0
  %1550 = vmatpush1.msra.mxu0 0.0
  %1551 = vmatprep.subr.mxu0 0.0
  %1552 = vmatpush1.msra.mxu0 0.0
  %1553 = vmatprep.subr.mxu0 0.0
  %1554 = vmatpush1.msra.mxu0 0.0
  %1555 = vmatprep.subr.mxu0 0.0
  %1556 = vmatpush1.msra.mxu0 0.0
  %1557 = vmatprep.subr.mxu0 0.0
  %1558 = vmatpush1.msra.mxu0 0.0
  %1559 = vmatprep.subr.mxu0 0.0
  %1560 = vmatpush1.msra.mxu0 0.0
  %1561 = vmatprep.subr.mxu0 0.0
  %1562 = vmatpush1.msra.mxu0 0.0
  %1563 = vmatprep.subr.mxu0 0.0
  %1564 = vmatpush1.msra.mxu0 0.0
  %1565 = vmatprep.subr.mxu0 0.0
  %1566 = vmatpush1.msra.mxu0 0.0
  %1567 = vmatprep.subr.mxu0 0.0
  %1568 = vmatpush1.msra.mxu0 0.0
  %1569 = vmatprep.subr.mxu0 0.0
  %1570 = vmatpush1.msra.mxu0 %v259
  %1571 = vmatprep.subr.mxu0 0.0
  %1572 = vmatpush1.msra.mxu0 %v258
  %1573 = vmatprep.subr.mxu0 0.0
  %1574 = vmatpush2.msra.mxu0 0.0
  %1575 = vmatprep.subr.mxu0 0.0
  %1576 = vmatpush2.msra.mxu0 0.0
  %1577 = vmatprep.subr.mxu0 0.0
  %1578 = vmatpush2.msra.mxu0 0.0
  %1579 = vmatprep.subr.mxu0 0.0
  %1580 = vmatpush2.msra.mxu0 0.0
  %1581 = vmatprep.subr.mxu0 0.0
  %1582 = vmatpush2.msra.mxu0 0.0
  %1583 = vmatprep.subr.mxu0 0.0
  %1584 = vmatpush2.msra.mxu0 0.0
  %1585 = vmatprep.subr.mxu0 0.0
  %1586 = vmatpush2.msra.mxu0 0.0
  %1587 = vmatprep.subr.mxu0 0.0
  %1588 = vmatpush2.msra.mxu0 0.0
  %1589 = vmatprep.subr.mxu0 0.0
  %1590 = vmatpush2.msra.mxu0 0.0
  %1591 = vmatprep.subr.mxu0 0.0
  %1592 = vmatpush2.msra.mxu0 0.0
  %1593 = vmatprep.subr.mxu0 0.0
  %1594 = vmatpush2.msra.mxu0 0.0
  %1595 = vmatprep.subr.mxu0 0.0
  %1596 = vmatpush2.msra.mxu0 0.0
  %1597 = vmatprep.subr.mxu0 0.0
  %1598 = vmatpush2.msra.mxu0 0.0
  %1599 = vmatprep.subr.mxu0 0.0
  %1600 = vmatpush2.msra.mxu0 0.0
  %1601 = vmatprep.subr.mxu0 0.0
  %1602 = vmatpush2.msra.mxu0 0.0
  %1603 = vmatprep.subr.mxu0 0.0
  %1604 = vmatpush2.msra.mxu0 0.0
  %1605 = vmatprep.mubr.f32.mxu0 0.0
  %1606 = vmatmul.mubr.f32.gmra.mxu0 %v1539
  %v1607 = vpop.f32.mrf.mxu0
  %v1608 = vadd.f32 %v1535, %v1607
  %v1609 = vpop.f32.mrf.mxu0
  %1610 = vdwg.mxu0
  %v1611 = vadd.f32 %v1608, %v1381
  %v1612 = vmul.f32 %v1611, %v621
  %v1613 = vtanh.pop %v1612
  %v1614 = vmul.f32 %v1613, %v621
  %v1615 = vadd.f32 %v1614, %v622
  %v1616 = vmul.f32 %v1615, %v1371
  %1618 = vrot.lane.b32.xlu0 %v1615, 64
  %v1619 = vpop.permute.xlu0 %1618
  %v1621 = vmul.f32 %v1615, %v1619
  %1623 = vrot.lane.b32.xlu0 %v1621, 32
  %v1624 = vpop.permute.xlu0 %1623
  %v1626 = vadd.f32 %v1616, %v1624
  %v1627 = vtanh.pop %v1626
  %1629 = vrot.lane.b32.xlu0 %v1627, 64
  %v1630 = vpop.permute.xlu0 %1629
  %v1632 = vmul.f32 %v1615, %v1630
  %s1633 = scalar_lea.vmem [#allocation2], 32
  %v1634 = vld [vmem:[%s1633] sm:$0xff]
  %s1635 = scalar_lea.vmem [#allocation3], 32
  %v1636 = vld [vmem:[%s1635] sm:$0xff]
  %s1637 = scalar_lea.vmem [#allocation4], 32
  %v1638 = vld [vmem:[%s1637] sm:$0xff]
  %1640 = vrot.lane.b32.xlu0 %v1634, 96
  %v1641 = vpop.permute.xlu0 %1640
  %v1643 = vmul.f32 %v1632, %v1641
  %1645 = vrot.lane.b32.xlu0 %v1643, 32
  %v1646 = vpop.permute.xlu0 %1645
  %v1647 = vsel %vm233, %v1646, 0
  %1649 = vmatprep.subr.mxu0 0.0
  %1650 = vmatpush1.msra.mxu0 0.0
  %1651 = vmatprep.subr.mxu0 0.0
  %1652 = vmatpush1.msra.mxu0 0.0
  %1653 = vmatprep.subr.mxu0 0.0
  %1654 = vmatpush1.msra.mxu0 0.0
  %1655 = vmatprep.subr.mxu0 0.0
  %1656 = vmatpush1.msra.mxu0 0.0
  %1657 = vmatprep.subr.mxu0 0.0
  %1658 = vmatpush1.msra.mxu0 0.0
  %1659 = vmatprep.subr.mxu0 0.0
  %1660 = vmatpush1.msra.mxu0 0.0
  %1661 = vmatprep.subr.mxu0 0.0
  %1662 = vmatpush1.msra.mxu0 0.0
  %1663 = vmatprep.subr.mxu0 0.0
  %1664 = vmatpush1.msra.mxu0 0.0
  %1665 = vmatprep.subr.mxu0 0.0
  %1666 = vmatpush1.msra.mxu0 0.0
  %1667 = vmatprep.subr.mxu0 0.0
  %1668 = vmatpush1.msra.mxu0 0.0
  %1669 = vmatprep.subr.mxu0 0.0
  %1670 = vmatpush1.msra.mxu0 0.0
  %1671 = vmatprep.subr.mxu0 0.0
  %1672 = vmatpush1.msra.mxu0 0.0
  %1673 = vmatprep.subr.mxu0 0.0
  %1674 = vmatpush1.msra.mxu0 %v611
  %1675 = vmatprep.subr.mxu0 0.0
  %1676 = vmatpush1.msra.mxu0 %v610
  %1677 = vmatprep.subr.mxu0 0.0
  %1678 = vmatpush1.msra.mxu0 %v609
  %1679 = vmatprep.subr.mxu0 0.0
  %1680 = vmatpush1.msra.mxu0 %v608
  %1681 = vmatprep.subr.mxu0 0.0
  %1682 = vmatpush2.msra.mxu0 0.0
  %1683 = vmatprep.subr.mxu0 0.0
  %1684 = vmatpush2.msra.mxu0 0.0
  %1685 = vmatprep.subr.mxu0 0.0
  %1686 = vmatpush2.msra.mxu0 0.0
  %1687 = vmatprep.subr.mxu0 0.0
  %1688 = vmatpush2.msra.mxu0 0.0
  %1689 = vmatprep.subr.mxu0 0.0
  %1690 = vmatpush2.msra.mxu0 0.0
  %1691 = vmatprep.subr.mxu0 0.0
  %1692 = vmatpush2.msra.mxu0 0.0
  %1693 = vmatprep.subr.mxu0 0.0
  %1694 = vmatpush2.msra.mxu0 0.0
  %1695 = vmatprep.subr.mxu0 0.0
  %1696 = vmatpush2.msra.mxu0 0.0
  %1697 = vmatprep.subr.mxu0 0.0
  %1698 = vmatpush2.msra.mxu0 0.0
  %1699 = vmatprep.subr.mxu0 0.0
  %1700 = vmatpush2.msra.mxu0 0.0
  %1701 = vmatprep.subr.mxu0 0.0
  %1702 = vmatpush2.msra.mxu0 0.0
  %1703 = vmatprep.subr.mxu0 0.0
  %1704 = vmatpush2.msra.mxu0 0.0
  %1705 = vmatprep.subr.mxu0 0.0
  %1706 = vmatpush2.msra.mxu0 0.0
  %1707 = vmatprep.subr.mxu0 0.0
  %1708 = vmatpush2.msra.mxu0 0.0
  %1709 = vmatprep.subr.mxu0 0.0
  %1710 = vmatpush2.msra.mxu0 0.0
  %1711 = vmatprep.subr.mxu0 0.0
  %1712 = vmatpush2.msra.mxu0 0.0
  %1713 = vmatprep.mubr.f32.mxu0 0.0
  %1714 = vmatmul.mubr.f32.gmra.mxu0 %v1647
  %v1715 = vpop.f32.mrf.mxu0
  %v1716 = vadd.f32 0.0, %v1715
  %v1717 = vpop.f32.mrf.mxu0
  %1718 = vdwg.mxu0
  %v1719 = vadd.f32 %v1716, %v317
  %s1720 = scalar_lea.vmem %s11, 32
  %1721 = vst.msk [vmem:[%s1720] sm:$0xff] %vm71, %v1719
  %v1722 = vmul.f32 %v1638, %v1716
  %1723 = vmatprep.subr.mxu0 0.0
  %1724 = vmatpush1.msra.mxu0 0.0
  %1725 = vmatprep.subr.mxu0 0.0
  %1726 = vmatpush1.msra.mxu0 0.0
  %1727 = vmatprep.subr.mxu0 0.0
  %1728 = vmatpush1.msra.mxu0 0.0
  %1729 = vmatprep.subr.mxu0 0.0
  %1730 = vmatpush1.msra.mxu0 0.0
  %1731 = vmatprep.subr.mxu0 0.0
  %1732 = vmatpush1.msra.mxu0 0.0
  %1733 = vmatprep.subr.mxu0 0.0
  %1734 = vmatpush1.msra.mxu0 0.0
  %1735 = vmatprep.subr.mxu0 0.0
  %1736 = vmatpush1.msra.mxu0 0.0
  %1737 = vmatprep.subr.mxu0 0.0
  %1738 = vmatpush1.msra.mxu0 0.0
  %1739 = vmatprep.subr.mxu0 0.0
  %1740 = vmatpush1.msra.mxu0 0.0
  %1741 = vmatprep.subr.mxu0 0.0
  %1742 = vmatpush1.msra.mxu0 0.0
  %1743 = vmatprep.subr.mxu0 0.0
  %1744 = vmatpush1.msra.mxu0 0.0
  %1745 = vmatprep.subr.mxu0 0.0
  %1746 = vmatpush1.msra.mxu0 0.0
  %1747 = vmatprep.subr.mxu0 0.0
  %1748 = vmatpush1.msra.mxu0 %v615
  %1749 = vmatprep.subr.mxu0 0.0
  %1750 = vmatpush1.msra.mxu0 %v614
  %1751 = vmatprep.subr.mxu0 0.0
  %1752 = vmatpush1.msra.mxu0 %v613
  %1753 = vmatprep.subr.mxu0 0.0
  %1754 = vmatpush1.msra.mxu0 %v612
  %1755 = vmatprep.subr.mxu0 0.0
  %1756 = vmatpush2.msra.mxu0 0.0
  %1757 = vmatprep.subr.mxu0 0.0
  %1758 = vmatpush2.msra.mxu0 0.0
  %1759 = vmatprep.subr.mxu0 0.0
  %1760 = vmatpush2.msra.mxu0 0.0
  %1761 = vmatprep.subr.mxu0 0.0
  %1762 = vmatpush2.msra.mxu0 0.0
  %1763 = vmatprep.subr.mxu0 0.0
  %1764 = vmatpush2.msra.mxu0 0.0
  %1765 = vmatprep.subr.mxu0 0.0
  %1766 = vmatpush2.msra.mxu0 0.0
  %1767 = vmatprep.subr.mxu0 0.0
  %1768 = vmatpush2.msra.mxu0 0.0
  %1769 = vmatprep.subr.mxu0 0.0
  %1770 = vmatpush2.msra.mxu0 0.0
  %1771 = vmatprep.subr.mxu0 0.0
  %1772 = vmatpush2.msra.mxu0 0.0
  %1773 = vmatprep.subr.mxu0 0.0
  %1774 = vmatpush2.msra.mxu0 0.0
  %1775 = vmatprep.subr.mxu0 0.0
  %1776 = vmatpush2.msra.mxu0 0.0
  %1777 = vmatprep.subr.mxu0 0.0
  %1778 = vmatpush2.msra.mxu0 0.0
  %1779 = vmatprep.subr.mxu0 0.0
  %1780 = vmatpush2.msra.mxu0 0.0
  %1781 = vmatprep.subr.mxu0 0.0
  %1782 = vmatpush2.msra.mxu0 0.0
  %1783 = vmatprep.subr.mxu0 0.0
  %1784 = vmatpush2.msra.mxu0 0.0
  %1785 = vmatprep.subr.mxu0 0.0
  %1786 = vmatpush2.msra.mxu0 0.0
  %1787 = vmatprep.mubr.f32.mxu0 0.0
  %1788 = vmatmul.mubr.f32.gmra.mxu0 %v1647
  %v1789 = vpop.f32.mrf.mxu0
  %v1790 = vadd.f32 0.0, %v1789
  %v1791 = vpop.f32.mrf.mxu0
  %1792 = vdwg.mxu0
  %v1794 = vsel %vm71, %v1722, 0
  %1796 = vmatprep.subr.mxu0 0.0
  %1797 = vmatpush1.msra.mxu0 0.0
  %1798 = vmatprep.subr.mxu0 0.0
  %1799 = vmatpush1.msra.mxu0 0.0
  %1800 = vmatprep.subr.mxu0 0.0
  %1801 = vmatpush1.msra.mxu0 0.0
  %1802 = vmatprep.subr.mxu0 0.0
  %1803 = vmatpush1.msra.mxu0 0.0
  %1804 = vmatprep.subr.mxu0 0.0
  %1805 = vmatpush1.msra.mxu0 0.0
  %1806 = vmatprep.subr.mxu0 0.0
  %1807 = vmatpush1.msra.mxu0 0.0
  %1808 = vmatprep.subr.mxu0 0.0
  %1809 = vmatpush1.msra.mxu0 0.0
  %1810 = vmatprep.subr.mxu0 0.0
  %1811 = vmatpush1.msra.mxu0 0.0
  %1812 = vmatprep.subr.mxu0 0.0
  %1813 = vmatpush1.msra.mxu0 0.0
  %1814 = vmatprep.subr.mxu0 0.0
  %1815 = vmatpush1.msra.mxu0 0.0
  %1816 = vmatprep.subr.mxu0 0.0
  %1817 = vmatpush1.msra.mxu0 0.0
  %1818 = vmatprep.subr.mxu0 0.0
  %1819 = vmatpush1.msra.mxu0 0.0
  %1820 = vmatprep.subr.mxu0 0.0
  %1821 = vmatpush1.msra.mxu0 0.0
  %1822 = vmatprep.subr.mxu0 0.0
  %1823 = vmatpush1.msra.mxu0 0.0
  %1824 = vmatprep.subr.mxu0 0.0
  %1825 = vmatpush1.msra.mxu0 %v259
  %1826 = vmatprep.subr.mxu0 0.0
  %1827 = vmatpush1.msra.mxu0 %v258
  %1828 = vmatprep.subr.mxu0 0.0
  %1829 = vmatpush2.msra.mxu0 0.0
  %1830 = vmatprep.subr.mxu0 0.0
  %1831 = vmatpush2.msra.mxu0 0.0
  %1832 = vmatprep.subr.mxu0 0.0
  %1833 = vmatpush2.msra.mxu0 0.0
  %1834 = vmatprep.subr.mxu0 0.0
  %1835 = vmatpush2.msra.mxu0 0.0
  %1836 = vmatprep.subr.mxu0 0.0
  %1837 = vmatpush2.msra.mxu0 0.0
  %1838 = vmatprep.subr.mxu0 0.0
  %1839 = vmatpush2.msra.mxu0 0.0
  %1840 = vmatprep.subr.mxu0 0.0
  %1841 = vmatpush2.msra.mxu0 0.0
  %1842 = vmatprep.subr.mxu0 0.0
  %1843 = vmatpush2.msra.mxu0 0.0
  %1844 = vmatprep.subr.mxu0 0.0
  %1845 = vmatpush2.msra.mxu0 0.0
  %1846 = vmatprep.subr.mxu0 0.0
  %1847 = vmatpush2.msra.mxu0 0.0
  %1848 = vmatprep.subr.mxu0 0.0
  %1849 = vmatpush2.msra.mxu0 0.0
  %1850 = vmatprep.subr.mxu0 0.0
  %1851 = vmatpush2.msra.mxu0 0.0
  %1852 = vmatprep.subr.mxu0 0.0
  %1853 = vmatpush2.msra.mxu0 0.0
  %1854 = vmatprep.subr.mxu0 0.0
  %1855 = vmatpush2.msra.mxu0 0.0
  %1856 = vmatprep.subr.mxu0 0.0
  %1857 = vmatpush2.msra.mxu0 0.0
  %1858 = vmatprep.subr.mxu0 0.0
  %1859 = vmatpush2.msra.mxu0 0.0
  %1860 = vmatprep.mubr.f32.mxu0 0.0
  %1861 = vmatmul.mubr.f32.gmra.mxu0 %v1794
  %v1862 = vpop.f32.mrf.mxu0
  %v1863 = vadd.f32 %v1790, %v1862
  %v1864 = vpop.f32.mrf.mxu0
  %1865 = vdwg.mxu0
  %v1866 = vadd.f32 %v1863, %v1636
  %v1867 = vmul.f32 %v1866, %v621
  %v1868 = vtanh.pop %v1867
  %v1869 = vmul.f32 %v1868, %v621
  %v1870 = vadd.f32 %v1869, %v622
  %v1871 = vmul.f32 %v1870, %v1626
  %1873 = vrot.lane.b32.xlu0 %v1870, 64
  %v1874 = vpop.permute.xlu0 %1873
  %v1876 = vmul.f32 %v1870, %v1874
  %1878 = vrot.lane.b32.xlu0 %v1876, 32
  %v1879 = vpop.permute.xlu0 %1878
  %v1881 = vadd.f32 %v1871, %v1879
  %v1882 = vtanh.pop %v1881
  %1884 = vrot.lane.b32.xlu0 %v1882, 64
  %v1885 = vpop.permute.xlu0 %1884
  %v1887 = vmul.f32 %v1870, %v1885
  %s1888 = scalar_lea.vmem [#allocation2], 40
  %v1889 = vld [vmem:[%s1888] sm:$0xff]
  %s1890 = scalar_lea.vmem [#allocation3], 40
  %v1891 = vld [vmem:[%s1890] sm:$0xff]
  %s1892 = scalar_lea.vmem [#allocation4], 40
  %v1893 = vld [vmem:[%s1892] sm:$0xff]
  %1895 = vrot.lane.b32.xlu0 %v1889, 96
  %v1896 = vpop.permute.xlu0 %1895
  %v1898 = vmul.f32 %v1887, %v1896
  %1900 = vrot.lane.b32.xlu0 %v1898, 32
  %v1901 = vpop.permute.xlu0 %1900
  %v1902 = vsel %vm233, %v1901, 0
  %1904 = vmatprep.subr.mxu0 0.0
  %1905 = vmatpush1.msra.mxu0 0.0
  %1906 = vmatprep.subr.mxu0 0.0
  %1907 = vmatpush1.msra.mxu0 0.0
  %1908 = vmatprep.subr.mxu0 0.0
  %1909 = vmatpush1.msra.mxu0 0.0
  %1910 = vmatprep.subr.mxu0 0.0
  %1911 = vmatpush1.msra.mxu0 0.0
  %1912 = vmatprep.subr.mxu0 0.0
  %1913 = vmatpush1.msra.mxu0 0.0
  %1914 = vmatprep.subr.mxu0 0.0
  %1915 = vmatpush1.msra.mxu0 0.0
  %1916 = vmatprep.subr.mxu0 0.0
  %1917 = vmatpush1.msra.mxu0 0.0
  %1918 = vmatprep.subr.mxu0 0.0
  %1919 = vmatpush1.msra.mxu0 0.0
  %1920 = vmatprep.subr.mxu0 0.0
  %1921 = vmatpush1.msra.mxu0 0.0
  %1922 = vmatprep.subr.mxu0 0.0
  %1923 = vmatpush1.msra.mxu0 0.0
  %1924 = vmatprep.subr.mxu0 0.0
  %1925 = vmatpush1.msra.mxu0 0.0
  %1926 = vmatprep.subr.mxu0 0.0
  %1927 = vmatpush1.msra.mxu0 0.0
  %1928 = vmatprep.subr.mxu0 0.0
  %1929 = vmatpush1.msra.mxu0 %v611
  %1930 = vmatprep.subr.mxu0 0.0
  %1931 = vmatpush1.msra.mxu0 %v610
  %1932 = vmatprep.subr.mxu0 0.0
  %1933 = vmatpush1.msra.mxu0 %v609
  %1934 = vmatprep.subr.mxu0 0.0
  %1935 = vmatpush1.msra.mxu0 %v608
  %1936 = vmatprep.subr.mxu0 0.0
  %1937 = vmatpush2.msra.mxu0 0.0
  %1938 = vmatprep.subr.mxu0 0.0
  %1939 = vmatpush2.msra.mxu0 0.0
  %1940 = vmatprep.subr.mxu0 0.0
  %1941 = vmatpush2.msra.mxu0 0.0
  %1942 = vmatprep.subr.mxu0 0.0
  %1943 = vmatpush2.msra.mxu0 0.0
  %1944 = vmatprep.subr.mxu0 0.0
  %1945 = vmatpush2.msra.mxu0 0.0
  %1946 = vmatprep.subr.mxu0 0.0
  %1947 = vmatpush2.msra.mxu0 0.0
  %1948 = vmatprep.subr.mxu0 0.0
  %1949 = vmatpush2.msra.mxu0 0.0
  %1950 = vmatprep.subr.mxu0 0.0
  %1951 = vmatpush2.msra.mxu0 0.0
  %1952 = vmatprep.subr.mxu0 0.0
  %1953 = vmatpush2.msra.mxu0 0.0
  %1954 = vmatprep.subr.mxu0 0.0
  %1955 = vmatpush2.msra.mxu0 0.0
  %1956 = vmatprep.subr.mxu0 0.0
  %1957 = vmatpush2.msra.mxu0 0.0
  %1958 = vmatprep.subr.mxu0 0.0
  %1959 = vmatpush2.msra.mxu0 0.0
  %1960 = vmatprep.subr.mxu0 0.0
  %1961 = vmatpush2.msra.mxu0 0.0
  %1962 = vmatprep.subr.mxu0 0.0
  %1963 = vmatpush2.msra.mxu0 0.0
  %1964 = vmatprep.subr.mxu0 0.0
  %1965 = vmatpush2.msra.mxu0 0.0
  %1966 = vmatprep.subr.mxu0 0.0
  %1967 = vmatpush2.msra.mxu0 0.0
  %1968 = vmatprep.mubr.f32.mxu0 0.0
  %1969 = vmatmul.mubr.f32.gmra.mxu0 %v1902
  %v1970 = vpop.f32.mrf.mxu0
  %v1971 = vadd.f32 0.0, %v1970
  %v1972 = vpop.f32.mrf.mxu0
  %1973 = vdwg.mxu0
  %v1974 = vadd.f32 %v1971, %v317
  %s1975 = scalar_lea.vmem %s11, 40
  %1976 = vst.msk [vmem:[%s1975] sm:$0xff] %vm71, %v1974
  %v1977 = vmul.f32 %v1893, %v1971
  %1978 = vmatprep.subr.mxu0 0.0
  %1979 = vmatpush1.msra.mxu0 0.0
  %1980 = vmatprep.subr.mxu0 0.0
  %1981 = vmatpush1.msra.mxu0 0.0
  %1982 = vmatprep.subr.mxu0 0.0
  %1983 = vmatpush1.msra.mxu0 0.0
  %1984 = vmatprep.subr.mxu0 0.0
  %1985 = vmatpush1.msra.mxu0 0.0
  %1986 = vmatprep.subr.mxu0 0.0
  %1987 = vmatpush1.msra.mxu0 0.0
  %1988 = vmatprep.subr.mxu0 0.0
  %1989 = vmatpush1.msra.mxu0 0.0
  %1990 = vmatprep.subr.mxu0 0.0
  %1991 = vmatpush1.msra.mxu0 0.0
  %1992 = vmatprep.subr.mxu0 0.0
  %1993 = vmatpush1.msra.mxu0 0.0
  %1994 = vmatprep.subr.mxu0 0.0
  %1995 = vmatpush1.msra.mxu0 0.0
  %1996 = vmatprep.subr.mxu0 0.0
  %1997 = vmatpush1.msra.mxu0 0.0
  %1998 = vmatprep.subr.mxu0 0.0
  %1999 = vmatpush1.msra.mxu0 0.0
  %2000 = vmatprep.subr.mxu0 0.0
  %2001 = vmatpush1.msra.mxu0 0.0
  %2002 = vmatprep.subr.mxu0 0.0
  %2003 = vmatpush1.msra.mxu0 %v615
  %2004 = vmatprep.subr.mxu0 0.0
  %2005 = vmatpush1.msra.mxu0 %v614
  %2006 = vmatprep.subr.mxu0 0.0
  %2007 = vmatpush1.msra.mxu0 %v613
  %2008 = vmatprep.subr.mxu0 0.0
  %2009 = vmatpush1.msra.mxu0 %v612
  %2010 = vmatprep.subr.mxu0 0.0
  %2011 = vmatpush2.msra.mxu0 0.0
  %2012 = vmatprep.subr.mxu0 0.0
  %2013 = vmatpush2.msra.mxu0 0.0
  %2014 = vmatprep.subr.mxu0 0.0
  %2015 = vmatpush2.msra.mxu0 0.0
  %2016 = vmatprep.subr.mxu0 0.0
  %2017 = vmatpush2.msra.mxu0 0.0
  %2018 = vmatprep.subr.mxu0 0.0
  %2019 = vmatpush2.msra.mxu0 0.0
  %2020 = vmatprep.subr.mxu0 0.0
  %2021 = vmatpush2.msra.mxu0 0.0
  %2022 = vmatprep.subr.mxu0 0.0
  %2023 = vmatpush2.msra.mxu0 0.0
  %2024 = vmatprep.subr.mxu0 0.0
  %2025 = vmatpush2.msra.mxu0 0.0
  %2026 = vmatprep.subr.mxu0 0.0
  %2027 = vmatpush2.msra.mxu0 0.0
  %2028 = vmatprep.subr.mxu0 0.0
  %2029 = vmatpush2.msra.mxu0 0.0
  %2030 = vmatprep.subr.mxu0 0.0
  %2031 = vmatpush2.msra.mxu0 0.0
  %2032 = vmatprep.subr.mxu0 0.0
  %2033 = vmatpush2.msra.mxu0 0.0
  %2034 = vmatprep.subr.mxu0 0.0
  %2035 = vmatpush2.msra.mxu0 0.0
  %2036 = vmatprep.subr.mxu0 0.0
  %2037 = vmatpush2.msra.mxu0 0.0
  %2038 = vmatprep.subr.mxu0 0.0
  %2039 = vmatpush2.msra.mxu0 0.0
  %2040 = vmatprep.subr.mxu0 0.0
  %2041 = vmatpush2.msra.mxu0 0.0
  %2042 = vmatprep.mubr.f32.mxu0 0.0
  %2043 = vmatmul.mubr.f32.gmra.mxu0 %v1902
  %v2044 = vpop.f32.mrf.mxu0
  %v2045 = vadd.f32 0.0, %v2044
  %v2046 = vpop.f32.mrf.mxu0
  %2047 = vdwg.mxu0
  %v2049 = vsel %vm71, %v1977, 0
  %2051 = vmatprep.subr.mxu0 0.0
  %2052 = vmatpush1.msra.mxu0 0.0
  %2053 = vmatprep.subr.mxu0 0.0
  %2054 = vmatpush1.msra.mxu0 0.0
  %2055 = vmatprep.subr.mxu0 0.0
  %2056 = vmatpush1.msra.mxu0 0.0
  %2057 = vmatprep.subr.mxu0 0.0
  %2058 = vmatpush1.msra.mxu0 0.0
  %2059 = vmatprep.subr.mxu0 0.0
  %2060 = vmatpush1.msra.mxu0 0.0
  %2061 = vmatprep.subr.mxu0 0.0
  %2062 = vmatpush1.msra.mxu0 0.0
  %2063 = vmatprep.subr.mxu0 0.0
  %2064 = vmatpush1.msra.mxu0 0.0
  %2065 = vmatprep.subr.mxu0 0.0
  %2066 = vmatpush1.msra.mxu0 0.0
  %2067 = vmatprep.subr.mxu0 0.0
  %2068 = vmatpush1.msra.mxu0 0.0
  %2069 = vmatprep.subr.mxu0 0.0
  %2070 = vmatpush1.msra.mxu0 0.0
  %2071 = vmatprep.subr.mxu0 0.0
  %2072 = vmatpush1.msra.mxu0 0.0
  %2073 = vmatprep.subr.mxu0 0.0
  %2074 = vmatpush1.msra.mxu0 0.0
  %2075 = vmatprep.subr.mxu0 0.0
  %2076 = vmatpush1.msra.mxu0 0.0
  %2077 = vmatprep.subr.mxu0 0.0
  %2078 = vmatpush1.msra.mxu0 0.0
  %2079 = vmatprep.subr.mxu0 0.0
  %2080 = vmatpush1.msra.mxu0 %v259
  %2081 = vmatprep.subr.mxu0 0.0
  %2082 = vmatpush1.msra.mxu0 %v258
  %2083 = vmatprep.subr.mxu0 0.0
  %2084 = vmatpush2.msra.mxu0 0.0
  %2085 = vmatprep.subr.mxu0 0.0
  %2086 = vmatpush2.msra.mxu0 0.0
  %2087 = vmatprep.subr.mxu0 0.0
  %2088 = vmatpush2.msra.mxu0 0.0
  %2089 = vmatprep.subr.mxu0 0.0
  %2090 = vmatpush2.msra.mxu0 0.0
  %2091 = vmatprep.subr.mxu0 0.0
  %2092 = vmatpush2.msra.mxu0 0.0
  %2093 = vmatprep.subr.mxu0 0.0
  %2094 = vmatpush2.msra.mxu0 0.0
  %2095 = vmatprep.subr.mxu0 0.0
  %2096 = vmatpush2.msra.mxu0 0.0
  %2097 = vmatprep.subr.mxu0 0.0
  %2098 = vmatpush2.msra.mxu0 0.0
  %2099 = vmatprep.subr.mxu0 0.0
  %2100 = vmatpush2.msra.mxu0 0.0
  %2101 = vmatprep.subr.mxu0 0.0
  %2102 = vmatpush2.msra.mxu0 0.0
  %2103 = vmatprep.subr.mxu0 0.0
  %2104 = vmatpush2.msra.mxu0 0.0
  %2105 = vmatprep.subr.mxu0 0.0
  %2106 = vmatpush2.msra.mxu0 0.0
  %2107 = vmatprep.subr.mxu0 0.0
  %2108 = vmatpush2.msra.mxu0 0.0
  %2109 = vmatprep.subr.mxu0 0.0
  %2110 = vmatpush2.msra.mxu0 0.0
  %2111 = vmatprep.subr.mxu0 0.0
  %2112 = vmatpush2.msra.mxu0 0.0
  %2113 = vmatprep.subr.mxu0 0.0
  %2114 = vmatpush2.msra.mxu0 0.0
  %2115 = vmatprep.mubr.f32.mxu0 0.0
  %2116 = vmatmul.mubr.f32.gmra.mxu0 %v2049
  %v2117 = vpop.f32.mrf.mxu0
  %v2118 = vadd.f32 %v2045, %v2117
  %v2119 = vpop.f32.mrf.mxu0
  %2120 = vdwg.mxu0
  %v2121 = vadd.f32 %v2118, %v1891
  %v2122 = vmul.f32 %v2121, %v621
  %v2123 = vtanh.pop %v2122
  %v2124 = vmul.f32 %v2123, %v621
  %v2125 = vadd.f32 %v2124, %v622
  %v2126 = vmul.f32 %v2125, %v1881
  %2128 = vrot.lane.b32.xlu0 %v2125, 64
  %v2129 = vpop.permute.xlu0 %2128
  %v2131 = vmul.f32 %v2125, %v2129
  %2133 = vrot.lane.b32.xlu0 %v2131, 32
  %v2134 = vpop.permute.xlu0 %2133
  %v2136 = vadd.f32 %v2126, %v2134
  %v2137 = vtanh.pop %v2136
  %2139 = vrot.lane.b32.xlu0 %v2137, 64
  %v2140 = vpop.permute.xlu0 %2139
  %v2142 = vmul.f32 %v2125, %v2140
  %s2143 = scalar_lea.vmem [#allocation2], 48
  %v2144 = vld [vmem:[%s2143] sm:$0xff]
  %s2145 = scalar_lea.vmem [#allocation3], 48
  %v2146 = vld [vmem:[%s2145] sm:$0xff]
  %s2147 = scalar_lea.vmem [#allocation4], 48
  %v2148 = vld [vmem:[%s2147] sm:$0xff]
  %2150 = vrot.lane.b32.xlu0 %v2144, 96
  %v2151 = vpop.permute.xlu0 %2150
  %v2153 = vmul.f32 %v2142, %v2151
  %2155 = vrot.lane.b32.xlu0 %v2153, 32
  %v2156 = vpop.permute.xlu0 %2155
  %v2157 = vsel %vm233, %v2156, 0
  %2159 = vmatprep.subr.mxu0 0.0
  %2160 = vmatpush1.msra.mxu0 0.0
  %2161 = vmatprep.subr.mxu0 0.0
  %2162 = vmatpush1.msra.mxu0 0.0
  %2163 = vmatprep.subr.mxu0 0.0
  %2164 = vmatpush1.msra.mxu0 0.0
  %2165 = vmatprep.subr.mxu0 0.0
  %2166 = vmatpush1.msra.mxu0 0.0
  %2167 = vmatprep.subr.mxu0 0.0
  %2168 = vmatpush1.msra.mxu0 0.0
  %2169 = vmatprep.subr.mxu0 0.0
  %2170 = vmatpush1.msra.mxu0 0.0
  %2171 = vmatprep.subr.mxu0 0.0
  %2172 = vmatpush1.msra.mxu0 0.0
  %2173 = vmatprep.subr.mxu0 0.0
  %2174 = vmatpush1.msra.mxu0 0.0
  %2175 = vmatprep.subr.mxu0 0.0
  %2176 = vmatpush1.msra.mxu0 0.0
  %2177 = vmatprep.subr.mxu0 0.0
  %2178 = vmatpush1.msra.mxu0 0.0
  %2179 = vmatprep.subr.mxu0 0.0
  %2180 = vmatpush1.msra.mxu0 0.0
  %2181 = vmatprep.subr.mxu0 0.0
  %2182 = vmatpush1.msra.mxu0 0.0
  %2183 = vmatprep.subr.mxu0 0.0
  %2184 = vmatpush1.msra.mxu0 %v611
  %2185 = vmatprep.subr.mxu0 0.0
  %2186 = vmatpush1.msra.mxu0 %v610
  %2187 = vmatprep.subr.mxu0 0.0
  %2188 = vmatpush1.msra.mxu0 %v609
  %2189 = vmatprep.subr.mxu0 0.0
  %2190 = vmatpush1.msra.mxu0 %v608
  %2191 = vmatprep.subr.mxu0 0.0
  %2192 = vmatpush2.msra.mxu0 0.0
  %2193 = vmatprep.subr.mxu0 0.0
  %2194 = vmatpush2.msra.mxu0 0.0
  %2195 = vmatprep.subr.mxu0 0.0
  %2196 = vmatpush2.msra.mxu0 0.0
  %2197 = vmatprep.subr.mxu0 0.0
  %2198 = vmatpush2.msra.mxu0 0.0
  %2199 = vmatprep.subr.mxu0 0.0
  %2200 = vmatpush2.msra.mxu0 0.0
  %2201 = vmatprep.subr.mxu0 0.0
  %2202 = vmatpush2.msra.mxu0 0.0
  %2203 = vmatprep.subr.mxu0 0.0
  %2204 = vmatpush2.msra.mxu0 0.0
  %2205 = vmatprep.subr.mxu0 0.0
  %2206 = vmatpush2.msra.mxu0 0.0
  %2207 = vmatprep.subr.mxu0 0.0
  %2208 = vmatpush2.msra.mxu0 0.0
  %2209 = vmatprep.subr.mxu0 0.0
  %2210 = vmatpush2.msra.mxu0 0.0
  %2211 = vmatprep.subr.mxu0 0.0
  %2212 = vmatpush2.msra.mxu0 0.0
  %2213 = vmatprep.subr.mxu0 0.0
  %2214 = vmatpush2.msra.mxu0 0.0
  %2215 = vmatprep.subr.mxu0 0.0
  %2216 = vmatpush2.msra.mxu0 0.0
  %2217 = vmatprep.subr.mxu0 0.0
  %2218 = vmatpush2.msra.mxu0 0.0
  %2219 = vmatprep.subr.mxu0 0.0
  %2220 = vmatpush2.msra.mxu0 0.0
  %2221 = vmatprep.subr.mxu0 0.0
  %2222 = vmatpush2.msra.mxu0 0.0
  %2223 = vmatprep.mubr.f32.mxu0 0.0
  %2224 = vmatmul.mubr.f32.gmra.mxu0 %v2157
  %v2225 = vpop.f32.mrf.mxu0
  %v2226 = vadd.f32 0.0, %v2225
  %v2227 = vpop.f32.mrf.mxu0
  %2228 = vdwg.mxu0
  %v2229 = vadd.f32 %v2226, %v317
  %s2230 = scalar_lea.vmem %s11, 48
  %2231 = vst.msk [vmem:[%s2230] sm:$0xff] %vm71, %v2229
  %v2232 = vmul.f32 %v2148, %v2226
  %2233 = vmatprep.subr.mxu0 0.0
  %2234 = vmatpush1.msra.mxu0 0.0
  %2235 = vmatprep.subr.mxu0 0.0
  %2236 = vmatpush1.msra.mxu0 0.0
  %2237 = vmatprep.subr.mxu0 0.0
  %2238 = vmatpush1.msra.mxu0 0.0
  %2239 = vmatprep.subr.mxu0 0.0
  %2240 = vmatpush1.msra.mxu0 0.0
  %2241 = vmatprep.subr.mxu0 0.0
  %2242 = vmatpush1.msra.mxu0 0.0
  %2243 = vmatprep.subr.mxu0 0.0
  %2244 = vmatpush1.msra.mxu0 0.0
  %2245 = vmatprep.subr.mxu0 0.0
  %2246 = vmatpush1.msra.mxu0 0.0
  %2247 = vmatprep.subr.mxu0 0.0
  %2248 = vmatpush1.msra.mxu0 0.0
  %2249 = vmatprep.subr.mxu0 0.0
  %2250 = vmatpush1.msra.mxu0 0.0
  %2251 = vmatprep.subr.mxu0 0.0
  %2252 = vmatpush1.msra.mxu0 0.0
  %2253 = vmatprep.subr.mxu0 0.0
  %2254 = vmatpush1.msra.mxu0 0.0
  %2255 = vmatprep.subr.mxu0 0.0
  %2256 = vmatpush1.msra.mxu0 0.0
  %2257 = vmatprep.subr.mxu0 0.0
  %2258 = vmatpush1.msra.mxu0 %v615
  %2259 = vmatprep.subr.mxu0 0.0
  %2260 = vmatpush1.msra.mxu0 %v614
  %2261 = vmatprep.subr.mxu0 0.0
  %2262 = vmatpush1.msra.mxu0 %v613
  %2263 = vmatprep.subr.mxu0 0.0
  %2264 = vmatpush1.msra.mxu0 %v612
  %2265 = vmatprep.subr.mxu0 0.0
  %2266 = vmatpush2.msra.mxu0 0.0
  %2267 = vmatprep.subr.mxu0 0.0
  %2268 = vmatpush2.msra.mxu0 0.0
  %2269 = vmatprep.subr.mxu0 0.0
  %2270 = vmatpush2.msra.mxu0 0.0
  %2271 = vmatprep.subr.mxu0 0.0
  %2272 = vmatpush2.msra.mxu0 0.0
  %2273 = vmatprep.subr.mxu0 0.0
  %2274 = vmatpush2.msra.mxu0 0.0
  %2275 = vmatprep.subr.mxu0 0.0
  %2276 = vmatpush2.msra.mxu0 0.0
  %2277 = vmatprep.subr.mxu0 0.0
  %2278 = vmatpush2.msra.mxu0 0.0
  %2279 = vmatprep.subr.mxu0 0.0
  %2280 = vmatpush2.msra.mxu0 0.0
  %2281 = vmatprep.subr.mxu0 0.0
  %2282 = vmatpush2.msra.mxu0 0.0
  %2283 = vmatprep.subr.mxu0 0.0
  %2284 = vmatpush2.msra.mxu0 0.0
  %2285 = vmatprep.subr.mxu0 0.0
  %2286 = vmatpush2.msra.mxu0 0.0
  %2287 = vmatprep.subr.mxu0 0.0
  %2288 = vmatpush2.msra.mxu0 0.0
  %2289 = vmatprep.subr.mxu0 0.0
  %2290 = vmatpush2.msra.mxu0 0.0
  %2291 = vmatprep.subr.mxu0 0.0
  %2292 = vmatpush2.msra.mxu0 0.0
  %2293 = vmatprep.subr.mxu0 0.0
  %2294 = vmatpush2.msra.mxu0 0.0
  %2295 = vmatprep.subr.mxu0 0.0
  %2296 = vmatpush2.msra.mxu0 0.0
  %2297 = vmatprep.mubr.f32.mxu0 0.0
  %2298 = vmatmul.mubr.f32.gmra.mxu0 %v2157
  %v2299 = vpop.f32.mrf.mxu0
  %v2300 = vadd.f32 0.0, %v2299
  %v2301 = vpop.f32.mrf.mxu0
  %2302 = vdwg.mxu0
  %v2304 = vsel %vm71, %v2232, 0
  %2306 = vmatprep.subr.mxu0 0.0
  %2307 = vmatpush1.msra.mxu0 0.0
  %2308 = vmatprep.subr.mxu0 0.0
  %2309 = vmatpush1.msra.mxu0 0.0
  %2310 = vmatprep.subr.mxu0 0.0
  %2311 = vmatpush1.msra.mxu0 0.0
  %2312 = vmatprep.subr.mxu0 0.0
  %2313 = vmatpush1.msra.mxu0 0.0
  %2314 = vmatprep.subr.mxu0 0.0
  %2315 = vmatpush1.msra.mxu0 0.0
  %2316 = vmatprep.subr.mxu0 0.0
  %2317 = vmatpush1.msra.mxu0 0.0
  %2318 = vmatprep.subr.mxu0 0.0
  %2319 = vmatpush1.msra.mxu0 0.0
  %2320 = vmatprep.subr.mxu0 0.0
  %2321 = vmatpush1.msra.mxu0 0.0
  %2322 = vmatprep.subr.mxu0 0.0
  %2323 = vmatpush1.msra.mxu0 0.0
  %2324 = vmatprep.subr.mxu0 0.0
  %2325 = vmatpush1.msra.mxu0 0.0
  %2326 = vmatprep.subr.mxu0 0.0
  %2327 = vmatpush1.msra.mxu0 0.0
  %2328 = vmatprep.subr.mxu0 0.0
  %2329 = vmatpush1.msra.mxu0 0.0
  %2330 = vmatprep.subr.mxu0 0.0
  %2331 = vmatpush1.msra.mxu0 0.0
  %2332 = vmatprep.subr.mxu0 0.0
  %2333 = vmatpush1.msra.mxu0 0.0
  %2334 = vmatprep.subr.mxu0 0.0
  %2335 = vmatpush1.msra.mxu0 %v259
  %2336 = vmatprep.subr.mxu0 0.0
  %2337 = vmatpush1.msra.mxu0 %v258
  %2338 = vmatprep.subr.mxu0 0.0
  %2339 = vmatpush2.msra.mxu0 0.0
  %2340 = vmatprep.subr.mxu0 0.0
  %2341 = vmatpush2.msra.mxu0 0.0
  %2342 = vmatprep.subr.mxu0 0.0
  %2343 = vmatpush2.msra.mxu0 0.0
  %2344 = vmatprep.subr.mxu0 0.0
  %2345 = vmatpush2.msra.mxu0 0.0
  %2346 = vmatprep.subr.mxu0 0.0
  %2347 = vmatpush2.msra.mxu0 0.0
  %2348 = vmatprep.subr.mxu0 0.0
  %2349 = vmatpush2.msra.mxu0 0.0
  %2350 = vmatprep.subr.mxu0 0.0
  %2351 = vmatpush2.msra.mxu0 0.0
  %2352 = vmatprep.subr.mxu0 0.0
  %2353 = vmatpush2.msra.mxu0 0.0
  %2354 = vmatprep.subr.mxu0 0.0
  %2355 = vmatpush2.msra.mxu0 0.0
  %2356 = vmatprep.subr.mxu0 0.0
  %2357 = vmatpush2.msra.mxu0 0.0
  %2358 = vmatprep.subr.mxu0 0.0
  %2359 = vmatpush2.msra.mxu0 0.0
  %2360 = vmatprep.subr.mxu0 0.0
  %2361 = vmatpush2.msra.mxu0 0.0
  %2362 = vmatprep.subr.mxu0 0.0
  %2363 = vmatpush2.msra.mxu0 0.0
  %2364 = vmatprep.subr.mxu0 0.0
  %2365 = vmatpush2.msra.mxu0 0.0
  %2366 = vmatprep.subr.mxu0 0.0
  %2367 = vmatpush2.msra.mxu0 0.0
  %2368 = vmatprep.subr.mxu0 0.0
  %2369 = vmatpush2.msra.mxu0 0.0
  %2370 = vmatprep.mubr.f32.mxu0 0.0
  %2371 = vmatmul.mubr.f32.gmra.mxu0 %v2304
  %v2372 = vpop.f32.mrf.mxu0
  %v2373 = vadd.f32 %v2300, %v2372
  %v2374 = vpop.f32.mrf.mxu0
  %2375 = vdwg.mxu0
  %v2376 = vadd.f32 %v2373, %v2146
  %v2377 = vmul.f32 %v2376, %v621
  %v2378 = vtanh.pop %v2377
  %v2379 = vmul.f32 %v2378, %v621
  %v2380 = vadd.f32 %v2379, %v622
  %v2381 = vmul.f32 %v2380, %v2136
  %2383 = vrot.lane.b32.xlu0 %v2380, 64
  %v2384 = vpop.permute.xlu0 %2383
  %v2386 = vmul.f32 %v2380, %v2384
  %2388 = vrot.lane.b32.xlu0 %v2386, 32
  %v2389 = vpop.permute.xlu0 %2388
  %v2391 = vadd.f32 %v2381, %v2389
  %v2392 = vtanh.pop %v2391
  %2394 = vrot.lane.b32.xlu0 %v2392, 64
  %v2395 = vpop.permute.xlu0 %2394
  %v2397 = vmul.f32 %v2380, %v2395
  %s2398 = scalar_lea.vmem [#allocation2], 56
  %v2399 = vld [vmem:[%s2398] sm:$0xff]
  %2401 = vrot.lane.b32.xlu0 %v2399, 96
  %v2402 = vpop.permute.xlu0 %2401
  %v2404 = vmul.f32 %v2397, %v2402
  %2406 = vrot.lane.b32.xlu0 %v2404, 32
  %v2407 = vpop.permute.xlu0 %2406
  %v2408 = vsel %vm233, %v2407, 0
  %2410 = vmatprep.subr.mxu0 0.0
  %2411 = vmatpush1.msra.mxu0 0.0
  %2412 = vmatprep.subr.mxu0 0.0
  %2413 = vmatpush1.msra.mxu0 0.0
  %2414 = vmatprep.subr.mxu0 0.0
  %2415 = vmatpush1.msra.mxu0 0.0
  %2416 = vmatprep.subr.mxu0 0.0
  %2417 = vmatpush1.msra.mxu0 0.0
  %2418 = vmatprep.subr.mxu0 0.0
  %2419 = vmatpush1.msra.mxu0 0.0
  %2420 = vmatprep.subr.mxu0 0.0
  %2421 = vmatpush1.msra.mxu0 0.0
  %2422 = vmatprep.subr.mxu0 0.0
  %2423 = vmatpush1.msra.mxu0 0.0
  %2424 = vmatprep.subr.mxu0 0.0
  %2425 = vmatpush1.msra.mxu0 0.0
  %2426 = vmatprep.subr.mxu0 0.0
  %2427 = vmatpush1.msra.mxu0 0.0
  %2428 = vmatprep.subr.mxu0 0.0
  %2429 = vmatpush1.msra.mxu0 0.0
  %2430 = vmatprep.subr.mxu0 0.0
  %2431 = vmatpush1.msra.mxu0 0.0
  %2432 = vmatprep.subr.mxu0 0.0
  %2433 = vmatpush1.msra.mxu0 0.0
  %2434 = vmatprep.subr.mxu0 0.0
  %2435 = vmatpush1.msra.mxu0 %v611
  %2436 = vmatprep.subr.mxu0 0.0
  %2437 = vmatpush1.msra.mxu0 %v610
  %2438 = vmatprep.subr.mxu0 0.0
  %2439 = vmatpush1.msra.mxu0 %v609
  %2440 = vmatprep.subr.mxu0 0.0
  %2441 = vmatpush1.msra.mxu0 %v608
  %2442 = vmatprep.subr.mxu0 0.0
  %2443 = vmatpush2.msra.mxu0 0.0
  %2444 = vmatprep.subr.mxu0 0.0
  %2445 = vmatpush2.msra.mxu0 0.0
  %2446 = vmatprep.subr.mxu0 0.0
  %2447 = vmatpush2.msra.mxu0 0.0
  %2448 = vmatprep.subr.mxu0 0.0
  %2449 = vmatpush2.msra.mxu0 0.0
  %2450 = vmatprep.subr.mxu0 0.0
  %2451 = vmatpush2.msra.mxu0 0.0
  %2452 = vmatprep.subr.mxu0 0.0
  %2453 = vmatpush2.msra.mxu0 0.0
  %2454 = vmatprep.subr.mxu0 0.0
  %2455 = vmatpush2.msra.mxu0 0.0
  %2456 = vmatprep.subr.mxu0 0.0
  %2457 = vmatpush2.msra.mxu0 0.0
  %2458 = vmatprep.subr.mxu0 0.0
  %2459 = vmatpush2.msra.mxu0 0.0
  %2460 = vmatprep.subr.mxu0 0.0
  %2461 = vmatpush2.msra.mxu0 0.0
  %2462 = vmatprep.subr.mxu0 0.0
  %2463 = vmatpush2.msra.mxu0 0.0
  %2464 = vmatprep.subr.mxu0 0.0
  %2465 = vmatpush2.msra.mxu0 0.0
  %2466 = vmatprep.subr.mxu0 0.0
  %2467 = vmatpush2.msra.mxu0 0.0
  %2468 = vmatprep.subr.mxu0 0.0
  %2469 = vmatpush2.msra.mxu0 0.0
  %2470 = vmatprep.subr.mxu0 0.0
  %2471 = vmatpush2.msra.mxu0 0.0
  %2472 = vmatprep.subr.mxu0 0.0
  %2473 = vmatpush2.msra.mxu0 0.0
  %2474 = vmatprep.mubr.f32.mxu0 0.0
  %2475 = vmatmul.mubr.f32.gmra.mxu0 %v2408
  %v2476 = vpop.f32.mrf.mxu0
  %v2477 = vadd.f32 %v317, %v2476
  %v2478 = vpop.f32.mrf.mxu0
  %2479 = vdwg.mxu0
  %s2480 = scalar_lea.vmem %s11, 56
  %2481 = vst.msk [vmem:[%s2480] sm:$0xff] %vm71, %v2477
  // Predicated region
  $region46: #{tpu_custom_call.1} parent=0 // pred_check
    _
  $region47: #{tpu_custom_call.1} parent=0 // pred_check_branch
    %2483 = sbr.rel (0) target = $region49
  $region48: #{tpu_custom_call.1} parent=0 // pred_region
    _
  $region49: #{tpu_custom_call.1} parent=0 // pred_fallthru
    _
  // Predicated region
  $region50: #{tpu_custom_call.1} parent=0 // pred_check
    _
  $region51: #{tpu_custom_call.1} parent=0 // pred_check_branch
    %2485 = sbr.rel (0) target = $region53
  $region52: #{tpu_custom_call.1} parent=0 // pred_region
    _
  $region53: #{tpu_custom_call.1} parent=0 // pred_fallthru
    _

</llo_original>
